<compile_context>
chip_gen: v5e
topology: v5e:2x2
jax: 0.10.0
libtpu: 0.0.40
codegen_flags: <defaults>
</compile_context>

<pallas_src>
import functools

import jax
import jax.numpy as jnp
from jax.experimental import pallas as pl
from jax.experimental.pallas import tpu as pltpu


# ----------------------------------------------------------------------------
# Fused decoder kernel: one grid step == one decoder layer.
# ----------------------------------------------------------------------------
def _decoder_kernel(
    # resident inputs (constant block index across layers)
    tgt_ref, qpos_ref, mem_ref, pos_ref, fln_ref,
    # per-layer stacked weights (block index = layer)
    sa_wqk_ref, sa_bqk_ref, sa_wv_ref, sa_bv_ref, sa_wo_ref, sa_bo_ref,
    ca_wq_ref, ca_bq_ref, ca_wk_ref, ca_bk_ref, ca_wv_ref, ca_bv_ref,
    ca_wo_ref, ca_bo_ref,
    w1_ref, b1_ref, w2_ref, b2_ref, ln_ref,
    # outputs
    out_ref, attnw_ref,
    # scratch
    state_ref,
    *, nheads):
    l = pl.program_id(0)
    nl = pl.num_programs(0)

    B, Tq, C = out_ref.shape
    Tm = mem_ref.shape[1]
    dh = C // nheads
    scale = 1.0 / float(dh) ** 0.5
    Nq = B * Tq
    Nm = B * Tm

    # initialize carried state from tgt at the first layer
    @pl.when(l == 0)
    def _():
        state_ref[...] = tgt_ref[...].astype(jnp.float32).reshape(Nq, C)

    x = state_ref[...]                                          # (Nq, C) f32
    qpos = qpos_ref[...].astype(jnp.float32).reshape(Nq, C)
    mem = mem_ref[...].astype(jnp.float32).reshape(Nm, C)
    pos = pos_ref[...].astype(jnp.float32).reshape(Nm, C)
    ln = ln_ref[0].astype(jnp.float32)                          # (6, C)

    def layer_norm(y, g, b, eps=1e-5):                          # y: (N, C)
        mu = jnp.mean(y, axis=-1, keepdims=True)
        yc = y - mu
        var = jnp.mean(yc * yc, axis=-1, keepdims=True)
        return yc * jax.lax.rsqrt(var + eps) * g + b

    def mm(a, w, b):
        return jnp.dot(a, w, preferred_element_type=jnp.float32) + b

    def mha(q2, k2, v2, Tk, wo, bo, need_weights):
        # q2: (Nq, C); k2/v2: (B*Tk, C). Per-head attention, out-proj folded in.
        q3 = q2.reshape(B, Tq, C)
        k3 = k2.reshape(B, Tk, C)
        v3 = v2.reshape(B, Tk, C)
        o = jnp.zeros((Nq, C), jnp.float32)
        w_sum = jnp.zeros((B, Tq, Tk), jnp.float32) if need_weights else None
        for h in range(nheads):                                 # static unroll, all in VMEM
            sl = slice(h * dh, (h + 1) * dh)
            s = jnp.einsum('bqd,bkd->bqk', q3[:, :, sl], k3[:, :, sl],
                           preferred_element_type=jnp.float32) * scale
            s = s - jnp.max(s, axis=-1, keepdims=True)
            p = jnp.exp(s)
            p = p * pl.reciprocal(jnp.sum(p, axis=-1, keepdims=True), approx=True)
            oh = jnp.einsum('bqk,bkd->bqd', p, v3[:, :, sl],
                            preferred_element_type=jnp.float32)        # (B, Tq, dh)
            o = o + jnp.dot(oh.reshape(Nq, dh), wo[sl, :],
                            preferred_element_type=jnp.float32)
            if need_weights:
                w_sum = w_sum + p
        o = o + bo
        if need_weights:
            return o, w_sum * (1.0 / nheads)
        return o, None

    # ---- self-attention: q = k = x + query_pos, v = x (fused QK projection) ----
    q_in = x + qpos
    qk = mm(q_in, sa_wqk_ref[0], sa_bqk_ref[0])                 # (Nq, 2C)
    v_sa = mm(x, sa_wv_ref[0], sa_bv_ref[0])
    sa_o, _ = mha(qk[:, :C], qk[:, C:2 * C], v_sa, Tq,
                  sa_wo_ref[0], sa_bo_ref[0], need_weights=False)
    x = layer_norm(x + sa_o, ln[0:1, :], ln[1:2, :])

    # ---- cross-attention: q = x + query_pos, k = memory + pos, v = memory ----
    q_ca = mm(x + qpos, ca_wq_ref[0], ca_bq_ref[0])
    k_ca = mm(mem + pos, ca_wk_ref[0], ca_bk_ref[0])
    v_ca = mm(mem, ca_wv_ref[0], ca_bv_ref[0])
    ca_o, ws = mha(q_ca, k_ca, v_ca, Tm,
                   ca_wo_ref[0], ca_bo_ref[0], need_weights=True)
    attnw_ref[0] = ws.astype(attnw_ref.dtype)                   # head-mean, (B, Tq, Tm)
    x = layer_norm(x + ca_o, ln[2:3, :], ln[3:4, :])

    # ---- feed-forward (fused linear1 + ReLU + linear2, hidden stays in VMEM) ----
    hdn = jnp.maximum(mm(x, w1_ref[0], b1_ref[0]), 0.0)
    ffo = mm(hdn, w2_ref[0], b2_ref[0])
    x = layer_norm(x + ffo, ln[4:5, :], ln[5:6, :])

    state_ref[...] = x

    # final decoder norm, written once (output block is resident across the grid)
    @pl.when(l == nl - 1)
    def _():
        y = layer_norm(x, fln_ref[0:1, :], fln_ref[1:2, :])
        out_ref[...] = y.reshape(B, Tq, C).astype(out_ref.dtype)


# ----------------------------------------------------------------------------
# Wrapper: one pallas_call for the whole decoder.
# ----------------------------------------------------------------------------
def transformer_decoder_forward(params, tgt, memory, pos, query_pos, nheads):
    Tq, B, C = tgt.shape
    Tm = memory.shape[0]
    L = params["sa_wqk"].shape[0]
    FF = params["w1"].shape[2]

    # (T, B, C) -> (B, T, C) once, outside the kernel (tiny, done a single time)
    tgt_b = jnp.transpose(tgt, (1, 0, 2))
    qpos_b = jnp.transpose(query_pos, (1, 0, 2))
    mem_b = jnp.transpose(memory, (1, 0, 2))
    pos_b = jnp.transpose(pos, (1, 0, 2))

    def full(shape):
        return pl.BlockSpec(shape, lambda l, _n=len(shape): (0,) * _n)

    def per_layer(shape):
        return pl.BlockSpec((1,) + shape, lambda l, _n=len(shape): (l,) + (0,) * _n)

    in_specs = [
        full((B, Tq, C)), full((B, Tq, C)), full((B, Tm, C)), full((B, Tm, C)),
        full((2, C)),
        per_layer((C, 2 * C)), per_layer((1, 2 * C)),
        per_layer((C, C)), per_layer((1, C)),
        per_layer((C, C)), per_layer((1, C)),
        per_layer((C, C)), per_layer((1, C)),
        per_layer((C, C)), per_layer((1, C)),
        per_layer((C, C)), per_layer((1, C)),
        per_layer((C, C)), per_layer((1, C)),
        per_layer((C, FF)), per_layer((1, FF)),
        per_layer((FF, C)), per_layer((1, C)),
        per_layer((6, C)),
    ]
    out_specs = [
        pl.BlockSpec((B, Tq, C), lambda l: (0, 0, 0)),
        pl.BlockSpec((1, B, Tq, Tm), lambda l: (l, 0, 0, 0)),
    ]
    out_shape = [
        jax.ShapeDtypeStruct((B, Tq, C), tgt.dtype),
        jax.ShapeDtypeStruct((L, B, Tq, Tm), jnp.float32),
    ]

    out_b, attn_w = pl.pallas_call(
        functools.partial(_decoder_kernel, nheads=nheads),
        grid=(L,),
        in_specs=in_specs,
        out_specs=out_specs,
        out_shape=out_shape,
        scratch_shapes=[pltpu.VMEM((B * Tq, C), jnp.float32)],
        compiler_params=pltpu.CompilerParams(
            # the layer axis carries state sequentially -> must be arbitrary
            dimension_semantics=("arbitrary",),
        ),
    )(
        tgt_b, qpos_b, mem_b, pos_b, params["final_ln"],
        params["sa_wqk"], params["sa_bqk"], params["sa_wv"], params["sa_bv"],
        params["sa_wo"], params["sa_bo"],
        params["ca_wq"], params["ca_bq"], params["ca_wk"], params["ca_bk"],
        params["ca_wv"], params["ca_bv"], params["ca_wo"], params["ca_bo"],
        params["w1"], params["b1"], params["w2"], params["b2"],
        params["ln"],
    )

    output = jnp.transpose(out_b, (1, 0, 2))         # (Tq, B, C)
    atten_layers = [attn_w[i] for i in range(L)]     # each (B, Tq, Tm)
    return output, atten_layers


# ----------------------------------------------------------------------------
# Deterministic parameter construction (per-layer weights stacked along dim 0).
# ----------------------------------------------------------------------------
def init_decoder_params(key, L, C, FF):
    s = 0.02
    ks = jax.random.split(key, 9)

    def rnd(k, shape):
        return s * jax.random.normal(k, shape, jnp.float32)

    ones = jnp.ones((C,), jnp.float32)
    zeros = jnp.zeros((C,), jnp.float32)
    ln_single = jnp.stack([ones, zeros, ones, zeros, ones, zeros])    # (6, C)

    return {
        # self-attention (Q and K fused into one projection; shared input)
        "sa_wqk": rnd(ks[0], (L, C, 2 * C)),
        "sa_bqk": jnp.zeros((L, 1, 2 * C), jnp.float32),
        "sa_wv": rnd(ks[1], (L, C, C)),
        "sa_bv": jnp.zeros((L, 1, C), jnp.float32),
        "sa_wo": rnd(ks[2], (L, C, C)),
        "sa_bo": jnp.zeros((L, 1, C), jnp.float32),
        # cross-attention
        "ca_wq": rnd(ks[3], (L, C, C)),
        "ca_bq": jnp.zeros((L, 1, C), jnp.float32),
        "ca_wk": rnd(ks[4], (L, C, C)),
        "ca_bk": jnp.zeros((L, 1, C), jnp.float32),
        "ca_wv": rnd(ks[5], (L, C, C)),
        "ca_bv": jnp.zeros((L, 1, C), jnp.float32),
        "ca_wo": rnd(ks[6], (L, C, C)),
        "ca_bo": jnp.zeros((L, 1, C), jnp.float32),
        # FFN
        "w1": rnd(ks[7], (L, C, FF)),
        "b1": jnp.zeros((L, 1, FF), jnp.float32),
        "w2": rnd(ks[8], (L, FF, C)),
        "b2": jnp.zeros((L, 1, C), jnp.float32),
        # per-layer layernorms packed as rows [g1, b1, g2, b2, g3, b3]
        "ln": jnp.tile(ln_single[None], (L, 1, 1)),
        # final decoder norm [g; b]
        "final_ln": jnp.stack([ones, zeros]),
    }


# ----------------------------------------------------------------------------
if __name__ == "__main__":
    Tq, Tm, B, C, H, FF, L = 8, 16, 2, 32, 4, 64, 2

    key = jax.random.PRNGKey(0)
    kp, k1, k2, k3 = jax.random.split(key, 4)

    params = init_decoder_params(kp, L, C, FF)

    tgt = jnp.zeros((Tq, B, C), jnp.float32)                 # DETR: tgt starts at zeros
    memory = jax.random.normal(k1, (Tm, B, C), jnp.float32)
    pos = jax.random.normal(k2, (Tm, B, C), jnp.float32)
    query_pos = jax.random.normal(k3, (Tq, B, C), jnp.float32)

    output, atten_layers = transformer_decoder_forward(params, tgt, memory,
                                                       pos, query_pos, H)
    output = jax.block_until_ready(output)
    atten_layers = [jax.block_until_ready(a) for a in atten_layers]

    assert output.shape == (Tq, B, C)
    assert len(atten_layers) == L
    assert all(a.shape == (B, Tq, Tm) for a in atten_layers)
    assert bool(jnp.all(jnp.isfinite(output)))
    assert all(bool(jnp.all(jnp.isfinite(a))) for a in atten_layers)
    print("KERNEL_OK")
</pallas_src>

<mosaic_0001>
module attributes {stable_mosaic.version = 11 : i64} {
  func.func @_decoder_kernel(%arg0: i32, %arg1: memref<2x8x32xf32, #tpu.memory_space<vmem>>, %arg2: memref<2x8x32xf32, #tpu.memory_space<vmem>>, %arg3: memref<2x16x32xf32, #tpu.memory_space<vmem>>, %arg4: memref<2x16x32xf32, #tpu.memory_space<vmem>>, %arg5: memref<2x32xf32, #tpu.memory_space<vmem>>, %arg6: memref<1x32x64xf32, #tpu.memory_space<vmem>>, %arg7: memref<1x1x64xf32, #tpu.memory_space<vmem>>, %arg8: memref<1x32x32xf32, #tpu.memory_space<vmem>>, %arg9: memref<1x1x32xf32, #tpu.memory_space<vmem>>, %arg10: memref<1x32x32xf32, #tpu.memory_space<vmem>>, %arg11: memref<1x1x32xf32, #tpu.memory_space<vmem>>, %arg12: memref<1x32x32xf32, #tpu.memory_space<vmem>>, %arg13: memref<1x1x32xf32, #tpu.memory_space<vmem>>, %arg14: memref<1x32x32xf32, #tpu.memory_space<vmem>>, %arg15: memref<1x1x32xf32, #tpu.memory_space<vmem>>, %arg16: memref<1x32x32xf32, #tpu.memory_space<vmem>>, %arg17: memref<1x1x32xf32, #tpu.memory_space<vmem>>, %arg18: memref<1x32x32xf32, #tpu.memory_space<vmem>>, %arg19: memref<1x1x32xf32, #tpu.memory_space<vmem>>, %arg20: memref<1x32x64xf32, #tpu.memory_space<vmem>>, %arg21: memref<1x1x64xf32, #tpu.memory_space<vmem>>, %arg22: memref<1x64x32xf32, #tpu.memory_space<vmem>>, %arg23: memref<1x1x32xf32, #tpu.memory_space<vmem>>, %arg24: memref<1x6x32xf32, #tpu.memory_space<vmem>>, %arg25: memref<2x8x32xf32, #tpu.memory_space<vmem>>, %arg26: memref<1x2x8x16xf32, #tpu.memory_space<vmem>>, %arg27: memref<16x32xf32, #tpu.memory_space<vmem>>) attributes {dimension_semantics = [#tpu.dimension_semantics<arbitrary>], iteration_bounds = array<i64: 2>, scalar_prefetch = 0 : i64, scratch_operands = 1 : i64, tpu.core_type = #tpu.core_type<tc>, window_params = [{pipeline_mode = #tpu.pipeline_mode<synchronous>, transform_indices = @transform_0, window_bounds = array<i64: 2, 8, 32>}, {pipeline_mode = #tpu.pipeline_mode<synchronous>, transform_indices = @transform_1, window_bounds = array<i64: 2, 8, 32>}, {pipeline_mode = #tpu.pipeline_mode<synchronous>, transform_indices = @transform_2, window_bounds = array<i64: 2, 16, 32>}, {pipeline_mode = #tpu.pipeline_mode<synchronous>, transform_indices = @transform_3, window_bounds = array<i64: 2, 16, 32>}, {pipeline_mode = #tpu.pipeline_mode<synchronous>, transform_indices = @transform_4, window_bounds = array<i64: 2, 32>}, {transform_indices = @transform_5, window_bounds = array<i64: 1, 32, 64>}, {transform_indices = @transform_6, window_bounds = array<i64: 1, 1, 64>}, {transform_indices = @transform_7, window_bounds = array<i64: 1, 32, 32>}, {transform_indices = @transform_8, window_bounds = array<i64: 1, 1, 32>}, {transform_indices = @transform_9, window_bounds = array<i64: 1, 32, 32>}, {transform_indices = @transform_10, window_bounds = array<i64: 1, 1, 32>}, {transform_indices = @transform_11, window_bounds = array<i64: 1, 32, 32>}, {transform_indices = @transform_12, window_bounds = array<i64: 1, 1, 32>}, {transform_indices = @transform_13, window_bounds = array<i64: 1, 32, 32>}, {transform_indices = @transform_14, window_bounds = array<i64: 1, 1, 32>}, {transform_indices = @transform_15, window_bounds = array<i64: 1, 32, 32>}, {transform_indices = @transform_16, window_bounds = array<i64: 1, 1, 32>}, {transform_indices = @transform_17, window_bounds = array<i64: 1, 32, 32>}, {transform_indices = @transform_18, window_bounds = array<i64: 1, 1, 32>}, {transform_indices = @transform_19, window_bounds = array<i64: 1, 32, 64>}, {transform_indices = @transform_20, window_bounds = array<i64: 1, 1, 64>}, {transform_indices = @transform_21, window_bounds = array<i64: 1, 64, 32>}, {transform_indices = @transform_22, window_bounds = array<i64: 1, 1, 32>}, {transform_indices = @transform_23, window_bounds = array<i64: 1, 6, 32>}, {pipeline_mode = #tpu.pipeline_mode<synchronous>, transform_indices = @transform_24, window_bounds = array<i64: 2, 8, 32>}, {transform_indices = @transform_25, window_bounds = array<i64: 1, 2, 8, 16>}]} {
    %c0_i32 = arith.constant 0 : i32
    %0 = arith.cmpi eq, %arg0, %c0_i32 : i32
    %1 = arith.extui %0 : i1 to i32
    %c0_i32_0 = arith.constant 0 : i32
    %2 = arith.cmpi ne, %1, %c0_i32_0 : i32
    scf.if %2 {
      %c0_149 = arith.constant 0 : index
      %c0_150 = arith.constant 0 : index
      %c0_151 = arith.constant 0 : index
      %339 = vector.load %arg1[%c0_149, %c0_150, %c0_151] : memref<2x8x32xf32, #tpu.memory_space<vmem>>, vector<2x8x32xf32>
      %340 = vector.shape_cast %339 : vector<2x8x32xf32> to vector<16x32xf32>
      %c0_152 = arith.constant 0 : index
      %c0_153 = arith.constant 0 : index
      %341 = vector.load %arg27[%c0_152, %c0_153] : memref<16x32xf32, #tpu.memory_space<vmem>>, vector<16x32xf32>
      tpu.vector_store %arg27[%c0_152, %c0_153], %340 {strides = array<i32>} : memref<16x32xf32, #tpu.memory_space<vmem>>, vector<16x32xf32>,
    } else {
    }
    %c0 = arith.constant 0 : index
    %c0_1 = arith.constant 0 : index
    %3 = vector.load %arg27[%c0, %c0_1] : memref<16x32xf32, #tpu.memory_space<vmem>>, vector<16x32xf32>
    %c0_2 = arith.constant 0 : index
    %c0_3 = arith.constant 0 : index
    %c0_4 = arith.constant 0 : index
    %4 = vector.load %arg2[%c0_2, %c0_3, %c0_4] : memref<2x8x32xf32, #tpu.memory_space<vmem>>, vector<2x8x32xf32>
    %5 = vector.shape_cast %4 : vector<2x8x32xf32> to vector<16x32xf32>
    %c0_5 = arith.constant 0 : index
    %c0_6 = arith.constant 0 : index
    %c0_7 = arith.constant 0 : index
    %6 = vector.load %arg3[%c0_5, %c0_6, %c0_7] : memref<2x16x32xf32, #tpu.memory_space<vmem>>, vector<2x16x32xf32>
    %7 = vector.shape_cast %6 : vector<2x16x32xf32> to vector<32x32xf32>
    %c0_8 = arith.constant 0 : index
    %c0_9 = arith.constant 0 : index
    %c0_10 = arith.constant 0 : index
    %8 = vector.load %arg4[%c0_8, %c0_9, %c0_10] : memref<2x16x32xf32, #tpu.memory_space<vmem>>, vector<2x16x32xf32>
    %9 = vector.shape_cast %8 : vector<2x16x32xf32> to vector<32x32xf32>
    %c0_11 = arith.constant 0 : index
    %c0_12 = arith.constant 0 : index
    %c0_13 = arith.constant 0 : index
    %10 = vector.load %arg24[%c0_11, %c0_12, %c0_13] : memref<1x6x32xf32, #tpu.memory_space<vmem>>, vector<1x6x32xf32>
    %11 = vector.shape_cast %10 : vector<1x6x32xf32> to vector<6x32xf32>
    %12 = arith.addf %3, %5 : vector<16x32xf32>
    %c0_14 = arith.constant 0 : index
    %c0_15 = arith.constant 0 : index
    %c0_16 = arith.constant 0 : index
    %13 = vector.load %arg6[%c0_14, %c0_15, %c0_16] : memref<1x32x64xf32, #tpu.memory_space<vmem>>, vector<1x32x64xf32>
    %14 = vector.shape_cast %13 : vector<1x32x64xf32> to vector<32x64xf32>
    %c0_17 = arith.constant 0 : index
    %c0_18 = arith.constant 0 : index
    %c0_19 = arith.constant 0 : index
    %15 = vector.load %arg7[%c0_17, %c0_18, %c0_19] : memref<1x1x64xf32, #tpu.memory_space<vmem>>, vector<1x1x64xf32>
    %16 = vector.shape_cast %15 : vector<1x1x64xf32> to vector<1x64xf32>
    %cst = arith.constant dense<0.000000e+00> : vector<16x64xf32>
    %17 = tpu.matmul %12, %14, %cst {dimension_numbers = #tpu.dot_dimension_numbers<[1], [0], [0], [1], [0, 0, 1, 1], [], []>} : vector<16x32xf32>, vector<32x64xf32>, vector<16x64xf32> -> vector<16x64xf32>
    %18 = vector.broadcast %16 : vector<1x64xf32> to vector<16x64xf32>
    %19 = arith.addf %17, %18 : vector<16x64xf32>
    %c0_20 = arith.constant 0 : index
    %c0_21 = arith.constant 0 : index
    %c0_22 = arith.constant 0 : index
    %20 = vector.load %arg8[%c0_20, %c0_21, %c0_22] : memref<1x32x32xf32, #tpu.memory_space<vmem>>, vector<1x32x32xf32>
    %21 = vector.shape_cast %20 : vector<1x32x32xf32> to vector<32x32xf32>
    %c0_23 = arith.constant 0 : index
    %c0_24 = arith.constant 0 : index
    %c0_25 = arith.constant 0 : index
    %22 = vector.load %arg9[%c0_23, %c0_24, %c0_25] : memref<1x1x32xf32, #tpu.memory_space<vmem>>, vector<1x1x32xf32>
    %23 = vector.shape_cast %22 : vector<1x1x32xf32> to vector<1x32xf32>
    %cst_26 = arith.constant dense<0.000000e+00> : vector<16x32xf32>
    %24 = tpu.matmul %3, %21, %cst_26 {dimension_numbers = #tpu.dot_dimension_numbers<[1], [0], [0], [1], [0, 0, 1, 1], [], []>} : vector<16x32xf32>, vector<32x32xf32>, vector<16x32xf32> -> vector<16x32xf32>
    %25 = vector.broadcast %23 : vector<1x32xf32> to vector<16x32xf32>
    %26 = arith.addf %24, %25 : vector<16x32xf32>
    %27 = vector.extract_strided_slice %19 {offsets = [0, 0], sizes = [16, 32], strides = [1, 1]} : vector<16x64xf32> to vector<16x32xf32>
    %28 = vector.extract_strided_slice %19 {offsets = [0, 32], sizes = [16, 32], strides = [1, 1]} : vector<16x64xf32> to vector<16x32xf32>
    %c0_27 = arith.constant 0 : index
    %c0_28 = arith.constant 0 : index
    %c0_29 = arith.constant 0 : index
    %29 = vector.load %arg10[%c0_27, %c0_28, %c0_29] : memref<1x32x32xf32, #tpu.memory_space<vmem>>, vector<1x32x32xf32>
    %30 = vector.shape_cast %29 : vector<1x32x32xf32> to vector<32x32xf32>
    %c0_30 = arith.constant 0 : index
    %c0_31 = arith.constant 0 : index
    %c0_32 = arith.constant 0 : index
    %31 = vector.load %arg11[%c0_30, %c0_31, %c0_32] : memref<1x1x32xf32, #tpu.memory_space<vmem>>, vector<1x1x32xf32>
    %32 = vector.shape_cast %31 : vector<1x1x32xf32> to vector<1x32xf32>
    %33 = vector.shape_cast %27 : vector<16x32xf32> to vector<2x8x32xf32>
    %34 = vector.shape_cast %28 : vector<16x32xf32> to vector<2x8x32xf32>
    %35 = vector.shape_cast %26 : vector<16x32xf32> to vector<2x8x32xf32>
    %cst_33 = arith.constant 0.000000e+00 : f32
    %36 = vector.broadcast %cst_33 : f32 to vector<16x32xf32>
    %37 = vector.extract_strided_slice %33 {offsets = [0, 0, 0], sizes = [2, 8, 8], strides = [1, 1, 1]} : vector<2x8x32xf32> to vector<2x8x8xf32>
    %38 = vector.extract_strided_slice %34 {offsets = [0, 0, 0], sizes = [2, 8, 8], strides = [1, 1, 1]} : vector<2x8x32xf32> to vector<2x8x8xf32>
    "tpu.trace_start"() <{level = 10 : i32, message = "bqd,bkd->bqk"}> : () -> ()
    %cst_34 = arith.constant dense<0.000000e+00> : vector<2x8x8xf32>
    %39 = tpu.matmul %37, %38, %cst_34 {dimension_numbers = #tpu.dot_dimension_numbers<[2], [2], [1], [1], [0, 0, 0, 1, 1, 1], [0], [0]>} : vector<2x8x8xf32>, vector<2x8x8xf32>, vector<2x8x8xf32> -> vector<2x8x8xf32>
    "tpu.trace_stop"() : () -> ()
    %cst_35 = arith.constant 0.353553385 : f32
    %40 = vector.broadcast %cst_35 : f32 to vector<2x8x8xf32>
    %41 = arith.mulf %39, %40 : vector<2x8x8xf32>
    %cst_36 = arith.constant dense<0xFF800000> : vector<2x8xf32>
    %42 = vector.multi_reduction <maximumf>, %41, %cst_36 [2] : vector<2x8x8xf32> to vector<2x8xf32>
    %43 = vector.shape_cast %42 : vector<2x8xf32> to vector<2x8x1xf32>
    %44 = vector.broadcast %43 : vector<2x8x1xf32> to vector<2x8x8xf32>
    %45 = arith.subf %41, %44 : vector<2x8x8xf32>
    %46 = math.exp %45 : vector<2x8x8xf32>
    %cst_37 = arith.constant dense<0.000000e+00> : vector<2x8xf32>
    %47 = vector.multi_reduction <add>, %46, %cst_37 [2] : vector<2x8x8xf32> to vector<2x8xf32>
    %48 = vector.shape_cast %47 : vector<2x8xf32> to vector<2x8x1xf32>
    %49 = tpu.reciprocal %48 {approx = true} : vector<2x8x1xf32> -> vector<2x8x1xf32>
    %50 = vector.broadcast %49 : vector<2x8x1xf32> to vector<2x8x8xf32>
    %51 = arith.mulf %46, %50 : vector<2x8x8xf32>
    %52 = vector.extract_strided_slice %35 {offsets = [0, 0, 0], sizes = [2, 8, 8], strides = [1, 1, 1]} : vector<2x8x32xf32> to vector<2x8x8xf32>
    "tpu.trace_start"() <{level = 10 : i32, message = "bqk,bkd->bqd"}> : () -> ()
    %cst_38 = arith.constant dense<0.000000e+00> : vector<2x8x8xf32>
    %53 = tpu.matmul %51, %52, %cst_38 {dimension_numbers = #tpu.dot_dimension_numbers<[2], [1], [1], [2], [0, 0, 0, 1, 1, 2], [0], [0]>} : vector<2x8x8xf32>, vector<2x8x8xf32>, vector<2x8x8xf32> -> vector<2x8x8xf32>
    "tpu.trace_stop"() : () -> ()
    %54 = vector.shape_cast %53 : vector<2x8x8xf32> to vector<16x8xf32>
    %55 = vector.extract_strided_slice %30 {offsets = [0, 0], sizes = [8, 32], strides = [1, 1]} : vector<32x32xf32> to vector<8x32xf32>
    %cst_39 = arith.constant dense<0.000000e+00> : vector<16x32xf32>
    %56 = tpu.matmul %54, %55, %cst_39 {dimension_numbers = #tpu.dot_dimension_numbers<[1], [0], [0], [1], [0, 0, 1, 1], [], []>} : vector<16x8xf32>, vector<8x32xf32>, vector<16x32xf32> -> vector<16x32xf32>
    %57 = arith.addf %36, %56 : vector<16x32xf32>
    %58 = vector.extract_strided_slice %33 {offsets = [0, 0, 8], sizes = [2, 8, 8], strides = [1, 1, 1]} : vector<2x8x32xf32> to vector<2x8x8xf32>
    %59 = vector.extract_strided_slice %34 {offsets = [0, 0, 8], sizes = [2, 8, 8], strides = [1, 1, 1]} : vector<2x8x32xf32> to vector<2x8x8xf32>
    "tpu.trace_start"() <{level = 10 : i32, message = "bqd,bkd->bqk"}> : () -> ()
    %cst_40 = arith.constant dense<0.000000e+00> : vector<2x8x8xf32>
    %60 = tpu.matmul %58, %59, %cst_40 {dimension_numbers = #tpu.dot_dimension_numbers<[2], [2], [1], [1], [0, 0, 0, 1, 1, 1], [0], [0]>} : vector<2x8x8xf32>, vector<2x8x8xf32>, vector<2x8x8xf32> -> vector<2x8x8xf32>
    "tpu.trace_stop"() : () -> ()
    %cst_41 = arith.constant 0.353553385 : f32
    %61 = vector.broadcast %cst_41 : f32 to vector<2x8x8xf32>
    %62 = arith.mulf %60, %61 : vector<2x8x8xf32>
    %cst_42 = arith.constant dense<0xFF800000> : vector<2x8xf32>
    %63 = vector.multi_reduction <maximumf>, %62, %cst_42 [2] : vector<2x8x8xf32> to vector<2x8xf32>
    %64 = vector.shape_cast %63 : vector<2x8xf32> to vector<2x8x1xf32>
    %65 = vector.broadcast %64 : vector<2x8x1xf32> to vector<2x8x8xf32>
    %66 = arith.subf %62, %65 : vector<2x8x8xf32>
    %67 = math.exp %66 : vector<2x8x8xf32>
    %cst_43 = arith.constant dense<0.000000e+00> : vector<2x8xf32>
    %68 = vector.multi_reduction <add>, %67, %cst_43 [2] : vector<2x8x8xf32> to vector<2x8xf32>
    %69 = vector.shape_cast %68 : vector<2x8xf32> to vector<2x8x1xf32>
    %70 = tpu.reciprocal %69 {approx = true} : vector<2x8x1xf32> -> vector<2x8x1xf32>
    %71 = vector.broadcast %70 : vector<2x8x1xf32> to vector<2x8x8xf32>
    %72 = arith.mulf %67, %71 : vector<2x8x8xf32>
    %73 = vector.extract_strided_slice %35 {offsets = [0, 0, 8], sizes = [2, 8, 8], strides = [1, 1, 1]} : vector<2x8x32xf32> to vector<2x8x8xf32>
    "tpu.trace_start"() <{level = 10 : i32, message = "bqk,bkd->bqd"}> : () -> ()
    %cst_44 = arith.constant dense<0.000000e+00> : vector<2x8x8xf32>
    %74 = tpu.matmul %72, %73, %cst_44 {dimension_numbers = #tpu.dot_dimension_numbers<[2], [1], [1], [2], [0, 0, 0, 1, 1, 2], [0], [0]>} : vector<2x8x8xf32>, vector<2x8x8xf32>, vector<2x8x8xf32> -> vector<2x8x8xf32>
    "tpu.trace_stop"() : () -> ()
    %75 = vector.shape_cast %74 : vector<2x8x8xf32> to vector<16x8xf32>
    %76 = vector.extract_strided_slice %30 {offsets = [8, 0], sizes = [8, 32], strides = [1, 1]} : vector<32x32xf32> to vector<8x32xf32>
    %cst_45 = arith.constant dense<0.000000e+00> : vector<16x32xf32>
    %77 = tpu.matmul %75, %76, %cst_45 {dimension_numbers = #tpu.dot_dimension_numbers<[1], [0], [0], [1], [0, 0, 1, 1], [], []>} : vector<16x8xf32>, vector<8x32xf32>, vector<16x32xf32> -> vector<16x32xf32>
    %78 = arith.addf %57, %77 : vector<16x32xf32>
    %79 = vector.extract_strided_slice %33 {offsets = [0, 0, 16], sizes = [2, 8, 8], strides = [1, 1, 1]} : vector<2x8x32xf32> to vector<2x8x8xf32>
    %80 = vector.extract_strided_slice %34 {offsets = [0, 0, 16], sizes = [2, 8, 8], strides = [1, 1, 1]} : vector<2x8x32xf32> to vector<2x8x8xf32>
    "tpu.trace_start"() <{level = 10 : i32, message = "bqd,bkd->bqk"}> : () -> ()
    %cst_46 = arith.constant dense<0.000000e+00> : vector<2x8x8xf32>
    %81 = tpu.matmul %79, %80, %cst_46 {dimension_numbers = #tpu.dot_dimension_numbers<[2], [2], [1], [1], [0, 0, 0, 1, 1, 1], [0], [0]>} : vector<2x8x8xf32>, vector<2x8x8xf32>, vector<2x8x8xf32> -> vector<2x8x8xf32>
    "tpu.trace_stop"() : () -> ()
    %cst_47 = arith.constant 0.353553385 : f32
    %82 = vector.broadcast %cst_47 : f32 to vector<2x8x8xf32>
    %83 = arith.mulf %81, %82 : vector<2x8x8xf32>
    %cst_48 = arith.constant dense<0xFF800000> : vector<2x8xf32>
    %84 = vector.multi_reduction <maximumf>, %83, %cst_48 [2] : vector<2x8x8xf32> to vector<2x8xf32>
    %85 = vector.shape_cast %84 : vector<2x8xf32> to vector<2x8x1xf32>
    %86 = vector.broadcast %85 : vector<2x8x1xf32> to vector<2x8x8xf32>
    %87 = arith.subf %83, %86 : vector<2x8x8xf32>
    %88 = math.exp %87 : vector<2x8x8xf32>
    %cst_49 = arith.constant dense<0.000000e+00> : vector<2x8xf32>
    %89 = vector.multi_reduction <add>, %88, %cst_49 [2] : vector<2x8x8xf32> to vector<2x8xf32>
    %90 = vector.shape_cast %89 : vector<2x8xf32> to vector<2x8x1xf32>
    %91 = tpu.reciprocal %90 {approx = true} : vector<2x8x1xf32> -> vector<2x8x1xf32>
    %92 = vector.broadcast %91 : vector<2x8x1xf32> to vector<2x8x8xf32>
    %93 = arith.mulf %88, %92 : vector<2x8x8xf32>
    %94 = vector.extract_strided_slice %35 {offsets = [0, 0, 16], sizes = [2, 8, 8], strides = [1, 1, 1]} : vector<2x8x32xf32> to vector<2x8x8xf32>
    "tpu.trace_start"() <{level = 10 : i32, message = "bqk,bkd->bqd"}> : () -> ()
    %cst_50 = arith.constant dense<0.000000e+00> : vector<2x8x8xf32>
    %95 = tpu.matmul %93, %94, %cst_50 {dimension_numbers = #tpu.dot_dimension_numbers<[2], [1], [1], [2], [0, 0, 0, 1, 1, 2], [0], [0]>} : vector<2x8x8xf32>, vector<2x8x8xf32>, vector<2x8x8xf32> -> vector<2x8x8xf32>
    "tpu.trace_stop"() : () -> ()
    %96 = vector.shape_cast %95 : vector<2x8x8xf32> to vector<16x8xf32>
    %97 = vector.extract_strided_slice %30 {offsets = [16, 0], sizes = [8, 32], strides = [1, 1]} : vector<32x32xf32> to vector<8x32xf32>
    %cst_51 = arith.constant dense<0.000000e+00> : vector<16x32xf32>
    %98 = tpu.matmul %96, %97, %cst_51 {dimension_numbers = #tpu.dot_dimension_numbers<[1], [0], [0], [1], [0, 0, 1, 1], [], []>} : vector<16x8xf32>, vector<8x32xf32>, vector<16x32xf32> -> vector<16x32xf32>
    %99 = arith.addf %78, %98 : vector<16x32xf32>
    %100 = vector.extract_strided_slice %33 {offsets = [0, 0, 24], sizes = [2, 8, 8], strides = [1, 1, 1]} : vector<2x8x32xf32> to vector<2x8x8xf32>
    %101 = vector.extract_strided_slice %34 {offsets = [0, 0, 24], sizes = [2, 8, 8], strides = [1, 1, 1]} : vector<2x8x32xf32> to vector<2x8x8xf32>
    "tpu.trace_start"() <{level = 10 : i32, message = "bqd,bkd->bqk"}> : () -> ()
    %cst_52 = arith.constant dense<0.000000e+00> : vector<2x8x8xf32>
    %102 = tpu.matmul %100, %101, %cst_52 {dimension_numbers = #tpu.dot_dimension_numbers<[2], [2], [1], [1], [0, 0, 0, 1, 1, 1], [0], [0]>} : vector<2x8x8xf32>, vector<2x8x8xf32>, vector<2x8x8xf32> -> vector<2x8x8xf32>
    "tpu.trace_stop"() : () -> ()
    %cst_53 = arith.constant 0.353553385 : f32
    %103 = vector.broadcast %cst_53 : f32 to vector<2x8x8xf32>
    %104 = arith.mulf %102, %103 : vector<2x8x8xf32>
    %cst_54 = arith.constant dense<0xFF800000> : vector<2x8xf32>
    %105 = vector.multi_reduction <maximumf>, %104, %cst_54 [2] : vector<2x8x8xf32> to vector<2x8xf32>
    %106 = vector.shape_cast %105 : vector<2x8xf32> to vector<2x8x1xf32>
    %107 = vector.broadcast %106 : vector<2x8x1xf32> to vector<2x8x8xf32>
    %108 = arith.subf %104, %107 : vector<2x8x8xf32>
    %109 = math.exp %108 : vector<2x8x8xf32>
    %cst_55 = arith.constant dense<0.000000e+00> : vector<2x8xf32>
    %110 = vector.multi_reduction <add>, %109, %cst_55 [2] : vector<2x8x8xf32> to vector<2x8xf32>
    %111 = vector.shape_cast %110 : vector<2x8xf32> to vector<2x8x1xf32>
    %112 = tpu.reciprocal %111 {approx = true} : vector<2x8x1xf32> -> vector<2x8x1xf32>
    %113 = vector.broadcast %112 : vector<2x8x1xf32> to vector<2x8x8xf32>
    %114 = arith.mulf %109, %113 : vector<2x8x8xf32>
    %115 = vector.extract_strided_slice %35 {offsets = [0, 0, 24], sizes = [2, 8, 8], strides = [1, 1, 1]} : vector<2x8x32xf32> to vector<2x8x8xf32>
    "tpu.trace_start"() <{level = 10 : i32, message = "bqk,bkd->bqd"}> : () -> ()
    %cst_56 = arith.constant dense<0.000000e+00> : vector<2x8x8xf32>
    %116 = tpu.matmul %114, %115, %cst_56 {dimension_numbers = #tpu.dot_dimension_numbers<[2], [1], [1], [2], [0, 0, 0, 1, 1, 2], [0], [0]>} : vector<2x8x8xf32>, vector<2x8x8xf32>, vector<2x8x8xf32> -> vector<2x8x8xf32>
    "tpu.trace_stop"() : () -> ()
    %117 = vector.shape_cast %116 : vector<2x8x8xf32> to vector<16x8xf32>
    %118 = vector.extract_strided_slice %30 {offsets = [24, 0], sizes = [8, 32], strides = [1, 1]} : vector<32x32xf32> to vector<8x32xf32>
    %cst_57 = arith.constant dense<0.000000e+00> : vector<16x32xf32>
    %119 = tpu.matmul %117, %118, %cst_57 {dimension_numbers = #tpu.dot_dimension_numbers<[1], [0], [0], [1], [0, 0, 1, 1], [], []>} : vector<16x8xf32>, vector<8x32xf32>, vector<16x32xf32> -> vector<16x32xf32>
    %120 = arith.addf %99, %119 : vector<16x32xf32>
    %121 = vector.broadcast %32 : vector<1x32xf32> to vector<16x32xf32>
    %122 = arith.addf %120, %121 : vector<16x32xf32>
    %123 = arith.addf %3, %122 : vector<16x32xf32>
    %124 = vector.extract_strided_slice %11 {offsets = [0, 0], sizes = [1, 32], strides = [1, 1]} : vector<6x32xf32> to vector<1x32xf32>
    %125 = vector.extract_strided_slice %11 {offsets = [1, 0], sizes = [1, 32], strides = [1, 1]} : vector<6x32xf32> to vector<1x32xf32>
    %cst_58 = arith.constant dense<0.000000e+00> : vector<16xf32>
    %126 = vector.multi_reduction <add>, %123, %cst_58 [1] : vector<16x32xf32> to vector<16xf32>
    %127 = vector.shape_cast %126 : vector<16xf32> to vector<16x1xf32>
    %cst_59 = arith.constant 3.200000e+01 : f32
    %128 = vector.broadcast %cst_59 : f32 to vector<16x1xf32>
    %129 = arith.divf %127, %128 : vector<16x1xf32>
    %130 = vector.broadcast %129 : vector<16x1xf32> to vector<16x32xf32>
    %131 = arith.subf %123, %130 : vector<16x32xf32>
    %132 = arith.mulf %131, %131 : vector<16x32xf32>
    %cst_60 = arith.constant dense<0.000000e+00> : vector<16xf32>
    %133 = vector.multi_reduction <add>, %132, %cst_60 [1] : vector<16x32xf32> to vector<16xf32>
    %134 = vector.shape_cast %133 : vector<16xf32> to vector<16x1xf32>
    %cst_61 = arith.constant 3.200000e+01 : f32
    %135 = vector.broadcast %cst_61 : f32 to vector<16x1xf32>
    %136 = arith.divf %134, %135 : vector<16x1xf32>
    %cst_62 = arith.constant 9.99999974E-6 : f32
    %137 = vector.broadcast %cst_62 : f32 to vector<16x1xf32>
    %138 = arith.addf %136, %137 : vector<16x1xf32>
    %139 = math.rsqrt %138 : vector<16x1xf32>
    %140 = vector.broadcast %139 : vector<16x1xf32> to vector<16x32xf32>
    %141 = arith.mulf %131, %140 : vector<16x32xf32>
    %142 = vector.broadcast %124 : vector<1x32xf32> to vector<16x32xf32>
    %143 = arith.mulf %141, %142 : vector<16x32xf32>
    %144 = vector.broadcast %125 : vector<1x32xf32> to vector<16x32xf32>
    %145 = arith.addf %143, %144 : vector<16x32xf32>
    %146 = arith.addf %145, %5 : vector<16x32xf32>
    %c0_63 = arith.constant 0 : index
    %c0_64 = arith.constant 0 : index
    %c0_65 = arith.constant 0 : index
    %147 = vector.load %arg12[%c0_63, %c0_64, %c0_65] : memref<1x32x32xf32, #tpu.memory_space<vmem>>, vector<1x32x32xf32>
    %148 = vector.shape_cast %147 : vector<1x32x32xf32> to vector<32x32xf32>
    %c0_66 = arith.constant 0 : index
    %c0_67 = arith.constant 0 : index
    %c0_68 = arith.constant 0 : index
    %149 = vector.load %arg13[%c0_66, %c0_67, %c0_68] : memref<1x1x32xf32, #tpu.memory_space<vmem>>, vector<1x1x32xf32>
    %150 = vector.shape_cast %149 : vector<1x1x32xf32> to vector<1x32xf32>
    %cst_69 = arith.constant dense<0.000000e+00> : vector<16x32xf32>
    %151 = tpu.matmul %146, %148, %cst_69 {dimension_numbers = #tpu.dot_dimension_numbers<[1], [0], [0], [1], [0, 0, 1, 1], [], []>} : vector<16x32xf32>, vector<32x32xf32>, vector<16x32xf32> -> vector<16x32xf32>
    %152 = vector.broadcast %150 : vector<1x32xf32> to vector<16x32xf32>
    %153 = arith.addf %151, %152 : vector<16x32xf32>
    %154 = arith.addf %7, %9 : vector<32x32xf32>
    %c0_70 = arith.constant 0 : index
    %c0_71 = arith.constant 0 : index
    %c0_72 = arith.constant 0 : index
    %155 = vector.load %arg14[%c0_70, %c0_71, %c0_72] : memref<1x32x32xf32, #tpu.memory_space<vmem>>, vector<1x32x32xf32>
    %156 = vector.shape_cast %155 : vector<1x32x32xf32> to vector<32x32xf32>
    %c0_73 = arith.constant 0 : index
    %c0_74 = arith.constant 0 : index
    %c0_75 = arith.constant 0 : index
    %157 = vector.load %arg15[%c0_73, %c0_74, %c0_75] : memref<1x1x32xf32, #tpu.memory_space<vmem>>, vector<1x1x32xf32>
    %158 = vector.shape_cast %157 : vector<1x1x32xf32> to vector<1x32xf32>
    %cst_76 = arith.constant dense<0.000000e+00> : vector<32x32xf32>
    %159 = tpu.matmul %154, %156, %cst_76 {dimension_numbers = #tpu.dot_dimension_numbers<[1], [0], [0], [1], [0, 0, 1, 1], [], []>} : vector<32x32xf32>, vector<32x32xf32>, vector<32x32xf32> -> vector<32x32xf32>
    %160 = vector.broadcast %158 : vector<1x32xf32> to vector<32x32xf32>
    %161 = arith.addf %159, %160 : vector<32x32xf32>
    %c0_77 = arith.constant 0 : index
    %c0_78 = arith.constant 0 : index
    %c0_79 = arith.constant 0 : index
    %162 = vector.load %arg16[%c0_77, %c0_78, %c0_79] : memref<1x32x32xf32, #tpu.memory_space<vmem>>, vector<1x32x32xf32>
    %163 = vector.shape_cast %162 : vector<1x32x32xf32> to vector<32x32xf32>
    %c0_80 = arith.constant 0 : index
    %c0_81 = arith.constant 0 : index
    %c0_82 = arith.constant 0 : index
    %164 = vector.load %arg17[%c0_80, %c0_81, %c0_82] : memref<1x1x32xf32, #tpu.memory_space<vmem>>, vector<1x1x32xf32>
    %165 = vector.shape_cast %164 : vector<1x1x32xf32> to vector<1x32xf32>
    %cst_83 = arith.constant dense<0.000000e+00> : vector<32x32xf32>
    %166 = tpu.matmul %7, %163, %cst_83 {dimension_numbers = #tpu.dot_dimension_numbers<[1], [0], [0], [1], [0, 0, 1, 1], [], []>} : vector<32x32xf32>, vector<32x32xf32>, vector<32x32xf32> -> vector<32x32xf32>
    %167 = vector.broadcast %165 : vector<1x32xf32> to vector<32x32xf32>
    %168 = arith.addf %166, %167 : vector<32x32xf32>
    %c0_84 = arith.constant 0 : index
    %c0_85 = arith.constant 0 : index
    %c0_86 = arith.constant 0 : index
    %169 = vector.load %arg18[%c0_84, %c0_85, %c0_86] : memref<1x32x32xf32, #tpu.memory_space<vmem>>, vector<1x32x32xf32>
    %170 = vector.shape_cast %169 : vector<1x32x32xf32> to vector<32x32xf32>
    %c0_87 = arith.constant 0 : index
    %c0_88 = arith.constant 0 : index
    %c0_89 = arith.constant 0 : index
    %171 = vector.load %arg19[%c0_87, %c0_88, %c0_89] : memref<1x1x32xf32, #tpu.memory_space<vmem>>, vector<1x1x32xf32>
    %172 = vector.shape_cast %171 : vector<1x1x32xf32> to vector<1x32xf32>
    %173 = vector.shape_cast %153 : vector<16x32xf32> to vector<2x8x32xf32>
    %174 = vector.shape_cast %161 : vector<32x32xf32> to vector<2x16x32xf32>
    %175 = vector.shape_cast %168 : vector<32x32xf32> to vector<2x16x32xf32>
    %cst_90 = arith.constant 0.000000e+00 : f32
    %176 = vector.broadcast %cst_90 : f32 to vector<16x32xf32>
    %cst_91 = arith.constant 0.000000e+00 : f32
    %177 = vector.broadcast %cst_91 : f32 to vector<2x8x16xf32>
    %178 = vector.extract_strided_slice %173 {offsets = [0, 0, 0], sizes = [2, 8, 8], strides = [1, 1, 1]} : vector<2x8x32xf32> to vector<2x8x8xf32>
    %179 = vector.extract_strided_slice %174 {offsets = [0, 0, 0], sizes = [2, 16, 8], strides = [1, 1, 1]} : vector<2x16x32xf32> to vector<2x16x8xf32>
    "tpu.trace_start"() <{level = 10 : i32, message = "bqd,bkd->bqk"}> : () -> ()
    %cst_92 = arith.constant dense<0.000000e+00> : vector<2x8x16xf32>
    %180 = tpu.matmul %178, %179, %cst_92 {dimension_numbers = #tpu.dot_dimension_numbers<[2], [2], [1], [1], [0, 0, 0, 1, 1, 1], [0], [0]>} : vector<2x8x8xf32>, vector<2x16x8xf32>, vector<2x8x16xf32> -> vector<2x8x16xf32>
    "tpu.trace_stop"() : () -> ()
    %cst_93 = arith.constant 0.353553385 : f32
    %181 = vector.broadcast %cst_93 : f32 to vector<2x8x16xf32>
    %182 = arith.mulf %180, %181 : vector<2x8x16xf32>
    %cst_94 = arith.constant dense<0xFF800000> : vector<2x8xf32>
    %183 = vector.multi_reduction <maximumf>, %182, %cst_94 [2] : vector<2x8x16xf32> to vector<2x8xf32>
    %184 = vector.shape_cast %183 : vector<2x8xf32> to vector<2x8x1xf32>
    %185 = vector.broadcast %184 : vector<2x8x1xf32> to vector<2x8x16xf32>
    %186 = arith.subf %182, %185 : vector<2x8x16xf32>
    %187 = math.exp %186 : vector<2x8x16xf32>
    %cst_95 = arith.constant dense<0.000000e+00> : vector<2x8xf32>
    %188 = vector.multi_reduction <add>, %187, %cst_95 [2] : vector<2x8x16xf32> to vector<2x8xf32>
    %189 = vector.shape_cast %188 : vector<2x8xf32> to vector<2x8x1xf32>
    %190 = tpu.reciprocal %189 {approx = true} : vector<2x8x1xf32> -> vector<2x8x1xf32>
    %191 = vector.broadcast %190 : vector<2x8x1xf32> to vector<2x8x16xf32>
    %192 = arith.mulf %187, %191 : vector<2x8x16xf32>
    %193 = vector.extract_strided_slice %175 {offsets = [0, 0, 0], sizes = [2, 16, 8], strides = [1, 1, 1]} : vector<2x16x32xf32> to vector<2x16x8xf32>
    "tpu.trace_start"() <{level = 10 : i32, message = "bqk,bkd->bqd"}> : () -> ()
    %cst_96 = arith.constant dense<0.000000e+00> : vector<2x8x8xf32>
    %194 = tpu.matmul %192, %193, %cst_96 {dimension_numbers = #tpu.dot_dimension_numbers<[2], [1], [1], [2], [0, 0, 0, 1, 1, 2], [0], [0]>} : vector<2x8x16xf32>, vector<2x16x8xf32>, vector<2x8x8xf32> -> vector<2x8x8xf32>
    "tpu.trace_stop"() : () -> ()
    %195 = vector.shape_cast %194 : vector<2x8x8xf32> to vector<16x8xf32>
    %196 = vector.extract_strided_slice %170 {offsets = [0, 0], sizes = [8, 32], strides = [1, 1]} : vector<32x32xf32> to vector<8x32xf32>
    %cst_97 = arith.constant dense<0.000000e+00> : vector<16x32xf32>
    %197 = tpu.matmul %195, %196, %cst_97 {dimension_numbers = #tpu.dot_dimension_numbers<[1], [0], [0], [1], [0, 0, 1, 1], [], []>} : vector<16x8xf32>, vector<8x32xf32>, vector<16x32xf32> -> vector<16x32xf32>
    %198 = arith.addf %176, %197 : vector<16x32xf32>
    %199 = arith.addf %177, %192 : vector<2x8x16xf32>
    %200 = vector.extract_strided_slice %173 {offsets = [0, 0, 8], sizes = [2, 8, 8], strides = [1, 1, 1]} : vector<2x8x32xf32> to vector<2x8x8xf32>
    %201 = vector.extract_strided_slice %174 {offsets = [0, 0, 8], sizes = [2, 16, 8], strides = [1, 1, 1]} : vector<2x16x32xf32> to vector<2x16x8xf32>
    "tpu.trace_start"() <{level = 10 : i32, message = "bqd,bkd->bqk"}> : () -> ()
    %cst_98 = arith.constant dense<0.000000e+00> : vector<2x8x16xf32>
    %202 = tpu.matmul %200, %201, %cst_98 {dimension_numbers = #tpu.dot_dimension_numbers<[2], [2], [1], [1], [0, 0, 0, 1, 1, 1], [0], [0]>} : vector<2x8x8xf32>, vector<2x16x8xf32>, vector<2x8x16xf32> -> vector<2x8x16xf32>
    "tpu.trace_stop"() : () -> ()
    %cst_99 = arith.constant 0.353553385 : f32
    %203 = vector.broadcast %cst_99 : f32 to vector<2x8x16xf32>
    %204 = arith.mulf %202, %203 : vector<2x8x16xf32>
    %cst_100 = arith.constant dense<0xFF800000> : vector<2x8xf32>
    %205 = vector.multi_reduction <maximumf>, %204, %cst_100 [2] : vector<2x8x16xf32> to vector<2x8xf32>
    %206 = vector.shape_cast %205 : vector<2x8xf32> to vector<2x8x1xf32>
    %207 = vector.broadcast %206 : vector<2x8x1xf32> to vector<2x8x16xf32>
    %208 = arith.subf %204, %207 : vector<2x8x16xf32>
    %209 = math.exp %208 : vector<2x8x16xf32>
    %cst_101 = arith.constant dense<0.000000e+00> : vector<2x8xf32>
    %210 = vector.multi_reduction <add>, %209, %cst_101 [2] : vector<2x8x16xf32> to vector<2x8xf32>
    %211 = vector.shape_cast %210 : vector<2x8xf32> to vector<2x8x1xf32>
    %212 = tpu.reciprocal %211 {approx = true} : vector<2x8x1xf32> -> vector<2x8x1xf32>
    %213 = vector.broadcast %212 : vector<2x8x1xf32> to vector<2x8x16xf32>
    %214 = arith.mulf %209, %213 : vector<2x8x16xf32>
    %215 = vector.extract_strided_slice %175 {offsets = [0, 0, 8], sizes = [2, 16, 8], strides = [1, 1, 1]} : vector<2x16x32xf32> to vector<2x16x8xf32>
    "tpu.trace_start"() <{level = 10 : i32, message = "bqk,bkd->bqd"}> : () -> ()
    %cst_102 = arith.constant dense<0.000000e+00> : vector<2x8x8xf32>
    %216 = tpu.matmul %214, %215, %cst_102 {dimension_numbers = #tpu.dot_dimension_numbers<[2], [1], [1], [2], [0, 0, 0, 1, 1, 2], [0], [0]>} : vector<2x8x16xf32>, vector<2x16x8xf32>, vector<2x8x8xf32> -> vector<2x8x8xf32>
    "tpu.trace_stop"() : () -> ()
    %217 = vector.shape_cast %216 : vector<2x8x8xf32> to vector<16x8xf32>
    %218 = vector.extract_strided_slice %170 {offsets = [8, 0], sizes = [8, 32], strides = [1, 1]} : vector<32x32xf32> to vector<8x32xf32>
    %cst_103 = arith.constant dense<0.000000e+00> : vector<16x32xf32>
    %219 = tpu.matmul %217, %218, %cst_103 {dimension_numbers = #tpu.dot_dimension_numbers<[1], [0], [0], [1], [0, 0, 1, 1], [], []>} : vector<16x8xf32>, vector<8x32xf32>, vector<16x32xf32> -> vector<16x32xf32>
    %220 = arith.addf %198, %219 : vector<16x32xf32>
    %221 = arith.addf %199, %214 : vector<2x8x16xf32>
    %222 = vector.extract_strided_slice %173 {offsets = [0, 0, 16], sizes = [2, 8, 8], strides = [1, 1, 1]} : vector<2x8x32xf32> to vector<2x8x8xf32>
    %223 = vector.extract_strided_slice %174 {offsets = [0, 0, 16], sizes = [2, 16, 8], strides = [1, 1, 1]} : vector<2x16x32xf32> to vector<2x16x8xf32>
    "tpu.trace_start"() <{level = 10 : i32, message = "bqd,bkd->bqk"}> : () -> ()
    %cst_104 = arith.constant dense<0.000000e+00> : vector<2x8x16xf32>
    %224 = tpu.matmul %222, %223, %cst_104 {dimension_numbers = #tpu.dot_dimension_numbers<[2], [2], [1], [1], [0, 0, 0, 1, 1, 1], [0], [0]>} : vector<2x8x8xf32>, vector<2x16x8xf32>, vector<2x8x16xf32> -> vector<2x8x16xf32>
    "tpu.trace_stop"() : () -> ()
    %cst_105 = arith.constant 0.353553385 : f32
    %225 = vector.broadcast %cst_105 : f32 to vector<2x8x16xf32>
    %226 = arith.mulf %224, %225 : vector<2x8x16xf32>
    %cst_106 = arith.constant dense<0xFF800000> : vector<2x8xf32>
    %227 = vector.multi_reduction <maximumf>, %226, %cst_106 [2] : vector<2x8x16xf32> to vector<2x8xf32>
    %228 = vector.shape_cast %227 : vector<2x8xf32> to vector<2x8x1xf32>
    %229 = vector.broadcast %228 : vector<2x8x1xf32> to vector<2x8x16xf32>
    %230 = arith.subf %226, %229 : vector<2x8x16xf32>
    %231 = math.exp %230 : vector<2x8x16xf32>
    %cst_107 = arith.constant dense<0.000000e+00> : vector<2x8xf32>
    %232 = vector.multi_reduction <add>, %231, %cst_107 [2] : vector<2x8x16xf32> to vector<2x8xf32>
    %233 = vector.shape_cast %232 : vector<2x8xf32> to vector<2x8x1xf32>
    %234 = tpu.reciprocal %233 {approx = true} : vector<2x8x1xf32> -> vector<2x8x1xf32>
    %235 = vector.broadcast %234 : vector<2x8x1xf32> to vector<2x8x16xf32>
    %236 = arith.mulf %231, %235 : vector<2x8x16xf32>
    %237 = vector.extract_strided_slice %175 {offsets = [0, 0, 16], sizes = [2, 16, 8], strides = [1, 1, 1]} : vector<2x16x32xf32> to vector<2x16x8xf32>
    "tpu.trace_start"() <{level = 10 : i32, message = "bqk,bkd->bqd"}> : () -> ()
    %cst_108 = arith.constant dense<0.000000e+00> : vector<2x8x8xf32>
    %238 = tpu.matmul %236, %237, %cst_108 {dimension_numbers = #tpu.dot_dimension_numbers<[2], [1], [1], [2], [0, 0, 0, 1, 1, 2], [0], [0]>} : vector<2x8x16xf32>, vector<2x16x8xf32>, vector<2x8x8xf32> -> vector<2x8x8xf32>
    "tpu.trace_stop"() : () -> ()
    %239 = vector.shape_cast %238 : vector<2x8x8xf32> to vector<16x8xf32>
    %240 = vector.extract_strided_slice %170 {offsets = [16, 0], sizes = [8, 32], strides = [1, 1]} : vector<32x32xf32> to vector<8x32xf32>
    %cst_109 = arith.constant dense<0.000000e+00> : vector<16x32xf32>
    %241 = tpu.matmul %239, %240, %cst_109 {dimension_numbers = #tpu.dot_dimension_numbers<[1], [0], [0], [1], [0, 0, 1, 1], [], []>} : vector<16x8xf32>, vector<8x32xf32>, vector<16x32xf32> -> vector<16x32xf32>
    %242 = arith.addf %220, %241 : vector<16x32xf32>
    %243 = arith.addf %221, %236 : vector<2x8x16xf32>
    %244 = vector.extract_strided_slice %173 {offsets = [0, 0, 24], sizes = [2, 8, 8], strides = [1, 1, 1]} : vector<2x8x32xf32> to vector<2x8x8xf32>
    %245 = vector.extract_strided_slice %174 {offsets = [0, 0, 24], sizes = [2, 16, 8], strides = [1, 1, 1]} : vector<2x16x32xf32> to vector<2x16x8xf32>
    "tpu.trace_start"() <{level = 10 : i32, message = "bqd,bkd->bqk"}> : () -> ()
    %cst_110 = arith.constant dense<0.000000e+00> : vector<2x8x16xf32>
    %246 = tpu.matmul %244, %245, %cst_110 {dimension_numbers = #tpu.dot_dimension_numbers<[2], [2], [1], [1], [0, 0, 0, 1, 1, 1], [0], [0]>} : vector<2x8x8xf32>, vector<2x16x8xf32>, vector<2x8x16xf32> -> vector<2x8x16xf32>
    "tpu.trace_stop"() : () -> ()
    %cst_111 = arith.constant 0.353553385 : f32
    %247 = vector.broadcast %cst_111 : f32 to vector<2x8x16xf32>
    %248 = arith.mulf %246, %247 : vector<2x8x16xf32>
    %cst_112 = arith.constant dense<0xFF800000> : vector<2x8xf32>
    %249 = vector.multi_reduction <maximumf>, %248, %cst_112 [2] : vector<2x8x16xf32> to vector<2x8xf32>
    %250 = vector.shape_cast %249 : vector<2x8xf32> to vector<2x8x1xf32>
    %251 = vector.broadcast %250 : vector<2x8x1xf32> to vector<2x8x16xf32>
    %252 = arith.subf %248, %251 : vector<2x8x16xf32>
    %253 = math.exp %252 : vector<2x8x16xf32>
    %cst_113 = arith.constant dense<0.000000e+00> : vector<2x8xf32>
    %254 = vector.multi_reduction <add>, %253, %cst_113 [2] : vector<2x8x16xf32> to vector<2x8xf32>
    %255 = vector.shape_cast %254 : vector<2x8xf32> to vector<2x8x1xf32>
    %256 = tpu.reciprocal %255 {approx = true} : vector<2x8x1xf32> -> vector<2x8x1xf32>
    %257 = vector.broadcast %256 : vector<2x8x1xf32> to vector<2x8x16xf32>
    %258 = arith.mulf %253, %257 : vector<2x8x16xf32>
    %259 = vector.extract_strided_slice %175 {offsets = [0, 0, 24], sizes = [2, 16, 8], strides = [1, 1, 1]} : vector<2x16x32xf32> to vector<2x16x8xf32>
    "tpu.trace_start"() <{level = 10 : i32, message = "bqk,bkd->bqd"}> : () -> ()
    %cst_114 = arith.constant dense<0.000000e+00> : vector<2x8x8xf32>
    %260 = tpu.matmul %258, %259, %cst_114 {dimension_numbers = #tpu.dot_dimension_numbers<[2], [1], [1], [2], [0, 0, 0, 1, 1, 2], [0], [0]>} : vector<2x8x16xf32>, vector<2x16x8xf32>, vector<2x8x8xf32> -> vector<2x8x8xf32>
    "tpu.trace_stop"() : () -> ()
    %261 = vector.shape_cast %260 : vector<2x8x8xf32> to vector<16x8xf32>
    %262 = vector.extract_strided_slice %170 {offsets = [24, 0], sizes = [8, 32], strides = [1, 1]} : vector<32x32xf32> to vector<8x32xf32>
    %cst_115 = arith.constant dense<0.000000e+00> : vector<16x32xf32>
    %263 = tpu.matmul %261, %262, %cst_115 {dimension_numbers = #tpu.dot_dimension_numbers<[1], [0], [0], [1], [0, 0, 1, 1], [], []>} : vector<16x8xf32>, vector<8x32xf32>, vector<16x32xf32> -> vector<16x32xf32>
    %264 = arith.addf %242, %263 : vector<16x32xf32>
    %265 = arith.addf %243, %258 : vector<2x8x16xf32>
    %266 = vector.broadcast %172 : vector<1x32xf32> to vector<16x32xf32>
    %267 = arith.addf %264, %266 : vector<16x32xf32>
    %cst_116 = arith.constant 2.500000e-01 : f32
    %268 = vector.broadcast %cst_116 : f32 to vector<2x8x16xf32>
    %269 = arith.mulf %265, %268 : vector<2x8x16xf32>
    %c0_117 = arith.constant 0 : index
    %c0_118 = arith.constant 0 : index
    %c0_119 = arith.constant 0 : index
    %c0_120 = arith.constant 0 : index
    %270 = vector.load %arg26[%c0_117, %c0_118, %c0_119, %c0_120] : memref<1x2x8x16xf32, #tpu.memory_space<vmem>>, vector<1x2x8x16xf32>
    %271 = vector.shape_cast %270 : vector<1x2x8x16xf32> to vector<2x8x16xf32>
    %272 = vector.shape_cast %269 : vector<2x8x16xf32> to vector<1x2x8x16xf32>
    tpu.vector_store %arg26[%c0_117, %c0_118, %c0_119, %c0_120], %272 {strides = array<i32>} : memref<1x2x8x16xf32, #tpu.memory_space<vmem>>, vector<1x2x8x16xf32>,
    %273 = arith.addf %145, %267 : vector<16x32xf32>
    %274 = vector.extract_strided_slice %11 {offsets = [2, 0], sizes = [1, 32], strides = [1, 1]} : vector<6x32xf32> to vector<1x32xf32>
    %275 = vector.extract_strided_slice %11 {offsets = [3, 0], sizes = [1, 32], strides = [1, 1]} : vector<6x32xf32> to vector<1x32xf32>
    %cst_121 = arith.constant dense<0.000000e+00> : vector<16xf32>
    %276 = vector.multi_reduction <add>, %273, %cst_121 [1] : vector<16x32xf32> to vector<16xf32>
    %277 = vector.shape_cast %276 : vector<16xf32> to vector<16x1xf32>
    %cst_122 = arith.constant 3.200000e+01 : f32
    %278 = vector.broadcast %cst_122 : f32 to vector<16x1xf32>
    %279 = arith.divf %277, %278 : vector<16x1xf32>
    %280 = vector.broadcast %279 : vector<16x1xf32> to vector<16x32xf32>
    %281 = arith.subf %273, %280 : vector<16x32xf32>
    %282 = arith.mulf %281, %281 : vector<16x32xf32>
    %cst_123 = arith.constant dense<0.000000e+00> : vector<16xf32>
    %283 = vector.multi_reduction <add>, %282, %cst_123 [1] : vector<16x32xf32> to vector<16xf32>
    %284 = vector.shape_cast %283 : vector<16xf32> to vector<16x1xf32>
    %cst_124 = arith.constant 3.200000e+01 : f32
    %285 = vector.broadcast %cst_124 : f32 to vector<16x1xf32>
    %286 = arith.divf %284, %285 : vector<16x1xf32>
    %cst_125 = arith.constant 9.99999974E-6 : f32
    %287 = vector.broadcast %cst_125 : f32 to vector<16x1xf32>
    %288 = arith.addf %286, %287 : vector<16x1xf32>
    %289 = math.rsqrt %288 : vector<16x1xf32>
    %290 = vector.broadcast %289 : vector<16x1xf32> to vector<16x32xf32>
    %291 = arith.mulf %281, %290 : vector<16x32xf32>
    %292 = vector.broadcast %274 : vector<1x32xf32> to vector<16x32xf32>
    %293 = arith.mulf %291, %292 : vector<16x32xf32>
    %294 = vector.broadcast %275 : vector<1x32xf32> to vector<16x32xf32>
    %295 = arith.addf %293, %294 : vector<16x32xf32>
    %c0_126 = arith.constant 0 : index
    %c0_127 = arith.constant 0 : index
    %c0_128 = arith.constant 0 : index
    %296 = vector.load %arg20[%c0_126, %c0_127, %c0_128] : memref<1x32x64xf32, #tpu.memory_space<vmem>>, vector<1x32x64xf32>
    %297 = vector.shape_cast %296 : vector<1x32x64xf32> to vector<32x64xf32>
    %c0_129 = arith.constant 0 : index
    %c0_130 = arith.constant 0 : index
    %c0_131 = arith.constant 0 : index
    %298 = vector.load %arg21[%c0_129, %c0_130, %c0_131] : memref<1x1x64xf32, #tpu.memory_space<vmem>>, vector<1x1x64xf32>
    %299 = vector.shape_cast %298 : vector<1x1x64xf32> to vector<1x64xf32>
    %cst_132 = arith.constant dense<0.000000e+00> : vector<16x64xf32>
    %300 = tpu.matmul %295, %297, %cst_132 {dimension_numbers = #tpu.dot_dimension_numbers<[1], [0], [0], [1], [0, 0, 1, 1], [], []>} : vector<16x32xf32>, vector<32x64xf32>, vector<16x64xf32> -> vector<16x64xf32>
    %301 = vector.broadcast %299 : vector<1x64xf32> to vector<16x64xf32>
    %302 = arith.addf %300, %301 : vector<16x64xf32>
    %cst_133 = arith.constant 0.000000e+00 : f32
    %303 = vector.broadcast %cst_133 : f32 to vector<16x64xf32>
    %304 = arith.maximumf %302, %303 : vector<16x64xf32>
    %c0_134 = arith.constant 0 : index
    %c0_135 = arith.constant 0 : index
    %c0_136 = arith.constant 0 : index
    %305 = vector.load %arg22[%c0_134, %c0_135, %c0_136] : memref<1x64x32xf32, #tpu.memory_space<vmem>>, vector<1x64x32xf32>
    %306 = vector.shape_cast %305 : vector<1x64x32xf32> to vector<64x32xf32>
    %c0_137 = arith.constant 0 : index
    %c0_138 = arith.constant 0 : index
    %c0_139 = arith.constant 0 : index
    %307 = vector.load %arg23[%c0_137, %c0_138, %c0_139] : memref<1x1x32xf32, #tpu.memory_space<vmem>>, vector<1x1x32xf32>
    %308 = vector.shape_cast %307 : vector<1x1x32xf32> to vector<1x32xf32>
    %cst_140 = arith.constant dense<0.000000e+00> : vector<16x32xf32>
    %309 = tpu.matmul %304, %306, %cst_140 {dimension_numbers = #tpu.dot_dimension_numbers<[1], [0], [0], [1], [0, 0, 1, 1], [], []>} : vector<16x64xf32>, vector<64x32xf32>, vector<16x32xf32> -> vector<16x32xf32>
    %310 = vector.broadcast %308 : vector<1x32xf32> to vector<16x32xf32>
    %311 = arith.addf %309, %310 : vector<16x32xf32>
    %312 = arith.addf %295, %311 : vector<16x32xf32>
    %313 = vector.extract_strided_slice %11 {offsets = [4, 0], sizes = [1, 32], strides = [1, 1]} : vector<6x32xf32> to vector<1x32xf32>
    %314 = vector.extract_strided_slice %11 {offsets = [5, 0], sizes = [1, 32], strides = [1, 1]} : vector<6x32xf32> to vector<1x32xf32>
    %cst_141 = arith.constant dense<0.000000e+00> : vector<16xf32>
    %315 = vector.multi_reduction <add>, %312, %cst_141 [1] : vector<16x32xf32> to vector<16xf32>
    %316 = vector.shape_cast %315 : vector<16xf32> to vector<16x1xf32>
    %cst_142 = arith.constant 3.200000e+01 : f32
    %317 = vector.broadcast %cst_142 : f32 to vector<16x1xf32>
    %318 = arith.divf %316, %317 : vector<16x1xf32>
    %319 = vector.broadcast %318 : vector<16x1xf32> to vector<16x32xf32>
    %320 = arith.subf %312, %319 : vector<16x32xf32>
    %321 = arith.mulf %320, %320 : vector<16x32xf32>
    %cst_143 = arith.constant dense<0.000000e+00> : vector<16xf32>
    %322 = vector.multi_reduction <add>, %321, %cst_143 [1] : vector<16x32xf32> to vector<16xf32>
    %323 = vector.shape_cast %322 : vector<16xf32> to vector<16x1xf32>
    %cst_144 = arith.constant 3.200000e+01 : f32
    %324 = vector.broadcast %cst_144 : f32 to vector<16x1xf32>
    %325 = arith.divf %323, %324 : vector<16x1xf32>
    %cst_145 = arith.constant 9.99999974E-6 : f32
    %326 = vector.broadcast %cst_145 : f32 to vector<16x1xf32>
    %327 = arith.addf %325, %326 : vector<16x1xf32>
    %328 = math.rsqrt %327 : vector<16x1xf32>
    %329 = vector.broadcast %328 : vector<16x1xf32> to vector<16x32xf32>
    %330 = arith.mulf %320, %329 : vector<16x32xf32>
    %331 = vector.broadcast %313 : vector<1x32xf32> to vector<16x32xf32>
    %332 = arith.mulf %330, %331 : vector<16x32xf32>
    %333 = vector.broadcast %314 : vector<1x32xf32> to vector<16x32xf32>
    %334 = arith.addf %332, %333 : vector<16x32xf32>
    %c0_146 = arith.constant 0 : index
    %c0_147 = arith.constant 0 : index
    %335 = vector.load %arg27[%c0_146, %c0_147] : memref<16x32xf32, #tpu.memory_space<vmem>>, vector<16x32xf32>
    tpu.vector_store %arg27[%c0_146, %c0_147], %334 {strides = array<i32>} : memref<16x32xf32, #tpu.memory_space<vmem>>, vector<16x32xf32>,
    %c1_i32 = arith.constant 1 : i32
    %336 = arith.cmpi eq, %arg0, %c1_i32 : i32
    %337 = arith.extui %336 : i1 to i32
    %c0_i32_148 = arith.constant 0 : i32
    %338 = arith.cmpi ne, %337, %c0_i32_148 : i32
    scf.if %338 {
      %c0_149 = arith.constant 0 : index
      %c0_150 = arith.constant 0 : index
      %339 = vector.load %arg5[%c0_149, %c0_150] : memref<2x32xf32, #tpu.memory_space<vmem>>, vector<1x32xf32>
      %c1 = arith.constant 1 : index
      %c0_151 = arith.constant 0 : index
      %340 = vector.load %arg5[%c1, %c0_151] : memref<2x32xf32, #tpu.memory_space<vmem>>, vector<1x32xf32>
      %cst_152 = arith.constant dense<0.000000e+00> : vector<16xf32>
      %341 = vector.multi_reduction <add>, %334, %cst_152 [1] : vector<16x32xf32> to vector<16xf32>
      %342 = vector.shape_cast %341 : vector<16xf32> to vector<16x1xf32>
      %cst_153 = arith.constant 3.200000e+01 : f32
      %343 = vector.broadcast %cst_153 : f32 to vector<16x1xf32>
      %344 = arith.divf %342, %343 : vector<16x1xf32>
      %345 = vector.broadcast %344 : vector<16x1xf32> to vector<16x32xf32>
      %346 = arith.subf %334, %345 : vector<16x32xf32>
      %347 = arith.mulf %346, %346 : vector<16x32xf32>
      %cst_154 = arith.constant dense<0.000000e+00> : vector<16xf32>
      %348 = vector.multi_reduction <add>, %347, %cst_154 [1] : vector<16x32xf32> to vector<16xf32>
      %349 = vector.shape_cast %348 : vector<16xf32> to vector<16x1xf32>
      %cst_155 = arith.constant 3.200000e+01 : f32
      %350 = vector.broadcast %cst_155 : f32 to vector<16x1xf32>
      %351 = arith.divf %349, %350 : vector<16x1xf32>
      %cst_156 = arith.constant 9.99999974E-6 : f32
      %352 = vector.broadcast %cst_156 : f32 to vector<16x1xf32>
      %353 = arith.addf %351, %352 : vector<16x1xf32>
      %354 = math.rsqrt %353 : vector<16x1xf32>
      %355 = vector.broadcast %354 : vector<16x1xf32> to vector<16x32xf32>
      %356 = arith.mulf %346, %355 : vector<16x32xf32>
      %357 = vector.broadcast %339 : vector<1x32xf32> to vector<16x32xf32>
      %358 = arith.mulf %356, %357 : vector<16x32xf32>
      %359 = vector.broadcast %340 : vector<1x32xf32> to vector<16x32xf32>
      %360 = arith.addf %358, %359 : vector<16x32xf32>
      %361 = vector.shape_cast %360 : vector<16x32xf32> to vector<2x8x32xf32>
      %c0_157 = arith.constant 0 : index
      %c0_158 = arith.constant 0 : index
      %c0_159 = arith.constant 0 : index
      %362 = vector.load %arg25[%c0_157, %c0_158, %c0_159] : memref<2x8x32xf32, #tpu.memory_space<vmem>>, vector<2x8x32xf32>
      tpu.vector_store %arg25[%c0_157, %c0_158, %c0_159], %361 {strides = array<i32>} : memref<2x8x32xf32, #tpu.memory_space<vmem>>, vector<2x8x32xf32>,
    } else {
    }
    return
  }
  func.func @transform_0(%arg0: i32) -> (i32, i32, i32) {
    %c0_i32 = arith.constant 0 : i32
    %c0_i32_0 = arith.constant 0 : i32
    %c0_i32_1 = arith.constant 0 : i32
    %c0_i32_2 = arith.constant 0 : i32
    return %c0_i32, %c0_i32_0, %c0_i32_1 : i32, i32, i32
  }
  func.func @transform_1(%arg0: i32) -> (i32, i32, i32) {
    %c0_i32 = arith.constant 0 : i32
    %c0_i32_0 = arith.constant 0 : i32
    %c0_i32_1 = arith.constant 0 : i32
    %c0_i32_2 = arith.constant 0 : i32
    return %c0_i32, %c0_i32_0, %c0_i32_1 : i32, i32, i32
  }
  func.func @transform_2(%arg0: i32) -> (i32, i32, i32) {
    %c0_i32 = arith.constant 0 : i32
    %c0_i32_0 = arith.constant 0 : i32
    %c0_i32_1 = arith.constant 0 : i32
    %c0_i32_2 = arith.constant 0 : i32
    return %c0_i32, %c0_i32_0, %c0_i32_1 : i32, i32, i32
  }
  func.func @transform_3(%arg0: i32) -> (i32, i32, i32) {
    %c0_i32 = arith.constant 0 : i32
    %c0_i32_0 = arith.constant 0 : i32
    %c0_i32_1 = arith.constant 0 : i32
    %c0_i32_2 = arith.constant 0 : i32
    return %c0_i32, %c0_i32_0, %c0_i32_1 : i32, i32, i32
  }
  func.func @transform_4(%arg0: i32) -> (i32, i32) {
    %c0_i32 = arith.constant 0 : i32
    %c0_i32_0 = arith.constant 0 : i32
    %c0_i32_1 = arith.constant 0 : i32
    return %c0_i32, %c0_i32_0 : i32, i32
  }
  func.func @transform_5(%arg0: i32) -> (i32, i32, i32) {
    %c0_i32 = arith.constant 0 : i32
    %c0_i32_0 = arith.constant 0 : i32
    %c0_i32_1 = arith.constant 0 : i32
    return %arg0, %c0_i32, %c0_i32_0 : i32, i32, i32
  }
  func.func @transform_6(%arg0: i32) -> (i32, i32, i32) {
    %c0_i32 = arith.constant 0 : i32
    %c0_i32_0 = arith.constant 0 : i32
    %c0_i32_1 = arith.constant 0 : i32
    return %arg0, %c0_i32, %c0_i32_0 : i32, i32, i32
  }
  func.func @transform_7(%arg0: i32) -> (i32, i32, i32) {
    %c0_i32 = arith.constant 0 : i32
    %c0_i32_0 = arith.constant 0 : i32
    %c0_i32_1 = arith.constant 0 : i32
    return %arg0, %c0_i32, %c0_i32_0 : i32, i32, i32
  }
  func.func @transform_8(%arg0: i32) -> (i32, i32, i32) {
    %c0_i32 = arith.constant 0 : i32
    %c0_i32_0 = arith.constant 0 : i32
    %c0_i32_1 = arith.constant 0 : i32
    return %arg0, %c0_i32, %c0_i32_0 : i32, i32, i32
  }
  func.func @transform_9(%arg0: i32) -> (i32, i32, i32) {
    %c0_i32 = arith.constant 0 : i32
    %c0_i32_0 = arith.constant 0 : i32
    %c0_i32_1 = arith.constant 0 : i32
    return %arg0, %c0_i32, %c0_i32_0 : i32, i32, i32
  }
  func.func @transform_10(%arg0: i32) -> (i32, i32, i32) {
    %c0_i32 = arith.constant 0 : i32
    %c0_i32_0 = arith.constant 0 : i32
    %c0_i32_1 = arith.constant 0 : i32
    return %arg0, %c0_i32, %c0_i32_0 : i32, i32, i32
  }
  func.func @transform_11(%arg0: i32) -> (i32, i32, i32) {
    %c0_i32 = arith.constant 0 : i32
    %c0_i32_0 = arith.constant 0 : i32
    %c0_i32_1 = arith.constant 0 : i32
    return %arg0, %c0_i32, %c0_i32_0 : i32, i32, i32
  }
  func.func @transform_12(%arg0: i32) -> (i32, i32, i32) {
    %c0_i32 = arith.constant 0 : i32
    %c0_i32_0 = arith.constant 0 : i32
    %c0_i32_1 = arith.constant 0 : i32
    return %arg0, %c0_i32, %c0_i32_0 : i32, i32, i32
  }
  func.func @transform_13(%arg0: i32) -> (i32, i32, i32) {
    %c0_i32 = arith.constant 0 : i32
    %c0_i32_0 = arith.constant 0 : i32
    %c0_i32_1 = arith.constant 0 : i32
    return %arg0, %c0_i32, %c0_i32_0 : i32, i32, i32
  }
  func.func @transform_14(%arg0: i32) -> (i32, i32, i32) {
    %c0_i32 = arith.constant 0 : i32
    %c0_i32_0 = arith.constant 0 : i32
    %c0_i32_1 = arith.constant 0 : i32
    return %arg0, %c0_i32, %c0_i32_0 : i32, i32, i32
  }
  func.func @transform_15(%arg0: i32) -> (i32, i32, i32) {
    %c0_i32 = arith.constant 0 : i32
    %c0_i32_0 = arith.constant 0 : i32
    %c0_i32_1 = arith.constant 0 : i32
    return %arg0, %c0_i32, %c0_i32_0 : i32, i32, i32
  }
  func.func @transform_16(%arg0: i32) -> (i32, i32, i32) {
    %c0_i32 = arith.constant 0 : i32
    %c0_i32_0 = arith.constant 0 : i32
    %c0_i32_1 = arith.constant 0 : i32
    return %arg0, %c0_i32, %c0_i32_0 : i32, i32, i32
  }
  func.func @transform_17(%arg0: i32) -> (i32, i32, i32) {
    %c0_i32 = arith.constant 0 : i32
    %c0_i32_0 = arith.constant 0 : i32
    %c0_i32_1 = arith.constant 0 : i32
    return %arg0, %c0_i32, %c0_i32_0 : i32, i32, i32
  }
  func.func @transform_18(%arg0: i32) -> (i32, i32, i32) {
    %c0_i32 = arith.constant 0 : i32
    %c0_i32_0 = arith.constant 0 : i32
    %c0_i32_1 = arith.constant 0 : i32
    return %arg0, %c0_i32, %c0_i32_0 : i32, i32, i32
  }
  func.func @transform_19(%arg0: i32) -> (i32, i32, i32) {
    %c0_i32 = arith.constant 0 : i32
    %c0_i32_0 = arith.constant 0 : i32
    %c0_i32_1 = arith.constant 0 : i32
    return %arg0, %c0_i32, %c0_i32_0 : i32, i32, i32
  }
  func.func @transform_20(%arg0: i32) -> (i32, i32, i32) {
    %c0_i32 = arith.constant 0 : i32
    %c0_i32_0 = arith.constant 0 : i32
    %c0_i32_1 = arith.constant 0 : i32
    return %arg0, %c0_i32, %c0_i32_0 : i32, i32, i32
  }
  func.func @transform_21(%arg0: i32) -> (i32, i32, i32) {
    %c0_i32 = arith.constant 0 : i32
    %c0_i32_0 = arith.constant 0 : i32
    %c0_i32_1 = arith.constant 0 : i32
    return %arg0, %c0_i32, %c0_i32_0 : i32, i32, i32
  }
  func.func @transform_22(%arg0: i32) -> (i32, i32, i32) {
    %c0_i32 = arith.constant 0 : i32
    %c0_i32_0 = arith.constant 0 : i32
    %c0_i32_1 = arith.constant 0 : i32
    return %arg0, %c0_i32, %c0_i32_0 : i32, i32, i32
  }
  func.func @transform_23(%arg0: i32) -> (i32, i32, i32) {
    %c0_i32 = arith.constant 0 : i32
    %c0_i32_0 = arith.constant 0 : i32
    %c0_i32_1 = arith.constant 0 : i32
    return %arg0, %c0_i32, %c0_i32_0 : i32, i32, i32
  }
  func.func @transform_24(%arg0: i32) -> (i32, i32, i32) {
    %c0_i32 = arith.constant 0 : i32
    %c0_i32_0 = arith.constant 0 : i32
    %c0_i32_1 = arith.constant 0 : i32
    %c0_i32_2 = arith.constant 0 : i32
    return %c0_i32, %c0_i32_0, %c0_i32_1 : i32, i32, i32
  }
  func.func @transform_25(%arg0: i32) -> (i32, i32, i32, i32) {
    %c0_i32 = arith.constant 0 : i32
    %c0_i32_0 = arith.constant 0 : i32
    %c0_i32_1 = arith.constant 0 : i32
    %c0_i32_2 = arith.constant 0 : i32
    return %arg0, %c0_i32, %c0_i32_0, %c0_i32_1 : i32, i32, i32, i32
  }
}

</mosaic_0001>

<llo_original>
// kernel: tpu_custom_call.1
$region0: #{tpu_custom_call.1}
  #allocation0 [shape = 'u32[]', space=smem, size = 0x4, offset = 0x4, fixed_abs, tag = 'smem constant byte address 0x4 - core index']
  #allocation1 [shape = 'u32[72,128]{1,0:T(1,128)}', space=vmem, size = 0x9000, scoped, tag = 'internal scratch']
  #allocation2 [shape = 'f32[16,32]{1,0:T(8,128)}', space=vmem, size = 0x2000, scoped, tag = 'scratch operand']
  %s0 = inlined_call_operand.vmem [shape: f32[2,8,32], index: 0, kind: input, shape index: {}]
  %s1 = inlined_call_operand.hbm [shape: f32[2,8,32], index: 1, kind: input, shape index: {}]
  %s2 = inlined_call_operand.hbm [shape: f32[2,16,32], index: 2, kind: input, shape index: {}]
  %s3 = inlined_call_operand.hbm [shape: f32[2,16,32], index: 3, kind: input, shape index: {}]
  %s4 = inlined_call_operand.vmem [shape: f32[2,32], index: 4, kind: input, shape index: {}]
  %s5 = inlined_call_operand.vmem [shape: f32[2,32,64], index: 5, kind: input, shape index: {}]
  %s6 = inlined_call_operand.vmem [shape: f32[2,1,64], index: 6, kind: input, shape index: {}]
  %s7 = inlined_call_operand.vmem [shape: f32[2,32,32], index: 7, kind: input, shape index: {}]
  %s8 = inlined_call_operand.vmem [shape: f32[2,1,32], index: 8, kind: input, shape index: {}]
  %s9 = inlined_call_operand.vmem [shape: f32[2,32,32], index: 9, kind: input, shape index: {}]
  %s10 = inlined_call_operand.vmem [shape: f32[2,1,32], index: 10, kind: input, shape index: {}]
  %s11 = inlined_call_operand.hbm [shape: f32[2,32,32], index: 11, kind: input, shape index: {}]
  %s12 = inlined_call_operand.vmem [shape: f32[2,1,32], index: 12, kind: input, shape index: {}]
  %s13 = inlined_call_operand.hbm [shape: f32[2,32,32], index: 13, kind: input, shape index: {}]
  %s14 = inlined_call_operand.vmem [shape: f32[2,1,32], index: 14, kind: input, shape index: {}]
  %s15 = inlined_call_operand.hbm [shape: f32[2,32,32], index: 15, kind: input, shape index: {}]
  %s16 = inlined_call_operand.vmem [shape: f32[2,1,32], index: 16, kind: input, shape index: {}]
  %s17 = inlined_call_operand.hbm [shape: f32[2,32,32], index: 17, kind: input, shape index: {}]
  %s18 = inlined_call_operand.vmem [shape: f32[2,1,32], index: 18, kind: input, shape index: {}]
  %s19 = inlined_call_operand.hbm [shape: f32[2,32,64], index: 19, kind: input, shape index: {}]
  %s20 = inlined_call_operand.vmem [shape: f32[2,1,64], index: 20, kind: input, shape index: {}]
  %s21 = inlined_call_operand.vmem [shape: f32[2,64,32], index: 21, kind: input, shape index: {}]
  %s22 = inlined_call_operand.vmem [shape: f32[2,1,32], index: 22, kind: input, shape index: {}]
  %s23 = inlined_call_operand.vmem [shape: f32[2,6,32], index: 23, kind: input, shape index: {}]
  %s24 = inlined_call_operand.hbm [shape: f32[2,8,32], index: 24, kind: output, shape index: {0}]
  %s25 = inlined_call_operand.hbm [shape: f32[2,2,8,16], index: 25, kind: output, shape index: {1}]
  %26 = xla_tuple %s24, %s25
  %s27 = sld [smem:[#allocation0]]
  $region177: #{tpu_custom_call.1} parent=0
    _
  %s29 = ssub.s32 1, %s27
  %s30 = scalar_select 0, %s29, %s27
  $region1: #{tpu_custom_call.1} parent=0
    #allocation3 [shape = 'u8[8192]{0}', space=vmem, size = 0x2000, scoped, tag = 'input window, operand 1, single buffered']
    #allocation4 [shape = 's32[2]{0}', space=sflag, size = 0x8, scoped, tag = 'scoped memory for tpu_custom_call.1']
    #allocation5 [shape = 's32[2]{0}', space=sflag, size = 0x8, scoped, tag = 'scoped memory for tpu_custom_call.1']
    #allocation6 [shape = 'u8[16384]{0}', space=vmem, size = 0x4000, scoped, tag = 'input window, operand 2, single buffered']
    #allocation7 [shape = 's32[1]{0}', space=sflag, size = 0x4, scoped, tag = 'scoped memory for tpu_custom_call.1']
    #allocation8 [shape = 'u8[16384]{0}', space=vmem, size = 0x4000, scoped, tag = 'input window, operand 3, single buffered']
    #allocation9 [shape = 'u8[32768]{0}', space=vmem, size = 0x8000, scoped, tag = 'input window, operand 11']
    #allocation10 [shape = 's32[2]{0}', space=sflag, size = 0x8, scoped, tag = 'scoped memory for tpu_custom_call.1']
    #allocation11 [shape = 'u8[32768]{0}', space=vmem, size = 0x8000, scoped, tag = 'input window, operand 13']
    #allocation12 [shape = 'u8[32768]{0}', space=vmem, size = 0x8000, scoped, tag = 'input window, operand 15']
    #allocation13 [shape = 's32[2]{0}', space=sflag, size = 0x8, scoped, tag = 'scoped memory for tpu_custom_call.1']
    #allocation14 [shape = 'u8[32768]{0}', space=vmem, size = 0x8000, scoped, tag = 'input window, operand 17']
    #allocation15 [shape = 'u8[32768]{0}', space=vmem, size = 0x8000, scoped, tag = 'input window, operand 19']
    #allocation16 [shape = 's32[2]{0}', space=sflag, size = 0x8, scoped, tag = 'scoped memory for tpu_custom_call.1']
    #allocation17 [shape = 'u8[8192]{0}', space=vmem, size = 0x2000, scoped, tag = 'output window, operand 0, single buffered']
    #allocation18 [shape = 'u8[16384]{0}', space=vmem, size = 0x4000, scoped, tag = 'output window, operand 1']
    #allocation19 [shape = 's32[2]{0}', space=sflag, size = 0x8, scoped, tag = 'scoped memory for tpu_custom_call.1']
    %31 = vsyncpa [#allocation4], 0
    %32 = vsyncpa [#allocation7], 0
    %33 = vsyncpa [#allocation10], 0
    %s34 = scalar_lea.sflag [#allocation10], 1
    %35 = vsyncpa %s34, 0
    %36 = vsyncpa [#allocation13], 0
    %s37 = scalar_lea.sflag [#allocation13], 1
    %38 = vsyncpa %s37, 0
    %39 = vsyncpa [#allocation16], 0
    %s40 = scalar_lea.sflag [#allocation16], 1
    %41 = vsyncpa %s40, 0
    %42 = vsyncpa [#allocation5], 0
    %43 = vsyncpa [#allocation19], 0
    %s44 = scalar_lea.sflag [#allocation19], 1
    %45 = vsyncpa %s44, 0
    loop: start=0, step=1, limit=4
    $region2: #{tpu_custom_call.1} parent=1 // loop_pre_header
      _
    $region3: #{tpu_custom_call.1} parent=1 // loop_header
      %s47 = sphi 0, %s51
      %p48 = scmp.ge.s32.totalorder %s47, 4
      %s55 = sphi 0, %s55
      %s57 = sphi 0, %s55
      %s58 = sphi 0, %s57
      %s72 = sphi 0, %s58
      %s76 = sphi 0, %s76
      %s78 = sphi 0, %s76
      %s79 = sphi 0, %s78
      %s93 = sphi 0, %s79
      %s97 = sphi 0, %s97
      %s99 = sphi 0, %s97
      %s100 = sphi 0, %s99
      %s114 = sphi 0, %s100
      %s118 = sphi 0, %s118
      %s120 = sphi 0, %s118
      %s121 = sphi 0, %s120
      %s135 = sphi 0, %s121
      %s139 = sphi 0, %s139
      %s141 = sphi 0, %s139
      %s142 = sphi 0, %s141
      %s156 = sphi 0, %s142
      %s162 = sphi 0, %s164
      %s165 = sphi 0, %s162
      %s166 = sphi 0, %s165
      %s182 = sphi 0, %s166
      %s188 = sphi 0, %s190
      %s191 = sphi 0, %s188
      %s192 = sphi 0, %s191
      %s208 = sphi 0, %s192
      %s214 = sphi 0, %s216
      %s217 = sphi 0, %s214
      %s218 = sphi 0, %s217
      %s234 = sphi 0, %s218
      %s240 = sphi 0, %s242
      %s243 = sphi 0, %s240
      %s244 = sphi 0, %s243
      %s260 = sphi 0, %s244
      %s266 = sphi 0, %s268
      %s269 = sphi 0, %s266
      %s270 = sphi 0, %s269
      %s286 = sphi 0, %s270
      %s292 = sphi 0, %s294
      %s295 = sphi 0, %s292
      %s296 = sphi 0, %s295
      %s312 = sphi 0, %s296
      %s318 = sphi 0, %s320
      %s321 = sphi 0, %s318
      %s322 = sphi 0, %s321
      %s338 = sphi 0, %s322
      %s344 = sphi 0, %s346
      %s347 = sphi 0, %s344
      %s348 = sphi 0, %s347
      %s364 = sphi 0, %s348
      %s370 = sphi 0, %s372
      %s373 = sphi 0, %s370
      %s374 = sphi 0, %s373
      %s390 = sphi 0, %s374
      %s396 = sphi 0, %s398
      %s399 = sphi 0, %s396
      %s400 = sphi 0, %s399
      %s416 = sphi 0, %s400
      %s422 = sphi 0, %s424
      %s425 = sphi 0, %s422
      %s426 = sphi 0, %s425
      %s442 = sphi 0, %s426
      %s448 = sphi 0, %s450
      %s451 = sphi 0, %s448
      %s452 = sphi 0, %s451
      %s468 = sphi 0, %s452
      %s474 = sphi 0, %s476
      %s477 = sphi 0, %s474
      %s478 = sphi 0, %s477
      %s494 = sphi 0, %s478
      %s500 = sphi 0, %s502
      %s503 = sphi 0, %s500
      %s504 = sphi 0, %s503
      %s520 = sphi 0, %s504
      %s526 = sphi 0, %s528
      %s529 = sphi 0, %s526
      %s530 = sphi 0, %s529
      %s546 = sphi 0, %s530
      %s552 = sphi 0, %s554
      %s555 = sphi 0, %s552
      %s556 = sphi 0, %s555
      %s572 = sphi 0, %s556
      %s578 = sphi 0, %s580
      %s581 = sphi 0, %s578
      %s582 = sphi 0, %s581
      %s598 = sphi 0, %s582
      %s604 = sphi 0, %s606
      %s607 = sphi 0, %s604
      %s608 = sphi 0, %s607
      %s624 = sphi 0, %s608
      %s630 = sphi 0, %s632
      %s633 = sphi 0, %s630
      %s634 = sphi 0, %s633
      %s650 = sphi 0, %s634
      %s654 = sphi 0, %s654
      %s656 = sphi 0, %s654
      %s657 = sphi 0, %s656
      %s671 = sphi 0, %s657
      %s677 = sphi 0, %s679
      %s680 = sphi 0, %s677
      %s681 = sphi 0, %s680
      %s697 = sphi 0, %s681
    $region4: #{tpu_custom_call.1} parent=1 // loop_header_branch
      %50 = sbr.rel (%p48) target = $region8
    $region5: #{tpu_custom_call.1} parent=1 // loop_body
      %s52 = ssub.s32 %s47, 1
      %s53 = ssub.s32 %s47, 2
      %s54 = sadd.s32 %s47, 1
      %s56 = sadd.s32 %s55, 1
      %p59 = scmp.eq.s32.totalorder %s47, 1
      %p60 = scmp.ne.s32.totalorder %s55, %s57
      %p61 = scmp.eq.s32.totalorder %s47, 0
      %p62 = por %p60, %p61
      %p63 = scmp.ne.s32.totalorder %s55, %s57
      %p64 = scmp.eq.s32.totalorder %s52, 1
      %p65 = por %p63, %p64
      %p66 = scmp.ne.s32.totalorder %s57, %s58
      %p67 = scmp.eq.s32.totalorder %s52, 0
      %p68 = por %p66, %p67
      %p69 = scmp.ne.s32.totalorder %s57, %s58
      %p70 = scmp.eq.s32.totalorder %s53, 1
      %p71 = por %p69, %p70
      %p73 = scmp.ne.s32.totalorder %s58, %s72
      %p74 = scmp.eq.s32.totalorder %s53, 0
      %p75 = por %p73, %p74
      %s77 = sadd.s32 %s76, 1
      %p80 = scmp.eq.s32.totalorder %s47, 1
      %p81 = scmp.ne.s32.totalorder %s76, %s78
      %p82 = scmp.eq.s32.totalorder %s47, 0
      %p83 = por %p81, %p82
      %p84 = scmp.ne.s32.totalorder %s76, %s78
      %p85 = scmp.eq.s32.totalorder %s52, 1
      %p86 = por %p84, %p85
      %p87 = scmp.ne.s32.totalorder %s78, %s79
      %p88 = scmp.eq.s32.totalorder %s52, 0
      %p89 = por %p87, %p88
      %p90 = scmp.ne.s32.totalorder %s78, %s79
      %p91 = scmp.eq.s32.totalorder %s53, 1
      %p92 = por %p90, %p91
      %p94 = scmp.ne.s32.totalorder %s79, %s93
      %p95 = scmp.eq.s32.totalorder %s53, 0
      %p96 = por %p94, %p95
      %s98 = sadd.s32 %s97, 1
      %p101 = scmp.eq.s32.totalorder %s47, 1
      %p102 = scmp.ne.s32.totalorder %s97, %s99
      %p103 = scmp.eq.s32.totalorder %s47, 0
      %p104 = por %p102, %p103
      %p105 = scmp.ne.s32.totalorder %s97, %s99
      %p106 = scmp.eq.s32.totalorder %s52, 1
      %p107 = por %p105, %p106
      %p108 = scmp.ne.s32.totalorder %s99, %s100
      %p109 = scmp.eq.s32.totalorder %s52, 0
      %p110 = por %p108, %p109
      %p111 = scmp.ne.s32.totalorder %s99, %s100
      %p112 = scmp.eq.s32.totalorder %s53, 1
      %p113 = por %p111, %p112
      %p115 = scmp.ne.s32.totalorder %s100, %s114
      %p116 = scmp.eq.s32.totalorder %s53, 0
      %p117 = por %p115, %p116
      %s119 = sadd.s32 %s118, 1
      %p122 = scmp.eq.s32.totalorder %s47, 1
      %p123 = scmp.ne.s32.totalorder %s118, %s120
      %p124 = scmp.eq.s32.totalorder %s47, 0
      %p125 = por %p123, %p124
      %p126 = scmp.ne.s32.totalorder %s118, %s120
      %p127 = scmp.eq.s32.totalorder %s52, 1
      %p128 = por %p126, %p127
      %p129 = scmp.ne.s32.totalorder %s120, %s121
      %p130 = scmp.eq.s32.totalorder %s52, 0
      %p131 = por %p129, %p130
      %p132 = scmp.ne.s32.totalorder %s120, %s121
      %p133 = scmp.eq.s32.totalorder %s53, 1
      %p134 = por %p132, %p133
      %p136 = scmp.ne.s32.totalorder %s121, %s135
      %p137 = scmp.eq.s32.totalorder %s53, 0
      %p138 = por %p136, %p137
      %s140 = sadd.s32 %s139, 1
      %p143 = scmp.eq.s32.totalorder %s47, 1
      %p144 = scmp.ne.s32.totalorder %s139, %s141
      %p145 = scmp.eq.s32.totalorder %s47, 0
      %p146 = por %p144, %p145
      %p147 = scmp.ne.s32.totalorder %s139, %s141
      %p148 = scmp.eq.s32.totalorder %s52, 1
      %p149 = por %p147, %p148
      %p150 = scmp.ne.s32.totalorder %s141, %s142
      %p151 = scmp.eq.s32.totalorder %s52, 0
      %p152 = por %p150, %p151
      %p153 = scmp.ne.s32.totalorder %s141, %s142
      %p154 = scmp.eq.s32.totalorder %s53, 1
      %p155 = por %p153, %p154
      %p157 = scmp.ne.s32.totalorder %s142, %s156
      %p158 = scmp.eq.s32.totalorder %s53, 0
      %p159 = por %p157, %p158
      %s160 = ssub.s32 %s47, %s54
      %p161 = scmp.eq.s32.totalorder %s160, 0
      %s163 = sadd.s32 %s162, 1
      %s164 = scalar_select %p161, %s162, %s163
      %p167 = pneg %p161
      %p168 = scmp.eq.s32.totalorder %s47, 1
      %p169 = por %p167, %p168
      %p170 = scmp.ne.s32.totalorder %s162, %s165
      %p171 = scmp.eq.s32.totalorder %s47, 0
      %p172 = por %p170, %p171
      %p173 = scmp.ne.s32.totalorder %s162, %s165
      %p174 = scmp.eq.s32.totalorder %s52, 1
      %p175 = por %p173, %p174
      %p176 = scmp.ne.s32.totalorder %s165, %s166
      %p177 = scmp.eq.s32.totalorder %s52, 0
      %p178 = por %p176, %p177
      %p179 = scmp.ne.s32.totalorder %s165, %s166
      %p180 = scmp.eq.s32.totalorder %s53, 1
      %p181 = por %p179, %p180
      %p183 = scmp.ne.s32.totalorder %s166, %s182
      %p184 = scmp.eq.s32.totalorder %s53, 0
      %p185 = por %p183, %p184
      %s186 = ssub.s32 %s47, %s54
      %p187 = scmp.eq.s32.totalorder %s186, 0
      %s189 = sadd.s32 %s188, 1
      %s190 = scalar_select %p187, %s188, %s189
      %p193 = pneg %p187
      %p194 = scmp.eq.s32.totalorder %s47, 1
      %p195 = por %p193, %p194
      %p196 = scmp.ne.s32.totalorder %s188, %s191
      %p197 = scmp.eq.s32.totalorder %s47, 0
      %p198 = por %p196, %p197
      %p199 = scmp.ne.s32.totalorder %s188, %s191
      %p200 = scmp.eq.s32.totalorder %s52, 1
      %p201 = por %p199, %p200
      %p202 = scmp.ne.s32.totalorder %s191, %s192
      %p203 = scmp.eq.s32.totalorder %s52, 0
      %p204 = por %p202, %p203
      %p205 = scmp.ne.s32.totalorder %s191, %s192
      %p206 = scmp.eq.s32.totalorder %s53, 1
      %p207 = por %p205, %p206
      %p209 = scmp.ne.s32.totalorder %s192, %s208
      %p210 = scmp.eq.s32.totalorder %s53, 0
      %p211 = por %p209, %p210
      %s212 = ssub.s32 %s47, %s54
      %p213 = scmp.eq.s32.totalorder %s212, 0
      %s215 = sadd.s32 %s214, 1
      %s216 = scalar_select %p213, %s214, %s215
      %p219 = pneg %p213
      %p220 = scmp.eq.s32.totalorder %s47, 1
      %p221 = por %p219, %p220
      %p222 = scmp.ne.s32.totalorder %s214, %s217
      %p223 = scmp.eq.s32.totalorder %s47, 0
      %p224 = por %p222, %p223
      %p225 = scmp.ne.s32.totalorder %s214, %s217
      %p226 = scmp.eq.s32.totalorder %s52, 1
      %p227 = por %p225, %p226
      %p228 = scmp.ne.s32.totalorder %s217, %s218
      %p229 = scmp.eq.s32.totalorder %s52, 0
      %p230 = por %p228, %p229
      %p231 = scmp.ne.s32.totalorder %s217, %s218
      %p232 = scmp.eq.s32.totalorder %s53, 1
      %p233 = por %p231, %p232
      %p235 = scmp.ne.s32.totalorder %s218, %s234
      %p236 = scmp.eq.s32.totalorder %s53, 0
      %p237 = por %p235, %p236
      %s238 = ssub.s32 %s47, %s54
      %p239 = scmp.eq.s32.totalorder %s238, 0
      %s241 = sadd.s32 %s240, 1
      %s242 = scalar_select %p239, %s240, %s241
      %p245 = pneg %p239
      %p246 = scmp.eq.s32.totalorder %s47, 1
      %p247 = por %p245, %p246
      %p248 = scmp.ne.s32.totalorder %s240, %s243
      %p249 = scmp.eq.s32.totalorder %s47, 0
      %p250 = por %p248, %p249
      %p251 = scmp.ne.s32.totalorder %s240, %s243
      %p252 = scmp.eq.s32.totalorder %s52, 1
      %p253 = por %p251, %p252
      %p254 = scmp.ne.s32.totalorder %s243, %s244
      %p255 = scmp.eq.s32.totalorder %s52, 0
      %p256 = por %p254, %p255
      %p257 = scmp.ne.s32.totalorder %s243, %s244
      %p258 = scmp.eq.s32.totalorder %s53, 1
      %p259 = por %p257, %p258
      %p261 = scmp.ne.s32.totalorder %s244, %s260
      %p262 = scmp.eq.s32.totalorder %s53, 0
      %p263 = por %p261, %p262
      %s264 = ssub.s32 %s47, %s54
      %p265 = scmp.eq.s32.totalorder %s264, 0
      %s267 = sadd.s32 %s266, 1
      %s268 = scalar_select %p265, %s266, %s267
      %p271 = pneg %p265
      %p272 = scmp.eq.s32.totalorder %s47, 1
      %p273 = por %p271, %p272
      %p274 = scmp.ne.s32.totalorder %s266, %s269
      %p275 = scmp.eq.s32.totalorder %s47, 0
      %p276 = por %p274, %p275
      %p277 = scmp.ne.s32.totalorder %s266, %s269
      %p278 = scmp.eq.s32.totalorder %s52, 1
      %p279 = por %p277, %p278
      %p280 = scmp.ne.s32.totalorder %s269, %s270
      %p281 = scmp.eq.s32.totalorder %s52, 0
      %p282 = por %p280, %p281
      %p283 = scmp.ne.s32.totalorder %s269, %s270
      %p284 = scmp.eq.s32.totalorder %s53, 1
      %p285 = por %p283, %p284
      %p287 = scmp.ne.s32.totalorder %s270, %s286
      %p288 = scmp.eq.s32.totalorder %s53, 0
      %p289 = por %p287, %p288
      %s290 = ssub.s32 %s47, %s54
      %p291 = scmp.eq.s32.totalorder %s290, 0
      %s293 = sadd.s32 %s292, 1
      %s294 = scalar_select %p291, %s292, %s293
      %p297 = pneg %p291
      %p298 = scmp.eq.s32.totalorder %s47, 1
      %p299 = por %p297, %p298
      %p300 = scmp.ne.s32.totalorder %s292, %s295
      %p301 = scmp.eq.s32.totalorder %s47, 0
      %p302 = por %p300, %p301
      %p303 = scmp.ne.s32.totalorder %s292, %s295
      %p304 = scmp.eq.s32.totalorder %s52, 1
      %p305 = por %p303, %p304
      %p306 = scmp.ne.s32.totalorder %s295, %s296
      %p307 = scmp.eq.s32.totalorder %s52, 0
      %p308 = por %p306, %p307
      %p309 = scmp.ne.s32.totalorder %s295, %s296
      %p310 = scmp.eq.s32.totalorder %s53, 1
      %p311 = por %p309, %p310
      %p313 = scmp.ne.s32.totalorder %s296, %s312
      %p314 = scmp.eq.s32.totalorder %s53, 0
      %p315 = por %p313, %p314
      %s316 = ssub.s32 %s47, %s54
      %p317 = scmp.eq.s32.totalorder %s316, 0
      %s319 = sadd.s32 %s318, 1
      %s320 = scalar_select %p317, %s318, %s319
      %p323 = pneg %p317
      %p324 = scmp.eq.s32.totalorder %s47, 1
      %p325 = por %p323, %p324
      %p326 = scmp.ne.s32.totalorder %s318, %s321
      %p327 = scmp.eq.s32.totalorder %s47, 0
      %p328 = por %p326, %p327
      %p329 = scmp.ne.s32.totalorder %s318, %s321
      %p330 = scmp.eq.s32.totalorder %s52, 1
      %p331 = por %p329, %p330
      %p332 = scmp.ne.s32.totalorder %s321, %s322
      %p333 = scmp.eq.s32.totalorder %s52, 0
      %p334 = por %p332, %p333
      %p335 = scmp.ne.s32.totalorder %s321, %s322
      %p336 = scmp.eq.s32.totalorder %s53, 1
      %p337 = por %p335, %p336
      %p339 = scmp.ne.s32.totalorder %s322, %s338
      %p340 = scmp.eq.s32.totalorder %s53, 0
      %p341 = por %p339, %p340
      %s342 = ssub.s32 %s47, %s54
      %p343 = scmp.eq.s32.totalorder %s342, 0
      %s345 = sadd.s32 %s344, 1
      %s346 = scalar_select %p343, %s344, %s345
      %p349 = pneg %p343
      %p350 = scmp.eq.s32.totalorder %s47, 1
      %p351 = por %p349, %p350
      %p352 = scmp.ne.s32.totalorder %s344, %s347
      %p353 = scmp.eq.s32.totalorder %s47, 0
      %p354 = por %p352, %p353
      %p355 = scmp.ne.s32.totalorder %s344, %s347
      %p356 = scmp.eq.s32.totalorder %s52, 1
      %p357 = por %p355, %p356
      %p358 = scmp.ne.s32.totalorder %s347, %s348
      %p359 = scmp.eq.s32.totalorder %s52, 0
      %p360 = por %p358, %p359
      %p361 = scmp.ne.s32.totalorder %s347, %s348
      %p362 = scmp.eq.s32.totalorder %s53, 1
      %p363 = por %p361, %p362
      %p365 = scmp.ne.s32.totalorder %s348, %s364
      %p366 = scmp.eq.s32.totalorder %s53, 0
      %p367 = por %p365, %p366
      %s368 = ssub.s32 %s47, %s54
      %p369 = scmp.eq.s32.totalorder %s368, 0
      %s371 = sadd.s32 %s370, 1
      %s372 = scalar_select %p369, %s370, %s371
      %p375 = pneg %p369
      %p376 = scmp.eq.s32.totalorder %s47, 1
      %p377 = por %p375, %p376
      %p378 = scmp.ne.s32.totalorder %s370, %s373
      %p379 = scmp.eq.s32.totalorder %s47, 0
      %p380 = por %p378, %p379
      %p381 = scmp.ne.s32.totalorder %s370, %s373
      %p382 = scmp.eq.s32.totalorder %s52, 1
      %p383 = por %p381, %p382
      %p384 = scmp.ne.s32.totalorder %s373, %s374
      %p385 = scmp.eq.s32.totalorder %s52, 0
      %p386 = por %p384, %p385
      %p387 = scmp.ne.s32.totalorder %s373, %s374
      %p388 = scmp.eq.s32.totalorder %s53, 1
      %p389 = por %p387, %p388
      %p391 = scmp.ne.s32.totalorder %s374, %s390
      %p392 = scmp.eq.s32.totalorder %s53, 0
      %p393 = por %p391, %p392
      %s394 = ssub.s32 %s47, %s54
      %p395 = scmp.eq.s32.totalorder %s394, 0
      %s397 = sadd.s32 %s396, 1
      %s398 = scalar_select %p395, %s396, %s397
      %p401 = pneg %p395
      %p402 = scmp.eq.s32.totalorder %s47, 1
      %p403 = por %p401, %p402
      %p404 = scmp.ne.s32.totalorder %s396, %s399
      %p405 = scmp.eq.s32.totalorder %s47, 0
      %p406 = por %p404, %p405
      %p407 = scmp.ne.s32.totalorder %s396, %s399
      %p408 = scmp.eq.s32.totalorder %s52, 1
      %p409 = por %p407, %p408
      %p410 = scmp.ne.s32.totalorder %s399, %s400
      %p411 = scmp.eq.s32.totalorder %s52, 0
      %p412 = por %p410, %p411
      %p413 = scmp.ne.s32.totalorder %s399, %s400
      %p414 = scmp.eq.s32.totalorder %s53, 1
      %p415 = por %p413, %p414
      %p417 = scmp.ne.s32.totalorder %s400, %s416
      %p418 = scmp.eq.s32.totalorder %s53, 0
      %p419 = por %p417, %p418
      %s420 = ssub.s32 %s47, %s54
      %p421 = scmp.eq.s32.totalorder %s420, 0
      %s423 = sadd.s32 %s422, 1
      %s424 = scalar_select %p421, %s422, %s423
      %p427 = pneg %p421
      %p428 = scmp.eq.s32.totalorder %s47, 1
      %p429 = por %p427, %p428
      %p430 = scmp.ne.s32.totalorder %s422, %s425
      %p431 = scmp.eq.s32.totalorder %s47, 0
      %p432 = por %p430, %p431
      %p433 = scmp.ne.s32.totalorder %s422, %s425
      %p434 = scmp.eq.s32.totalorder %s52, 1
      %p435 = por %p433, %p434
      %p436 = scmp.ne.s32.totalorder %s425, %s426
      %p437 = scmp.eq.s32.totalorder %s52, 0
      %p438 = por %p436, %p437
      %p439 = scmp.ne.s32.totalorder %s425, %s426
      %p440 = scmp.eq.s32.totalorder %s53, 1
      %p441 = por %p439, %p440
      %p443 = scmp.ne.s32.totalorder %s426, %s442
      %p444 = scmp.eq.s32.totalorder %s53, 0
      %p445 = por %p443, %p444
      %s446 = ssub.s32 %s47, %s54
      %p447 = scmp.eq.s32.totalorder %s446, 0
      %s449 = sadd.s32 %s448, 1
      %s450 = scalar_select %p447, %s448, %s449
      %p453 = pneg %p447
      %p454 = scmp.eq.s32.totalorder %s47, 1
      %p455 = por %p453, %p454
      %p456 = scmp.ne.s32.totalorder %s448, %s451
      %p457 = scmp.eq.s32.totalorder %s47, 0
      %p458 = por %p456, %p457
      %p459 = scmp.ne.s32.totalorder %s448, %s451
      %p460 = scmp.eq.s32.totalorder %s52, 1
      %p461 = por %p459, %p460
      %p462 = scmp.ne.s32.totalorder %s451, %s452
      %p463 = scmp.eq.s32.totalorder %s52, 0
      %p464 = por %p462, %p463
      %p465 = scmp.ne.s32.totalorder %s451, %s452
      %p466 = scmp.eq.s32.totalorder %s53, 1
      %p467 = por %p465, %p466
      %p469 = scmp.ne.s32.totalorder %s452, %s468
      %p470 = scmp.eq.s32.totalorder %s53, 0
      %p471 = por %p469, %p470
      %s472 = ssub.s32 %s47, %s54
      %p473 = scmp.eq.s32.totalorder %s472, 0
      %s475 = sadd.s32 %s474, 1
      %s476 = scalar_select %p473, %s474, %s475
      %p479 = pneg %p473
      %p480 = scmp.eq.s32.totalorder %s47, 1
      %p481 = por %p479, %p480
      %p482 = scmp.ne.s32.totalorder %s474, %s477
      %p483 = scmp.eq.s32.totalorder %s47, 0
      %p484 = por %p482, %p483
      %p485 = scmp.ne.s32.totalorder %s474, %s477
      %p486 = scmp.eq.s32.totalorder %s52, 1
      %p487 = por %p485, %p486
      %p488 = scmp.ne.s32.totalorder %s477, %s478
      %p489 = scmp.eq.s32.totalorder %s52, 0
      %p490 = por %p488, %p489
      %p491 = scmp.ne.s32.totalorder %s477, %s478
      %p492 = scmp.eq.s32.totalorder %s53, 1
      %p493 = por %p491, %p492
      %p495 = scmp.ne.s32.totalorder %s478, %s494
      %p496 = scmp.eq.s32.totalorder %s53, 0
      %p497 = por %p495, %p496
      %s498 = ssub.s32 %s47, %s54
      %p499 = scmp.eq.s32.totalorder %s498, 0
      %s501 = sadd.s32 %s500, 1
      %s502 = scalar_select %p499, %s500, %s501
      %p505 = pneg %p499
      %p506 = scmp.eq.s32.totalorder %s47, 1
      %p507 = por %p505, %p506
      %p508 = scmp.ne.s32.totalorder %s500, %s503
      %p509 = scmp.eq.s32.totalorder %s47, 0
      %p510 = por %p508, %p509
      %p511 = scmp.ne.s32.totalorder %s500, %s503
      %p512 = scmp.eq.s32.totalorder %s52, 1
      %p513 = por %p511, %p512
      %p514 = scmp.ne.s32.totalorder %s503, %s504
      %p515 = scmp.eq.s32.totalorder %s52, 0
      %p516 = por %p514, %p515
      %p517 = scmp.ne.s32.totalorder %s503, %s504
      %p518 = scmp.eq.s32.totalorder %s53, 1
      %p519 = por %p517, %p518
      %p521 = scmp.ne.s32.totalorder %s504, %s520
      %p522 = scmp.eq.s32.totalorder %s53, 0
      %p523 = por %p521, %p522
      %s524 = ssub.s32 %s47, %s54
      %p525 = scmp.eq.s32.totalorder %s524, 0
      %s527 = sadd.s32 %s526, 1
      %s528 = scalar_select %p525, %s526, %s527
      %p531 = pneg %p525
      %p532 = scmp.eq.s32.totalorder %s47, 1
      %p533 = por %p531, %p532
      %p534 = scmp.ne.s32.totalorder %s526, %s529
      %p535 = scmp.eq.s32.totalorder %s47, 0
      %p536 = por %p534, %p535
      %p537 = scmp.ne.s32.totalorder %s526, %s529
      %p538 = scmp.eq.s32.totalorder %s52, 1
      %p539 = por %p537, %p538
      %p540 = scmp.ne.s32.totalorder %s529, %s530
      %p541 = scmp.eq.s32.totalorder %s52, 0
      %p542 = por %p540, %p541
      %p543 = scmp.ne.s32.totalorder %s529, %s530
      %p544 = scmp.eq.s32.totalorder %s53, 1
      %p545 = por %p543, %p544
      %p547 = scmp.ne.s32.totalorder %s530, %s546
      %p548 = scmp.eq.s32.totalorder %s53, 0
      %p549 = por %p547, %p548
      %s550 = ssub.s32 %s47, %s54
      %p551 = scmp.eq.s32.totalorder %s550, 0
      %s553 = sadd.s32 %s552, 1
      %s554 = scalar_select %p551, %s552, %s553
      %p557 = pneg %p551
      %p558 = scmp.eq.s32.totalorder %s47, 1
      %p559 = por %p557, %p558
      %p560 = scmp.ne.s32.totalorder %s552, %s555
      %p561 = scmp.eq.s32.totalorder %s47, 0
      %p562 = por %p560, %p561
      %p563 = scmp.ne.s32.totalorder %s552, %s555
      %p564 = scmp.eq.s32.totalorder %s52, 1
      %p565 = por %p563, %p564
      %p566 = scmp.ne.s32.totalorder %s555, %s556
      %p567 = scmp.eq.s32.totalorder %s52, 0
      %p568 = por %p566, %p567
      %p569 = scmp.ne.s32.totalorder %s555, %s556
      %p570 = scmp.eq.s32.totalorder %s53, 1
      %p571 = por %p569, %p570
      %p573 = scmp.ne.s32.totalorder %s556, %s572
      %p574 = scmp.eq.s32.totalorder %s53, 0
      %p575 = por %p573, %p574
      %s576 = ssub.s32 %s47, %s54
      %p577 = scmp.eq.s32.totalorder %s576, 0
      %s579 = sadd.s32 %s578, 1
      %s580 = scalar_select %p577, %s578, %s579
      %p583 = pneg %p577
      %p584 = scmp.eq.s32.totalorder %s47, 1
      %p585 = por %p583, %p584
      %p586 = scmp.ne.s32.totalorder %s578, %s581
      %p587 = scmp.eq.s32.totalorder %s47, 0
      %p588 = por %p586, %p587
      %p589 = scmp.ne.s32.totalorder %s578, %s581
      %p590 = scmp.eq.s32.totalorder %s52, 1
      %p591 = por %p589, %p590
      %p592 = scmp.ne.s32.totalorder %s581, %s582
      %p593 = scmp.eq.s32.totalorder %s52, 0
      %p594 = por %p592, %p593
      %p595 = scmp.ne.s32.totalorder %s581, %s582
      %p596 = scmp.eq.s32.totalorder %s53, 1
      %p597 = por %p595, %p596
      %p599 = scmp.ne.s32.totalorder %s582, %s598
      %p600 = scmp.eq.s32.totalorder %s53, 0
      %p601 = por %p599, %p600
      %s602 = ssub.s32 %s47, %s54
      %p603 = scmp.eq.s32.totalorder %s602, 0
      %s605 = sadd.s32 %s604, 1
      %s606 = scalar_select %p603, %s604, %s605
      %p609 = pneg %p603
      %p610 = scmp.eq.s32.totalorder %s47, 1
      %p611 = por %p609, %p610
      %p612 = scmp.ne.s32.totalorder %s604, %s607
      %p613 = scmp.eq.s32.totalorder %s47, 0
      %p614 = por %p612, %p613
      %p615 = scmp.ne.s32.totalorder %s604, %s607
      %p616 = scmp.eq.s32.totalorder %s52, 1
      %p617 = por %p615, %p616
      %p618 = scmp.ne.s32.totalorder %s607, %s608
      %p619 = scmp.eq.s32.totalorder %s52, 0
      %p620 = por %p618, %p619
      %p621 = scmp.ne.s32.totalorder %s607, %s608
      %p622 = scmp.eq.s32.totalorder %s53, 1
      %p623 = por %p621, %p622
      %p625 = scmp.ne.s32.totalorder %s608, %s624
      %p626 = scmp.eq.s32.totalorder %s53, 0
      %p627 = por %p625, %p626
      %s628 = ssub.s32 %s47, %s54
      %p629 = scmp.eq.s32.totalorder %s628, 0
      %s631 = sadd.s32 %s630, 1
      %s632 = scalar_select %p629, %s630, %s631
      %p635 = pneg %p629
      %p636 = scmp.eq.s32.totalorder %s47, 1
      %p637 = por %p635, %p636
      %p638 = scmp.ne.s32.totalorder %s630, %s633
      %p639 = scmp.eq.s32.totalorder %s47, 0
      %p640 = por %p638, %p639
      %p641 = scmp.ne.s32.totalorder %s630, %s633
      %p642 = scmp.eq.s32.totalorder %s52, 1
      %p643 = por %p641, %p642
      %p644 = scmp.ne.s32.totalorder %s633, %s634
      %p645 = scmp.eq.s32.totalorder %s52, 0
      %p646 = por %p644, %p645
      %p647 = scmp.ne.s32.totalorder %s633, %s634
      %p648 = scmp.eq.s32.totalorder %s53, 1
      %p649 = por %p647, %p648
      %p651 = scmp.ne.s32.totalorder %s634, %s650
      %p652 = scmp.eq.s32.totalorder %s53, 0
      %p653 = por %p651, %p652
      %s655 = sadd.s32 %s654, 1
      %p658 = scmp.eq.s32.totalorder %s47, 1
      %p659 = scmp.ne.s32.totalorder %s654, %s656
      %p660 = scmp.eq.s32.totalorder %s47, 0
      %p661 = por %p659, %p660
      %p662 = scmp.ne.s32.totalorder %s654, %s656
      %p663 = scmp.eq.s32.totalorder %s52, 1
      %p664 = por %p662, %p663
      %p665 = scmp.ne.s32.totalorder %s656, %s657
      %p666 = scmp.eq.s32.totalorder %s52, 0
      %p667 = por %p665, %p666
      %p668 = scmp.ne.s32.totalorder %s656, %s657
      %p669 = scmp.eq.s32.totalorder %s53, 1
      %p670 = por %p668, %p669
      %p672 = scmp.ne.s32.totalorder %s657, %s671
      %p673 = scmp.eq.s32.totalorder %s53, 0
      %p674 = por %p672, %p673
      %s675 = ssub.s32 %s47, %s54
      %p676 = scmp.eq.s32.totalorder %s675, 0
      %s678 = sadd.s32 %s677, 1
      %s679 = scalar_select %p676, %s677, %s678
      %p682 = pneg %p676
      %p683 = scmp.eq.s32.totalorder %s47, 1
      %p684 = por %p682, %p683
      %p685 = scmp.ne.s32.totalorder %s677, %s680
      %p686 = scmp.eq.s32.totalorder %s47, 0
      %p687 = por %p685, %p686
      %p688 = scmp.ne.s32.totalorder %s677, %s680
      %p689 = scmp.eq.s32.totalorder %s52, 1
      %p690 = por %p688, %p689
      %p691 = scmp.ne.s32.totalorder %s680, %s681
      %p692 = scmp.eq.s32.totalorder %s52, 0
      %p693 = por %p691, %p692
      %p694 = scmp.ne.s32.totalorder %s680, %s681
      %p695 = scmp.eq.s32.totalorder %s53, 1
      %p696 = por %p694, %p695
      %p698 = scmp.ne.s32.totalorder %s681, %s697
      %p699 = scmp.eq.s32.totalorder %s53, 0
      %p700 = por %p698, %p699
      %p701 = scmp.le.s32.totalorder 1, %s47
      %p702 = scmp.lt.s32.totalorder %s47, 3
      %p703 = pnand %p701, %p702
      %p704 = pneg %p703
      // Predicated region
      $region9: #{tpu_custom_call.1} parent=5 // pred_check
        _
      $region10: #{tpu_custom_call.1} parent=5 // pred_check_branch
        %706 = sbr.rel (%p703) target = $region12
      $region11: #{tpu_custom_call.1} parent=5 // pred_region
        %s707 = ssub.s32 %s47, 1
        // Predicated region
        $region13: #{tpu_custom_call.1} parent=11 // pred_check
          %p708 = pneg %p68
        $region14: #{tpu_custom_call.1} parent=11 // pred_check_branch
          %710 = sbr.rel (%p708) target = $region16
        $region15: #{tpu_custom_call.1} parent=11 // pred_region
          _
        $region16: #{tpu_custom_call.1} parent=11 // pred_fallthru
          _
        // Predicated region
        $region17: #{tpu_custom_call.1} parent=11 // pred_check
          %p711 = pneg %p89
        $region18: #{tpu_custom_call.1} parent=11 // pred_check_branch
          %713 = sbr.rel (%p711) target = $region20
        $region19: #{tpu_custom_call.1} parent=11 // pred_region
          %715 = vsyncadd [#allocation4], 0
          %s716 = sshll.u32 %s1, 4
          %s717 = int_to_ptr.hbm [resolvable:$true] %s716
          %s718 = sshll.u32 [#allocation3], 4
          %s719 = int_to_ptr.vmem [resolvable:$true] %s718
          %724 = dma.hbm_to_vmem [thread:$0]  %s717, 256, %s719, [#allocation4], 128, 128, 8
        $region20: #{tpu_custom_call.1} parent=11 // pred_fallthru
          _
        // Predicated region
        $region21: #{tpu_custom_call.1} parent=11 // pred_check
          %p725 = pneg %p110
        $region22: #{tpu_custom_call.1} parent=11 // pred_check_branch
          %727 = sbr.rel (%p725) target = $region24
        $region23: #{tpu_custom_call.1} parent=11 // pred_region
          %729 = vsyncadd [#allocation7], 0
          %s730 = sshll.u32 %s2, 4
          %s731 = int_to_ptr.hbm [resolvable:$true] %s730
          %s732 = sshll.u32 [#allocation6], 4
          %s733 = int_to_ptr.vmem [resolvable:$true] %s732
          %738 = dma.hbm_to_vmem [thread:$0]  %s731, 512, %s733, [#allocation7], 128, 128, 8
        $region24: #{tpu_custom_call.1} parent=11 // pred_fallthru
          _
        // Predicated region
        $region25: #{tpu_custom_call.1} parent=11 // pred_check
          %p739 = pneg %p131
        $region26: #{tpu_custom_call.1} parent=11 // pred_check_branch
          %741 = sbr.rel (%p739) target = $region28
        $region27: #{tpu_custom_call.1} parent=11 // pred_region
          %743 = vsyncadd [#allocation7], 0
          %s744 = sshll.u32 %s3, 4
          %s745 = int_to_ptr.hbm [resolvable:$true] %s744
          %s746 = sshll.u32 [#allocation8], 4
          %s747 = int_to_ptr.vmem [resolvable:$true] %s746
          %752 = dma.hbm_to_vmem [thread:$0]  %s745, 512, %s747, [#allocation7], 128, 128, 8
        $region28: #{tpu_custom_call.1} parent=11 // pred_fallthru
          _
        // Predicated region
        $region29: #{tpu_custom_call.1} parent=11 // pred_check
          %p753 = pneg %p152
        $region30: #{tpu_custom_call.1} parent=11 // pred_check_branch
          %755 = sbr.rel (%p753) target = $region32
        $region31: #{tpu_custom_call.1} parent=11 // pred_region
          _
        $region32: #{tpu_custom_call.1} parent=11 // pred_fallthru
          _
      $region12: #{tpu_custom_call.1} parent=5 // pred_fallthru
        _
      %p756 = scmp.lt.s32.totalorder %s47, 2
      // Predicated region
      $region33: #{tpu_custom_call.1} parent=5 // pred_check
        %p757 = pneg %p756
      $region34: #{tpu_custom_call.1} parent=5 // pred_check_branch
        %759 = sbr.rel (%p757) target = $region36
      $region35: #{tpu_custom_call.1} parent=5 // pred_region
        // Predicated region
        $region37: #{tpu_custom_call.1} parent=35 // pred_check
          %p760 = pneg %p172
        $region38: #{tpu_custom_call.1} parent=35 // pred_check_branch
          %762 = sbr.rel (%p760) target = $region40
        $region39: #{tpu_custom_call.1} parent=35 // pred_region
          %p763 = scmp.lt.s32.totalorder %s47, 1
          %s764 = scalar_select %p763, %s47, 1
          %s765 = smul.addr %s764, 4
          %s766 = smul.addr %s765, 8
          %s767 = scalar_lea.vmem %s5, %s766
        $region40: #{tpu_custom_call.1} parent=35 // pred_fallthru
          _
        // Predicated region
        $region41: #{tpu_custom_call.1} parent=35 // pred_check
          %p768 = pneg %p198
        $region42: #{tpu_custom_call.1} parent=35 // pred_check_branch
          %770 = sbr.rel (%p768) target = $region44
        $region43: #{tpu_custom_call.1} parent=35 // pred_region
          %p771 = scmp.lt.s32.totalorder %s47, 1
          %s772 = scalar_select %p771, %s47, 1
          %s773 = scalar_lea.vmem %s6, %s772
        $region44: #{tpu_custom_call.1} parent=35 // pred_fallthru
          _
        // Predicated region
        $region45: #{tpu_custom_call.1} parent=35 // pred_check
          %p774 = pneg %p224
        $region46: #{tpu_custom_call.1} parent=35 // pred_check_branch
          %776 = sbr.rel (%p774) target = $region48
        $region47: #{tpu_custom_call.1} parent=35 // pred_region
          %p777 = scmp.lt.s32.totalorder %s47, 1
          %s778 = scalar_select %p777, %s47, 1
          %s779 = smul.addr %s778, 4
          %s780 = smul.addr %s779, 8
          %s781 = scalar_lea.vmem %s7, %s780
        $region48: #{tpu_custom_call.1} parent=35 // pred_fallthru
          _
        // Predicated region
        $region49: #{tpu_custom_call.1} parent=35 // pred_check
          %p782 = pneg %p250
        $region50: #{tpu_custom_call.1} parent=35 // pred_check_branch
          %784 = sbr.rel (%p782) target = $region52
        $region51: #{tpu_custom_call.1} parent=35 // pred_region
          %p785 = scmp.lt.s32.totalorder %s47, 1
          %s786 = scalar_select %p785, %s47, 1
          %s787 = scalar_lea.vmem %s8, %s786
        $region52: #{tpu_custom_call.1} parent=35 // pred_fallthru
          _
        // Predicated region
        $region53: #{tpu_custom_call.1} parent=35 // pred_check
          %p788 = pneg %p276
        $region54: #{tpu_custom_call.1} parent=35 // pred_check_branch
          %790 = sbr.rel (%p788) target = $region56
        $region55: #{tpu_custom_call.1} parent=35 // pred_region
          %p791 = scmp.lt.s32.totalorder %s47, 1
          %s792 = scalar_select %p791, %s47, 1
          %s793 = smul.addr %s792, 4
          %s794 = smul.addr %s793, 8
          %s795 = scalar_lea.vmem %s9, %s794
        $region56: #{tpu_custom_call.1} parent=35 // pred_fallthru
          _
        // Predicated region
        $region57: #{tpu_custom_call.1} parent=35 // pred_check
          %p796 = pneg %p302
        $region58: #{tpu_custom_call.1} parent=35 // pred_check_branch
          %798 = sbr.rel (%p796) target = $region60
        $region59: #{tpu_custom_call.1} parent=35 // pred_region
          %p799 = scmp.lt.s32.totalorder %s47, 1
          %s800 = scalar_select %p799, %s47, 1
          %s801 = scalar_lea.vmem %s10, %s800
        $region60: #{tpu_custom_call.1} parent=35 // pred_fallthru
          _
        // Predicated region
        $region61: #{tpu_custom_call.1} parent=35 // pred_check
          %p802 = pneg %p328
        $region62: #{tpu_custom_call.1} parent=35 // pred_check_branch
          %804 = sbr.rel (%p802) target = $region64
        $region63: #{tpu_custom_call.1} parent=35 // pred_region
          %s805 = sand.u32 %s47, 1
          %s806 = scalar_lea.sflag [#allocation10], %s805
          %s807 = sand.u32 %s318, 1
          %s808 = smul.addr %s807, 32
          %s809 = scalar_lea.vmem [#allocation9], %s808
          %811 = vsyncadd %s806, 0
          %s812 = smul.addr %s47, 4
          %s813 = smul.addr %s812, 8
          %s814 = scalar_lea.hbm %s11, %s813
          %s815 = sshll.u32 %s814, 4
          %s816 = int_to_ptr.hbm [resolvable:$true] %s815
          %s817 = sshll.u32 %s809, 4
          %s818 = int_to_ptr.vmem [resolvable:$true] %s817
          %823 = dma.hbm_to_vmem [thread:$0]  %s816, 512, %s818, %s806, 128, 128, 8
        $region64: #{tpu_custom_call.1} parent=35 // pred_fallthru
          _
        // Predicated region
        $region65: #{tpu_custom_call.1} parent=35 // pred_check
          %p824 = pneg %p354
        $region66: #{tpu_custom_call.1} parent=35 // pred_check_branch
          %826 = sbr.rel (%p824) target = $region68
        $region67: #{tpu_custom_call.1} parent=35 // pred_region
          %p827 = scmp.lt.s32.totalorder %s47, 1
          %s828 = scalar_select %p827, %s47, 1
          %s829 = scalar_lea.vmem %s12, %s828
        $region68: #{tpu_custom_call.1} parent=35 // pred_fallthru
          _
        // Predicated region
        $region69: #{tpu_custom_call.1} parent=35 // pred_check
          %p830 = pneg %p380
        $region70: #{tpu_custom_call.1} parent=35 // pred_check_branch
          %832 = sbr.rel (%p830) target = $region72
        $region71: #{tpu_custom_call.1} parent=35 // pred_region
          %s833 = sand.u32 %s47, 1
          %s834 = scalar_lea.sflag [#allocation10], %s833
          %s835 = sand.u32 %s370, 1
          %s836 = smul.addr %s835, 32
          %s837 = scalar_lea.vmem [#allocation11], %s836
          %839 = vsyncadd %s834, 0
          %s840 = smul.addr %s47, 4
          %s841 = smul.addr %s840, 8
          %s842 = scalar_lea.hbm %s13, %s841
          %s843 = sshll.u32 %s842, 4
          %s844 = int_to_ptr.hbm [resolvable:$true] %s843
          %s845 = sshll.u32 %s837, 4
          %s846 = int_to_ptr.vmem [resolvable:$true] %s845
          %851 = dma.hbm_to_vmem [thread:$0]  %s844, 512, %s846, %s834, 128, 128, 8
        $region72: #{tpu_custom_call.1} parent=35 // pred_fallthru
          _
        // Predicated region
        $region73: #{tpu_custom_call.1} parent=35 // pred_check
          %p852 = pneg %p406
        $region74: #{tpu_custom_call.1} parent=35 // pred_check_branch
          %854 = sbr.rel (%p852) target = $region76
        $region75: #{tpu_custom_call.1} parent=35 // pred_region
          %p855 = scmp.lt.s32.totalorder %s47, 1
          %s856 = scalar_select %p855, %s47, 1
          %s857 = scalar_lea.vmem %s14, %s856
        $region76: #{tpu_custom_call.1} parent=35 // pred_fallthru
          _
        // Predicated region
        $region77: #{tpu_custom_call.1} parent=35 // pred_check
          %p858 = pneg %p432
        $region78: #{tpu_custom_call.1} parent=35 // pred_check_branch
          %860 = sbr.rel (%p858) target = $region80
        $region79: #{tpu_custom_call.1} parent=35 // pred_region
          %s861 = sand.u32 %s47, 1
          %s862 = scalar_lea.sflag [#allocation13], %s861
          %s863 = sand.u32 %s422, 1
          %s864 = smul.addr %s863, 32
          %s865 = scalar_lea.vmem [#allocation12], %s864
          %867 = vsyncadd %s862, 0
          %s868 = smul.addr %s47, 4
          %s869 = smul.addr %s868, 8
          %s870 = scalar_lea.hbm %s15, %s869
          %s871 = sshll.u32 %s870, 4
          %s872 = int_to_ptr.hbm [resolvable:$true] %s871
          %s873 = sshll.u32 %s865, 4
          %s874 = int_to_ptr.vmem [resolvable:$true] %s873
          %879 = dma.hbm_to_vmem [thread:$0]  %s872, 512, %s874, %s862, 128, 128, 8
        $region80: #{tpu_custom_call.1} parent=35 // pred_fallthru
          _
        // Predicated region
        $region81: #{tpu_custom_call.1} parent=35 // pred_check
          %p880 = pneg %p458
        $region82: #{tpu_custom_call.1} parent=35 // pred_check_branch
          %882 = sbr.rel (%p880) target = $region84
        $region83: #{tpu_custom_call.1} parent=35 // pred_region
          %p883 = scmp.lt.s32.totalorder %s47, 1
          %s884 = scalar_select %p883, %s47, 1
          %s885 = scalar_lea.vmem %s16, %s884
        $region84: #{tpu_custom_call.1} parent=35 // pred_fallthru
          _
        // Predicated region
        $region85: #{tpu_custom_call.1} parent=35 // pred_check
          %p886 = pneg %p484
        $region86: #{tpu_custom_call.1} parent=35 // pred_check_branch
          %888 = sbr.rel (%p886) target = $region88
        $region87: #{tpu_custom_call.1} parent=35 // pred_region
          %s889 = sand.u32 %s47, 1
          %s890 = scalar_lea.sflag [#allocation13], %s889
          %s891 = sand.u32 %s474, 1
          %s892 = smul.addr %s891, 32
          %s893 = scalar_lea.vmem [#allocation14], %s892
          %895 = vsyncadd %s890, 0
          %s896 = smul.addr %s47, 4
          %s897 = smul.addr %s896, 8
          %s898 = scalar_lea.hbm %s17, %s897
          %s899 = sshll.u32 %s898, 4
          %s900 = int_to_ptr.hbm [resolvable:$true] %s899
          %s901 = sshll.u32 %s893, 4
          %s902 = int_to_ptr.vmem [resolvable:$true] %s901
          %907 = dma.hbm_to_vmem [thread:$0]  %s900, 512, %s902, %s890, 128, 128, 8
        $region88: #{tpu_custom_call.1} parent=35 // pred_fallthru
          _
        // Predicated region
        $region89: #{tpu_custom_call.1} parent=35 // pred_check
          %p908 = pneg %p510
        $region90: #{tpu_custom_call.1} parent=35 // pred_check_branch
          %910 = sbr.rel (%p908) target = $region92
        $region91: #{tpu_custom_call.1} parent=35 // pred_region
          %p911 = scmp.lt.s32.totalorder %s47, 1
          %s912 = scalar_select %p911, %s47, 1
          %s913 = scalar_lea.vmem %s18, %s912
        $region92: #{tpu_custom_call.1} parent=35 // pred_fallthru
          _
        // Predicated region
        $region93: #{tpu_custom_call.1} parent=35 // pred_check
          %p914 = pneg %p536
        $region94: #{tpu_custom_call.1} parent=35 // pred_check_branch
          %916 = sbr.rel (%p914) target = $region96
        $region95: #{tpu_custom_call.1} parent=35 // pred_region
          %s917 = sand.u32 %s526, 1
          %s918 = scalar_lea.sflag [#allocation16], %s917
          %s919 = sand.u32 %s526, 1
          %s920 = smul.addr %s919, 32
          %s921 = scalar_lea.vmem [#allocation15], %s920
          %923 = vsyncadd %s918, 0
          %s924 = smul.addr %s47, 4
          %s925 = smul.addr %s924, 8
          %s926 = scalar_lea.hbm %s19, %s925
          %s927 = sshll.u32 %s926, 4
          %s928 = int_to_ptr.hbm [resolvable:$true] %s927
          %s929 = sshll.u32 %s921, 4
          %s930 = int_to_ptr.vmem [resolvable:$true] %s929
          %935 = dma.hbm_to_vmem [thread:$0]  %s928, 512, %s930, %s918, 128, 128, 8
        $region96: #{tpu_custom_call.1} parent=35 // pred_fallthru
          _
        // Predicated region
        $region97: #{tpu_custom_call.1} parent=35 // pred_check
          %p936 = pneg %p562
        $region98: #{tpu_custom_call.1} parent=35 // pred_check_branch
          %938 = sbr.rel (%p936) target = $region100
        $region99: #{tpu_custom_call.1} parent=35 // pred_region
          %p939 = scmp.lt.s32.totalorder %s47, 1
          %s940 = scalar_select %p939, %s47, 1
          %s941 = scalar_lea.vmem %s20, %s940
        $region100: #{tpu_custom_call.1} parent=35 // pred_fallthru
          _
        // Predicated region
        $region101: #{tpu_custom_call.1} parent=35 // pred_check
          %p942 = pneg %p588
        $region102: #{tpu_custom_call.1} parent=35 // pred_check_branch
          %944 = sbr.rel (%p942) target = $region104
        $region103: #{tpu_custom_call.1} parent=35 // pred_region
          %p945 = scmp.lt.s32.totalorder %s47, 1
          %s946 = scalar_select %p945, %s47, 1
          %s947 = smul.addr %s946, 8
          %s948 = smul.addr %s947, 8
          %s949 = scalar_lea.vmem %s21, %s948
        $region104: #{tpu_custom_call.1} parent=35 // pred_fallthru
          _
        // Predicated region
        $region105: #{tpu_custom_call.1} parent=35 // pred_check
          %p950 = pneg %p614
        $region106: #{tpu_custom_call.1} parent=35 // pred_check_branch
          %952 = sbr.rel (%p950) target = $region108
        $region107: #{tpu_custom_call.1} parent=35 // pred_region
          %p953 = scmp.lt.s32.totalorder %s47, 1
          %s954 = scalar_select %p953, %s47, 1
          %s955 = scalar_lea.vmem %s22, %s954
        $region108: #{tpu_custom_call.1} parent=35 // pred_fallthru
          _
        // Predicated region
        $region109: #{tpu_custom_call.1} parent=35 // pred_check
          %p956 = pneg %p640
        $region110: #{tpu_custom_call.1} parent=35 // pred_check_branch
          %958 = sbr.rel (%p956) target = $region112
        $region111: #{tpu_custom_call.1} parent=35 // pred_region
          %p959 = scmp.lt.s32.totalorder %s47, 1
          %s960 = scalar_select %p959, %s47, 1
          %s961 = smul.addr %s960, 8
          %s962 = scalar_lea.vmem %s23, %s961
        $region112: #{tpu_custom_call.1} parent=35 // pred_fallthru
          _
      $region36: #{tpu_custom_call.1} parent=5 // pred_fallthru
        _
      %p963 = scmp.le.s32.totalorder 1, %s47
      %p964 = scmp.lt.s32.totalorder %s47, 3
      %p965 = pnand %p963, %p964
      %p966 = pneg %p965
      // Predicated region
      $region113: #{tpu_custom_call.1} parent=5 // pred_check
        _
      $region114: #{tpu_custom_call.1} parent=5 // pred_check_branch
        %968 = sbr.rel (%p965) target = $region116
      $region115: #{tpu_custom_call.1} parent=5 // pred_region
        %s969 = ssub.s32 %s47, 1
        // Predicated region
        $region117: #{tpu_custom_call.1} parent=115 // pred_check
          %p970 = pneg %p89
        $region118: #{tpu_custom_call.1} parent=115 // pred_check_branch
          %972 = sbr.rel (%p970) target = $region120
        $region119: #{tpu_custom_call.1} parent=115 // pred_region
          %974 = dma.done [#allocation4], 256
        $region120: #{tpu_custom_call.1} parent=115 // pred_fallthru
          _
        // Predicated region
        $region121: #{tpu_custom_call.1} parent=115 // pred_check
          %p975 = pneg %p110
        $region122: #{tpu_custom_call.1} parent=115 // pred_check_branch
          %977 = sbr.rel (%p975) target = $region124
        $region123: #{tpu_custom_call.1} parent=115 // pred_region
          %979 = dma.done [#allocation7], 512
        $region124: #{tpu_custom_call.1} parent=115 // pred_fallthru
          _
        // Predicated region
        $region125: #{tpu_custom_call.1} parent=115 // pred_check
          %p980 = pneg %p131
        $region126: #{tpu_custom_call.1} parent=115 // pred_check_branch
          %982 = sbr.rel (%p980) target = $region128
        $region127: #{tpu_custom_call.1} parent=115 // pred_region
          %984 = dma.done [#allocation7], 512
        $region128: #{tpu_custom_call.1} parent=115 // pred_fallthru
          _
        %s985 = sand.u32 %s52, 1
        %s986 = scalar_lea.sflag [#allocation10], %s985
        %s987 = sand.u32 %s321, 1
        %s988 = smul.addr %s987, 32
        %s989 = scalar_lea.vmem [#allocation9], %s988
        // Predicated region
        $region129: #{tpu_custom_call.1} parent=115 // pred_check
          %p990 = pneg %p334
        $region130: #{tpu_custom_call.1} parent=115 // pred_check_branch
          %992 = sbr.rel (%p990) target = $region132
        $region131: #{tpu_custom_call.1} parent=115 // pred_region
          %994 = dma.done %s986, 512
        $region132: #{tpu_custom_call.1} parent=115 // pred_fallthru
          _
        %s995 = sand.u32 %s52, 1
        %s996 = scalar_lea.sflag [#allocation10], %s995
        %s997 = sand.u32 %s373, 1
        %s998 = smul.addr %s997, 32
        %s999 = scalar_lea.vmem [#allocation11], %s998
        // Predicated region
        $region133: #{tpu_custom_call.1} parent=115 // pred_check
          %p1000 = pneg %p386
        $region134: #{tpu_custom_call.1} parent=115 // pred_check_branch
          %1002 = sbr.rel (%p1000) target = $region136
        $region135: #{tpu_custom_call.1} parent=115 // pred_region
          %1004 = dma.done %s996, 512
        $region136: #{tpu_custom_call.1} parent=115 // pred_fallthru
          _
        %s1005 = sand.u32 %s52, 1
        %s1006 = scalar_lea.sflag [#allocation13], %s1005
        %s1007 = sand.u32 %s425, 1
        %s1008 = smul.addr %s1007, 32
        %s1009 = scalar_lea.vmem [#allocation12], %s1008
        // Predicated region
        $region137: #{tpu_custom_call.1} parent=115 // pred_check
          %p1010 = pneg %p438
        $region138: #{tpu_custom_call.1} parent=115 // pred_check_branch
          %1012 = sbr.rel (%p1010) target = $region140
        $region139: #{tpu_custom_call.1} parent=115 // pred_region
          %1014 = dma.done %s1006, 512
        $region140: #{tpu_custom_call.1} parent=115 // pred_fallthru
          _
        %s1015 = sand.u32 %s52, 1
        %s1016 = scalar_lea.sflag [#allocation13], %s1015
        %s1017 = sand.u32 %s477, 1
        %s1018 = smul.addr %s1017, 32
        %s1019 = scalar_lea.vmem [#allocation14], %s1018
        // Predicated region
        $region141: #{tpu_custom_call.1} parent=115 // pred_check
          %p1020 = pneg %p490
        $region142: #{tpu_custom_call.1} parent=115 // pred_check_branch
          %1022 = sbr.rel (%p1020) target = $region144
        $region143: #{tpu_custom_call.1} parent=115 // pred_region
          %1024 = dma.done %s1016, 512
        $region144: #{tpu_custom_call.1} parent=115 // pred_fallthru
          _
        %s1025 = sand.u32 %s529, 1
        %s1026 = scalar_lea.sflag [#allocation16], %s1025
        %s1027 = sand.u32 %s529, 1
        %s1028 = smul.addr %s1027, 32
        %s1029 = scalar_lea.vmem [#allocation15], %s1028
        // Predicated region
        $region145: #{tpu_custom_call.1} parent=115 // pred_check
          %p1030 = pneg %p542
        $region146: #{tpu_custom_call.1} parent=115 // pred_check_branch
          %1032 = sbr.rel (%p1030) target = $region148
        $region147: #{tpu_custom_call.1} parent=115 // pred_region
          %1034 = dma.done %s1026, 512
        $region148: #{tpu_custom_call.1} parent=115 // pred_fallthru
          _
        %p1035 = pneg %p68
        %p1036 = pneg %p65
        %p1037 = pneg %p89
        %p1038 = pneg %p86
        %p1039 = pneg %p110
        %p1040 = pneg %p107
        %p1041 = pneg %p131
        %p1042 = pneg %p128
        %p1043 = pneg %p152
        %p1044 = pneg %p149
        %p1045 = scmp.lt.s32.totalorder %s52, 1
        %s1046 = scalar_select %p1045, %s52, 1
        %s1047 = smul.addr %s1046, 4
        %s1048 = smul.addr %s1047, 8
        %s1049 = scalar_lea.vmem %s5, %s1048
        %p1050 = pneg %p178
        %p1051 = pneg %p175
        %p1052 = scmp.lt.s32.totalorder %s52, 1
        %s1053 = scalar_select %p1052, %s52, 1
        %s1054 = scalar_lea.vmem %s6, %s1053
        %p1055 = pneg %p204
        %p1056 = pneg %p201
        %p1057 = scmp.lt.s32.totalorder %s52, 1
        %s1058 = scalar_select %p1057, %s52, 1
        %s1059 = smul.addr %s1058, 4
        %s1060 = smul.addr %s1059, 8
        %s1061 = scalar_lea.vmem %s7, %s1060
        %p1062 = pneg %p230
        %p1063 = pneg %p227
        %p1064 = scmp.lt.s32.totalorder %s52, 1
        %s1065 = scalar_select %p1064, %s52, 1
        %s1066 = scalar_lea.vmem %s8, %s1065
        %p1067 = pneg %p256
        %p1068 = pneg %p253
        %p1069 = scmp.lt.s32.totalorder %s52, 1
        %s1070 = scalar_select %p1069, %s52, 1
        %s1071 = smul.addr %s1070, 4
        %s1072 = smul.addr %s1071, 8
        %s1073 = scalar_lea.vmem %s9, %s1072
        %p1074 = pneg %p282
        %p1075 = pneg %p279
        %p1076 = scmp.lt.s32.totalorder %s52, 1
        %s1077 = scalar_select %p1076, %s52, 1
        %s1078 = scalar_lea.vmem %s10, %s1077
        %p1079 = pneg %p308
        %p1080 = pneg %p305
        %s1081 = sand.u32 %s52, 1
        %s1082 = scalar_lea.sflag [#allocation10], %s1081
        %s1083 = sand.u32 %s321, 1
        %s1084 = smul.addr %s1083, 32
        %s1085 = scalar_lea.vmem [#allocation9], %s1084
        %p1086 = pneg %p334
        %p1087 = pneg %p331
        %p1088 = scmp.lt.s32.totalorder %s52, 1
        %s1089 = scalar_select %p1088, %s52, 1
        %s1090 = scalar_lea.vmem %s12, %s1089
        %p1091 = pneg %p360
        %p1092 = pneg %p357
        %s1093 = sand.u32 %s52, 1
        %s1094 = scalar_lea.sflag [#allocation10], %s1093
        %s1095 = sand.u32 %s373, 1
        %s1096 = smul.addr %s1095, 32
        %s1097 = scalar_lea.vmem [#allocation11], %s1096
        %p1098 = pneg %p386
        %p1099 = pneg %p383
        %p1100 = scmp.lt.s32.totalorder %s52, 1
        %s1101 = scalar_select %p1100, %s52, 1
        %s1102 = scalar_lea.vmem %s14, %s1101
        %p1103 = pneg %p412
        %p1104 = pneg %p409
        %s1105 = sand.u32 %s52, 1
        %s1106 = scalar_lea.sflag [#allocation13], %s1105
        %s1107 = sand.u32 %s425, 1
        %s1108 = smul.addr %s1107, 32
        %s1109 = scalar_lea.vmem [#allocation12], %s1108
        %p1110 = pneg %p438
        %p1111 = pneg %p435
        %p1112 = scmp.lt.s32.totalorder %s52, 1
        %s1113 = scalar_select %p1112, %s52, 1
        %s1114 = scalar_lea.vmem %s16, %s1113
        %p1115 = pneg %p464
        %p1116 = pneg %p461
        %s1117 = sand.u32 %s52, 1
        %s1118 = scalar_lea.sflag [#allocation13], %s1117
        %s1119 = sand.u32 %s477, 1
        %s1120 = smul.addr %s1119, 32
        %s1121 = scalar_lea.vmem [#allocation14], %s1120
        %p1122 = pneg %p490
        %p1123 = pneg %p487
        %p1124 = scmp.lt.s32.totalorder %s52, 1
        %s1125 = scalar_select %p1124, %s52, 1
        %s1126 = scalar_lea.vmem %s18, %s1125
        %p1127 = pneg %p516
        %p1128 = pneg %p513
        %s1129 = sand.u32 %s529, 1
        %s1130 = scalar_lea.sflag [#allocation16], %s1129
        %s1131 = sand.u32 %s529, 1
        %s1132 = smul.addr %s1131, 32
        %s1133 = scalar_lea.vmem [#allocation15], %s1132
        %p1134 = pneg %p542
        %p1135 = pneg %p539
        %p1136 = scmp.lt.s32.totalorder %s52, 1
        %s1137 = scalar_select %p1136, %s52, 1
        %s1138 = scalar_lea.vmem %s20, %s1137
        %p1139 = pneg %p568
        %p1140 = pneg %p565
        %p1141 = scmp.lt.s32.totalorder %s52, 1
        %s1142 = scalar_select %p1141, %s52, 1
        %s1143 = smul.addr %s1142, 8
        %s1144 = smul.addr %s1143, 8
        %s1145 = scalar_lea.vmem %s21, %s1144
        %p1146 = pneg %p594
        %p1147 = pneg %p591
        %p1148 = scmp.lt.s32.totalorder %s52, 1
        %s1149 = scalar_select %p1148, %s52, 1
        %s1150 = scalar_lea.vmem %s22, %s1149
        %p1151 = pneg %p620
        %p1152 = pneg %p617
        %p1153 = scmp.lt.s32.totalorder %s52, 1
        %s1154 = scalar_select %p1153, %s52, 1
        %s1155 = smul.addr %s1154, 8
        %s1156 = scalar_lea.vmem %s23, %s1155
        %p1157 = pneg %p646
        %p1158 = pneg %p643
        %p1159 = pneg %p667
        %p1160 = pneg %p664
        %p1161 = pneg %p693
        %p1162 = pneg %p690
        %s1163 = sand.u32 %s680, 1
        %s1164 = scalar_lea.sflag [#allocation19], %s1163
        %s1165 = sand.u32 %s680, 1
        %s1166 = smul.addr %s1165, 16
        %s1167 = scalar_lea.vmem [#allocation18], %s1166
        %p1168 = scmp.lt.s32.totalorder %s52, 1
        %s1169 = scalar_select %p1168, %s52, 1
        %s1170 = smul.addr %s1169, 4
        %s1171 = smul.addr %s1170, 8
        %s1172 = scalar_lea.vmem %s5, %s1171
        %p1173 = scmp.lt.s32.totalorder %s52, 1
        %s1174 = scalar_select %p1173, %s52, 1
        %s1175 = scalar_lea.vmem %s6, %s1174
        %p1176 = scmp.lt.s32.totalorder %s52, 1
        %s1177 = scalar_select %p1176, %s52, 1
        %s1178 = smul.addr %s1177, 4
        %s1179 = smul.addr %s1178, 8
        %s1180 = scalar_lea.vmem %s7, %s1179
        %p1181 = scmp.lt.s32.totalorder %s52, 1
        %s1182 = scalar_select %p1181, %s52, 1
        %s1183 = scalar_lea.vmem %s8, %s1182
        %p1184 = scmp.lt.s32.totalorder %s52, 1
        %s1185 = scalar_select %p1184, %s52, 1
        %s1186 = smul.addr %s1185, 4
        %s1187 = smul.addr %s1186, 8
        %s1188 = scalar_lea.vmem %s9, %s1187
        %p1189 = scmp.lt.s32.totalorder %s52, 1
        %s1190 = scalar_select %p1189, %s52, 1
        %s1191 = scalar_lea.vmem %s10, %s1190
        %p1192 = scmp.lt.s32.totalorder %s52, 1
        %s1193 = scalar_select %p1192, %s52, 1
        %s1194 = scalar_lea.vmem %s12, %s1193
        %p1195 = scmp.lt.s32.totalorder %s52, 1
        %s1196 = scalar_select %p1195, %s52, 1
        %s1197 = scalar_lea.vmem %s14, %s1196
        %p1198 = scmp.lt.s32.totalorder %s52, 1
        %s1199 = scalar_select %p1198, %s52, 1
        %s1200 = scalar_lea.vmem %s16, %s1199
        %p1201 = scmp.lt.s32.totalorder %s52, 1
        %s1202 = scalar_select %p1201, %s52, 1
        %s1203 = scalar_lea.vmem %s18, %s1202
        %p1204 = scmp.lt.s32.totalorder %s52, 1
        %s1205 = scalar_select %p1204, %s52, 1
        %s1206 = scalar_lea.vmem %s20, %s1205
        %p1207 = scmp.lt.s32.totalorder %s52, 1
        %s1208 = scalar_select %p1207, %s52, 1
        %s1209 = smul.addr %s1208, 8
        %s1210 = smul.addr %s1209, 8
        %s1211 = scalar_lea.vmem %s21, %s1210
        %p1212 = scmp.lt.s32.totalorder %s52, 1
        %s1213 = scalar_select %p1212, %s52, 1
        %s1214 = scalar_lea.vmem %s22, %s1213
        %p1215 = scmp.lt.s32.totalorder %s52, 1
        %s1216 = scalar_select %p1215, %s52, 1
        %s1217 = smul.addr %s1216, 8
        %s1218 = scalar_lea.vmem %s23, %s1217
        %p1219 = scmp.eq.s32.totalorder %s52, 0
        // Predicated region
        $region149: #{tpu_custom_call.1} parent=115 // pred_check
          %p1220 = pneg %p1219
        $region150: #{tpu_custom_call.1} parent=115 // pred_check_branch
          %1222 = sbr.rel (%p1220) target = $region152
        $region151: #{tpu_custom_call.1} parent=115 // pred_region
          %v1223 = vld [vmem:[%s0] sm:$0xff]
          %v1224 = vld [vmem:[%s0 + $0x8] sm:$0xff]
          %vm1225 = vcmask 261120
          %1226 = vst.msk [vmem:[#allocation2] sm:$0xff] %vm1225, %v1223
          %1227 = vst.msk [vmem:[#allocation2 + $0x8] sm:$0xff] %vm1225, %v1224
        $region152: #{tpu_custom_call.1} parent=115 // pred_fallthru
          _
        %v1228 = vld [vmem:[#allocation2] sm:$0xff]
        %v1229 = vld [vmem:[#allocation2 + $0x8] sm:$0xff]
        %v1230 = vld [vmem:[#allocation3] sm:$0xff]
        %v1231 = vld [vmem:[#allocation3 + $0x8] sm:$0xff]
        %v1232 = vld [vmem:[#allocation6] sm:$0xff]
        %v1233 = vld [vmem:[#allocation6 + $0x8] sm:$0xff]
        %v1234 = vld [vmem:[#allocation6 + $0x10] sm:$0xff]
        %v1235 = vld [vmem:[#allocation6 + $0x18] sm:$0xff]
        %v1236 = vld [vmem:[#allocation8] sm:$0xff]
        %v1237 = vld [vmem:[#allocation8 + $0x8] sm:$0xff]
        %v1238 = vld [vmem:[#allocation8 + $0x10] sm:$0xff]
        %v1239 = vld [vmem:[#allocation8 + $0x18] sm:$0xff]
        %v1240 = vld [vmem:[%s1218] sm:$0x3f]
        %v1241 = vadd.f32 %v1228, %v1230
        %v1242 = vadd.f32 %v1229, %v1231
        %v1243 = vld [vmem:[%s1172] sm:$0xff]
        %v1244 = vld [vmem:[%s1172 + $0x8] sm:$0xff]
        %v1245 = vld [vmem:[%s1172 + $0x10] sm:$0xff]
        %v1246 = vld [vmem:[%s1172 + $0x18] sm:$0xff]
        %v1247 = vld [vmem:[%s1175] sm:$0x1]
        %v1249 = vperm.slane %v1247, 0
        %vm1251 = vcmask 261120
        %v1253 = vsel %vm1251, %v1241, 0
        %v1256 = vsel %vm1251, %v1242, 0
        %1258 = vmatpush.msra.mxu0 0.0
        %1259 = vmatpush.msra.mxu0 0.0
        %1260 = vmatpush.msra.mxu0 0.0
        %1261 = vmatpush.msra.mxu0 0.0
        %1262 = vmatpush.msra.mxu0 0.0
        %1263 = vmatpush.msra.mxu0 0.0
        %1264 = vmatpush.msra.mxu0 0.0
        %1265 = vmatpush.msra.mxu0 0.0
        %1266 = vmatpush.msra.mxu0 0.0
        %1267 = vmatpush.msra.mxu0 0.0
        %1268 = vmatpush.msra.mxu0 0.0
        %1269 = vmatpush.msra.mxu0 0.0
        %1270 = vmatpush.msra.mxu0 %v1246
        %1271 = vmatpush.msra.mxu0 %v1245
        %1272 = vmatpush.msra.mxu0 %v1244
        %1273 = vmatpush.msra.mxu0 %v1243
        %1274 = vmatmul.f32.gmra.mxu0 %v1253
        %v1275 = vpop.f32.mrf.mxu0
        %v1276 = vadd.f32 %v1249, %v1275
        %1277 = vmatmul.f32.gmra.mxu0 %v1256
        %v1278 = vpop.f32.mrf.mxu0
        %v1279 = vadd.f32 %v1249, %v1278
        %1280 = vdwg.mxu0
        %v1281 = vld [vmem:[%s1180] sm:$0xff]
        %v1282 = vld [vmem:[%s1180 + $0x8] sm:$0xff]
        %v1283 = vld [vmem:[%s1180 + $0x10] sm:$0xff]
        %v1284 = vld [vmem:[%s1180 + $0x18] sm:$0xff]
        %v1285 = vld [vmem:[%s1183] sm:$0x1]
        %v1287 = vperm.slane %v1285, 0
        %v1290 = vsel %vm1251, %v1228, 0
        %v1293 = vsel %vm1251, %v1229, 0
        %1295 = vmatpush.msra.mxu0 0.0
        %1296 = vmatpush.msra.mxu0 0.0
        %1297 = vmatpush.msra.mxu0 0.0
        %1298 = vmatpush.msra.mxu0 0.0
        %1299 = vmatpush.msra.mxu0 0.0
        %1300 = vmatpush.msra.mxu0 0.0
        %1301 = vmatpush.msra.mxu0 0.0
        %1302 = vmatpush.msra.mxu0 0.0
        %1303 = vmatpush.msra.mxu0 0.0
        %1304 = vmatpush.msra.mxu0 0.0
        %1305 = vmatpush.msra.mxu0 0.0
        %1306 = vmatpush.msra.mxu0 0.0
        %1307 = vmatpush.msra.mxu0 %v1284
        %1308 = vmatpush.msra.mxu0 %v1283
        %1309 = vmatpush.msra.mxu0 %v1282
        %1310 = vmatpush.msra.mxu0 %v1281
        %1311 = vmatmul.f32.gmra.mxu0 %v1290
        %v1312 = vpop.f32.mrf.mxu0
        %v1313 = vadd.f32 %v1287, %v1312
        %1314 = vmatmul.f32.gmra.mxu0 %v1293
        %v1315 = vpop.f32.mrf.mxu0
        %v1316 = vadd.f32 %v1287, %v1315
        %1317 = vdwg.mxu0
        %v1318 = vld [vmem:[%s1188] sm:$0xff]
        %v1319 = vld [vmem:[%s1188 + $0x8] sm:$0xff]
        %v1320 = vld [vmem:[%s1188 + $0x10] sm:$0xff]
        %v1321 = vld [vmem:[%s1188 + $0x18] sm:$0xff]
        %v1322 = vld [vmem:[%s1191] sm:$0x1]
        %1324 = vrot.lane.b32.xlu0 %v1276, 96
        %v1325 = vpop.permute.xlu0 %1324
        %vm1326 = vcmask 64512
        %v1327 = vsel %vm1326, %v1276, 0
        %v1329 = vsel %vm1326, %v1325, 0
        %1331 = vmatpush.xpose.msra.mxu0 0.0
        %1332 = vmatpush.xpose.msra.mxu0 0.0
        %1333 = vmatpush.xpose.msra.mxu0 0.0
        %1334 = vmatpush.xpose.msra.mxu0 0.0
        %1335 = vmatpush.xpose.msra.mxu0 0.0
        %1336 = vmatpush.xpose.msra.mxu0 0.0
        %1337 = vmatpush.xpose.msra.mxu0 0.0
        %1338 = vmatpush.xpose.msra.mxu0 0.0
        %1339 = vmatpush.xpose.msra.mxu0 0.0
        %1340 = vmatpush.xpose.msra.mxu0 0.0
        %1341 = vmatpush.xpose.msra.mxu0 0.0
        %1342 = vmatpush.xpose.msra.mxu0 0.0
        %1343 = vmatpush.xpose.msra.mxu0 0.0
        %1344 = vmatpush.xpose.msra.mxu0 0.0
        %1345 = vmatpush.xpose.msra.mxu0 0.0
        %1346 = vmatpush.xpose.msra.mxu0 %v1329
        %1347 = vmatmul.f32.gmra.mxu0 %v1327
        %v1348 = vpop.f32.mrf.mxu0
        %v1349 = vadd.f32 0.0, %v1348
        %1350 = vdwg.mxu0
        %1352 = vrot.lane.b32.xlu0 %v1279, 96
        %v1353 = vpop.permute.xlu0 %1352
        %v1354 = vsel %vm1326, %v1279, 0
        %v1356 = vsel %vm1326, %v1353, 0
        %1358 = vmatpush.xpose.msra.mxu0 0.0
        %1359 = vmatpush.xpose.msra.mxu0 0.0
        %1360 = vmatpush.xpose.msra.mxu0 0.0
        %1361 = vmatpush.xpose.msra.mxu0 0.0
        %1362 = vmatpush.xpose.msra.mxu0 0.0
        %1363 = vmatpush.xpose.msra.mxu0 0.0
        %1364 = vmatpush.xpose.msra.mxu0 0.0
        %1365 = vmatpush.xpose.msra.mxu0 0.0
        %1366 = vmatpush.xpose.msra.mxu0 0.0
        %1367 = vmatpush.xpose.msra.mxu0 0.0
        %1368 = vmatpush.xpose.msra.mxu0 0.0
        %1369 = vmatpush.xpose.msra.mxu0 0.0
        %1370 = vmatpush.xpose.msra.mxu0 0.0
        %1371 = vmatpush.xpose.msra.mxu0 0.0
        %1372 = vmatpush.xpose.msra.mxu0 0.0
        %1373 = vmatpush.xpose.msra.mxu0 %v1356
        %1374 = vmatmul.f32.gmra.mxu0 %v1354
        %v1375 = vpop.f32.mrf.mxu0
        %v1376 = vadd.f32 0.0, %v1375
        %1377 = vdwg.mxu0
        %v1378 = vmul.f32 %v1349, 0.35355338
        %v1379 = vmul.f32 %v1376, 0.35355338
        %v1380 = vsel %vm1326, %v1378, -inf
        %1381 = vmax.xlane.f32.xlu0 %v1380
        %v1382 = vpop.xlane.xlu0 %1381
        %v1383 = vsel %vm1326, %v1379, -inf
        %1384 = vmax.xlane.f32.xlu0 %v1383
        %v1385 = vpop.xlane.xlu0 %1384
        %v1386 = vsub.f32 %v1378, %v1382
        %v1387 = vsub.f32 %v1379, %v1385
        %v1388 = vmul.f32 %v1386, 1.442695
        %v1389 = vpow.pop %v1388
        %v1390 = vmul.f32 %v1387, 1.442695
        %v1391 = vpow.pop %v1390
        %v1392 = vsel %vm1326, %v1389, 0.0
        %1393 = vadd.xlane.f32.xlu0 %v1392
        %v1394 = vpop.xlane.xlu0 %1393
        %v1395 = vsel %vm1326, %v1391, 0.0
        %1396 = vadd.xlane.f32.xlu0 %v1395
        %v1397 = vpop.xlane.xlu0 %1396
        %v1398 = vrcp.pop %v1394
        %v1399 = vrcp.pop %v1397
        %v1400 = vmul.f32 %v1389, %v1398
        %v1401 = vmul.f32 %v1391, %v1399
        %v1403 = vsel %vm1326, %v1400, 0
        %1405 = vmatpush.msra.mxu0 0.0
        %1406 = vmatpush.msra.mxu0 0.0
        %1407 = vmatpush.msra.mxu0 0.0
        %1408 = vmatpush.msra.mxu0 0.0
        %1409 = vmatpush.msra.mxu0 0.0
        %1410 = vmatpush.msra.mxu0 0.0
        %1411 = vmatpush.msra.mxu0 0.0
        %1412 = vmatpush.msra.mxu0 0.0
        %1413 = vmatpush.msra.mxu0 0.0
        %1414 = vmatpush.msra.mxu0 0.0
        %1415 = vmatpush.msra.mxu0 0.0
        %1416 = vmatpush.msra.mxu0 0.0
        %1417 = vmatpush.msra.mxu0 0.0
        %1418 = vmatpush.msra.mxu0 0.0
        %1419 = vmatpush.msra.mxu0 0.0
        %1420 = vmatpush.msra.mxu0 %v1313
        %1421 = vmatmul.f32.gmra.mxu0 %v1403
        %v1422 = vpop.f32.mrf.mxu0
        %v1423 = vadd.f32 0.0, %v1422
        %1424 = vdwg.mxu0
        %v1426 = vsel %vm1326, %v1401, 0
        %1428 = vmatpush.msra.mxu0 0.0
        %1429 = vmatpush.msra.mxu0 0.0
        %1430 = vmatpush.msra.mxu0 0.0
        %1431 = vmatpush.msra.mxu0 0.0
        %1432 = vmatpush.msra.mxu0 0.0
        %1433 = vmatpush.msra.mxu0 0.0
        %1434 = vmatpush.msra.mxu0 0.0
        %1435 = vmatpush.msra.mxu0 0.0
        %1436 = vmatpush.msra.mxu0 0.0
        %1437 = vmatpush.msra.mxu0 0.0
        %1438 = vmatpush.msra.mxu0 0.0
        %1439 = vmatpush.msra.mxu0 0.0
        %1440 = vmatpush.msra.mxu0 0.0
        %1441 = vmatpush.msra.mxu0 0.0
        %1442 = vmatpush.msra.mxu0 0.0
        %1443 = vmatpush.msra.mxu0 %v1316
        %1444 = vmatmul.f32.gmra.mxu0 %v1426
        %v1445 = vpop.f32.mrf.mxu0
        %v1446 = vadd.f32 0.0, %v1445
        %1447 = vdwg.mxu0
        %1448 = vrot.lane.b32.xlu0 %v1276, 120
        %v1449 = vpop.permute.xlu0 %1448
        %1450 = vrot.lane.b32.xlu0 %v1276, 88
        %v1451 = vpop.permute.xlu0 %1450
        %v1452 = vsel %vm1326, %v1449, 0
        %v1454 = vsel %vm1326, %v1451, 0
        %1456 = vmatpush.xpose.msra.mxu0 0.0
        %1457 = vmatpush.xpose.msra.mxu0 0.0
        %1458 = vmatpush.xpose.msra.mxu0 0.0
        %1459 = vmatpush.xpose.msra.mxu0 0.0
        %1460 = vmatpush.xpose.msra.mxu0 0.0
        %1461 = vmatpush.xpose.msra.mxu0 0.0
        %1462 = vmatpush.xpose.msra.mxu0 0.0
        %1463 = vmatpush.xpose.msra.mxu0 0.0
        %1464 = vmatpush.xpose.msra.mxu0 0.0
        %1465 = vmatpush.xpose.msra.mxu0 0.0
        %1466 = vmatpush.xpose.msra.mxu0 0.0
        %1467 = vmatpush.xpose.msra.mxu0 0.0
        %1468 = vmatpush.xpose.msra.mxu0 0.0
        %1469 = vmatpush.xpose.msra.mxu0 0.0
        %1470 = vmatpush.xpose.msra.mxu0 0.0
        %1471 = vmatpush.xpose.msra.mxu0 %v1454
        %1472 = vmatmul.f32.gmra.mxu0 %v1452
        %v1473 = vpop.f32.mrf.mxu0
        %v1474 = vadd.f32 0.0, %v1473
        %1475 = vdwg.mxu0
        %1476 = vrot.lane.b32.xlu0 %v1279, 120
        %v1477 = vpop.permute.xlu0 %1476
        %1478 = vrot.lane.b32.xlu0 %v1279, 88
        %v1479 = vpop.permute.xlu0 %1478
        %v1480 = vsel %vm1326, %v1477, 0
        %v1482 = vsel %vm1326, %v1479, 0
        %1484 = vmatpush.xpose.msra.mxu0 0.0
        %1485 = vmatpush.xpose.msra.mxu0 0.0
        %1486 = vmatpush.xpose.msra.mxu0 0.0
        %1487 = vmatpush.xpose.msra.mxu0 0.0
        %1488 = vmatpush.xpose.msra.mxu0 0.0
        %1489 = vmatpush.xpose.msra.mxu0 0.0
        %1490 = vmatpush.xpose.msra.mxu0 0.0
        %1491 = vmatpush.xpose.msra.mxu0 0.0
        %1492 = vmatpush.xpose.msra.mxu0 0.0
        %1493 = vmatpush.xpose.msra.mxu0 0.0
        %1494 = vmatpush.xpose.msra.mxu0 0.0
        %1495 = vmatpush.xpose.msra.mxu0 0.0
        %1496 = vmatpush.xpose.msra.mxu0 0.0
        %1497 = vmatpush.xpose.msra.mxu0 0.0
        %1498 = vmatpush.xpose.msra.mxu0 0.0
        %1499 = vmatpush.xpose.msra.mxu0 %v1482
        %1500 = vmatmul.f32.gmra.mxu0 %v1480
        %v1501 = vpop.f32.mrf.mxu0
        %v1502 = vadd.f32 0.0, %v1501
        %1503 = vdwg.mxu0
        %v1504 = vmul.f32 %v1474, 0.35355338
        %v1505 = vmul.f32 %v1502, 0.35355338
        %v1506 = vsel %vm1326, %v1504, -inf
        %1507 = vmax.xlane.f32.xlu0 %v1506
        %v1508 = vpop.xlane.xlu0 %1507
        %v1509 = vsel %vm1326, %v1505, -inf
        %1510 = vmax.xlane.f32.xlu0 %v1509
        %v1511 = vpop.xlane.xlu0 %1510
        %v1512 = vsub.f32 %v1504, %v1508
        %v1513 = vsub.f32 %v1505, %v1511
        %v1514 = vmul.f32 %v1512, 1.442695
        %v1515 = vpow.pop %v1514
        %v1516 = vmul.f32 %v1513, 1.442695
        %v1517 = vpow.pop %v1516
        %v1518 = vsel %vm1326, %v1515, 0.0
        %1519 = vadd.xlane.f32.xlu0 %v1518
        %v1520 = vpop.xlane.xlu0 %1519
        %v1521 = vsel %vm1326, %v1517, 0.0
        %1522 = vadd.xlane.f32.xlu0 %v1521
        %v1523 = vpop.xlane.xlu0 %1522
        %v1524 = vrcp.pop %v1520
        %v1525 = vrcp.pop %v1523
        %v1526 = vmul.f32 %v1515, %v1524
        %v1527 = vmul.f32 %v1517, %v1525
        %1529 = vrot.lane.b32.xlu0 %v1313, 120
        %v1530 = vpop.permute.xlu0 %1529
        %v1533 = vsel %vm1326, %v1526, 0
        %1535 = vmatpush.msra.mxu0 0.0
        %1536 = vmatpush.msra.mxu0 0.0
        %1537 = vmatpush.msra.mxu0 0.0
        %1538 = vmatpush.msra.mxu0 0.0
        %1539 = vmatpush.msra.mxu0 0.0
        %1540 = vmatpush.msra.mxu0 0.0
        %1541 = vmatpush.msra.mxu0 0.0
        %1542 = vmatpush.msra.mxu0 0.0
        %1543 = vmatpush.msra.mxu0 0.0
        %1544 = vmatpush.msra.mxu0 0.0
        %1545 = vmatpush.msra.mxu0 0.0
        %1546 = vmatpush.msra.mxu0 0.0
        %1547 = vmatpush.msra.mxu0 0.0
        %1548 = vmatpush.msra.mxu0 0.0
        %1549 = vmatpush.msra.mxu0 0.0
        %1550 = vmatpush.msra.mxu0 %v1530
        %1551 = vmatmul.f32.gmra.mxu0 %v1533
        %v1552 = vpop.f32.mrf.mxu0
        %v1553 = vadd.f32 0.0, %v1552
        %1554 = vdwg.mxu0
        %1556 = vrot.lane.b32.xlu0 %v1316, 120
        %v1557 = vpop.permute.xlu0 %1556
        %v1560 = vsel %vm1326, %v1527, 0
        %1562 = vmatpush.msra.mxu0 0.0
        %1563 = vmatpush.msra.mxu0 0.0
        %1564 = vmatpush.msra.mxu0 0.0
        %1565 = vmatpush.msra.mxu0 0.0
        %1566 = vmatpush.msra.mxu0 0.0
        %1567 = vmatpush.msra.mxu0 0.0
        %1568 = vmatpush.msra.mxu0 0.0
        %1569 = vmatpush.msra.mxu0 0.0
        %1570 = vmatpush.msra.mxu0 0.0
        %1571 = vmatpush.msra.mxu0 0.0
        %1572 = vmatpush.msra.mxu0 0.0
        %1573 = vmatpush.msra.mxu0 0.0
        %1574 = vmatpush.msra.mxu0 0.0
        %1575 = vmatpush.msra.mxu0 0.0
        %1576 = vmatpush.msra.mxu0 0.0
        %1577 = vmatpush.msra.mxu0 %v1557
        %1578 = vmatmul.f32.gmra.mxu0 %v1560
        %v1579 = vpop.f32.mrf.mxu0
        %v1580 = vadd.f32 0.0, %v1579
        %1581 = vdwg.mxu0
        %v1583 = vsel %vm1326, %v1553, 0
        %v1586 = vsel %vm1326, %v1580, 0
        %1588 = vmatpush.msra.mxu0 0.0
        %1589 = vmatpush.msra.mxu0 0.0
        %1590 = vmatpush.msra.mxu0 0.0
        %1591 = vmatpush.msra.mxu0 0.0
        %1592 = vmatpush.msra.mxu0 0.0
        %1593 = vmatpush.msra.mxu0 0.0
        %1594 = vmatpush.msra.mxu0 0.0
        %1595 = vmatpush.msra.mxu0 0.0
        %1596 = vmatpush.msra.mxu0 0.0
        %1597 = vmatpush.msra.mxu0 0.0
        %1598 = vmatpush.msra.mxu0 0.0
        %1599 = vmatpush.msra.mxu0 0.0
        %1600 = vmatpush.msra.mxu0 0.0
        %1601 = vmatpush.msra.mxu0 0.0
        %1602 = vmatpush.msra.mxu0 0.0
        %1603 = vmatpush.msra.mxu0 %v1319
        %1604 = vmatmul.f32.gmra.mxu0 %v1583
        %v1605 = vpop.f32.mrf.mxu0
        %v1606 = vadd.f32 0.0, %v1605
        %1607 = vmatmul.f32.gmra.mxu0 %v1586
        %v1608 = vpop.f32.mrf.mxu0
        %v1609 = vadd.f32 0.0, %v1608
        %1610 = vdwg.mxu0
        %v1612 = vsel %vm1326, %v1423, 0
        %v1615 = vsel %vm1326, %v1446, 0
        %1617 = vmatpush.msra.mxu0 0.0
        %1618 = vmatpush.msra.mxu0 0.0
        %1619 = vmatpush.msra.mxu0 0.0
        %1620 = vmatpush.msra.mxu0 0.0
        %1621 = vmatpush.msra.mxu0 0.0
        %1622 = vmatpush.msra.mxu0 0.0
        %1623 = vmatpush.msra.mxu0 0.0
        %1624 = vmatpush.msra.mxu0 0.0
        %1625 = vmatpush.msra.mxu0 0.0
        %1626 = vmatpush.msra.mxu0 0.0
        %1627 = vmatpush.msra.mxu0 0.0
        %1628 = vmatpush.msra.mxu0 0.0
        %1629 = vmatpush.msra.mxu0 0.0
        %1630 = vmatpush.msra.mxu0 0.0
        %1631 = vmatpush.msra.mxu0 0.0
        %1632 = vmatpush.msra.mxu0 %v1318
        %1633 = vmatmul.f32.gmra.mxu0 %v1612
        %v1634 = vpop.f32.mrf.mxu0
        %v1635 = vadd.f32 %v1606, %v1634
        %1636 = vmatmul.f32.gmra.mxu0 %v1615
        %v1637 = vpop.f32.mrf.mxu0
        %v1638 = vadd.f32 %v1609, %v1637
        %1639 = vdwg.mxu0
        %1640 = vrot.lane.b32.xlu0 %v1276, 112
        %v1641 = vpop.permute.xlu0 %1640
        %1642 = vrot.lane.b32.xlu0 %v1276, 80
        %v1643 = vpop.permute.xlu0 %1642
        %v1644 = vsel %vm1326, %v1641, 0
        %v1646 = vsel %vm1326, %v1643, 0
        %1648 = vmatpush.xpose.msra.mxu0 0.0
        %1649 = vmatpush.xpose.msra.mxu0 0.0
        %1650 = vmatpush.xpose.msra.mxu0 0.0
        %1651 = vmatpush.xpose.msra.mxu0 0.0
        %1652 = vmatpush.xpose.msra.mxu0 0.0
        %1653 = vmatpush.xpose.msra.mxu0 0.0
        %1654 = vmatpush.xpose.msra.mxu0 0.0
        %1655 = vmatpush.xpose.msra.mxu0 0.0
        %1656 = vmatpush.xpose.msra.mxu0 0.0
        %1657 = vmatpush.xpose.msra.mxu0 0.0
        %1658 = vmatpush.xpose.msra.mxu0 0.0
        %1659 = vmatpush.xpose.msra.mxu0 0.0
        %1660 = vmatpush.xpose.msra.mxu0 0.0
        %1661 = vmatpush.xpose.msra.mxu0 0.0
        %1662 = vmatpush.xpose.msra.mxu0 0.0
        %1663 = vmatpush.xpose.msra.mxu0 %v1646
        %1664 = vmatmul.f32.gmra.mxu0 %v1644
        %v1665 = vpop.f32.mrf.mxu0
        %v1666 = vadd.f32 0.0, %v1665
        %1667 = vdwg.mxu0
        %1668 = vrot.lane.b32.xlu0 %v1279, 112
        %v1669 = vpop.permute.xlu0 %1668
        %1670 = vrot.lane.b32.xlu0 %v1279, 80
        %v1671 = vpop.permute.xlu0 %1670
        %v1672 = vsel %vm1326, %v1669, 0
        %v1674 = vsel %vm1326, %v1671, 0
        %1676 = vmatpush.xpose.msra.mxu0 0.0
        %1677 = vmatpush.xpose.msra.mxu0 0.0
        %1678 = vmatpush.xpose.msra.mxu0 0.0
        %1679 = vmatpush.xpose.msra.mxu0 0.0
        %1680 = vmatpush.xpose.msra.mxu0 0.0
        %1681 = vmatpush.xpose.msra.mxu0 0.0
        %1682 = vmatpush.xpose.msra.mxu0 0.0
        %1683 = vmatpush.xpose.msra.mxu0 0.0
        %1684 = vmatpush.xpose.msra.mxu0 0.0
        %1685 = vmatpush.xpose.msra.mxu0 0.0
        %1686 = vmatpush.xpose.msra.mxu0 0.0
        %1687 = vmatpush.xpose.msra.mxu0 0.0
        %1688 = vmatpush.xpose.msra.mxu0 0.0
        %1689 = vmatpush.xpose.msra.mxu0 0.0
        %1690 = vmatpush.xpose.msra.mxu0 0.0
        %1691 = vmatpush.xpose.msra.mxu0 %v1674
        %1692 = vmatmul.f32.gmra.mxu0 %v1672
        %v1693 = vpop.f32.mrf.mxu0
        %v1694 = vadd.f32 0.0, %v1693
        %1695 = vdwg.mxu0
        %v1696 = vmul.f32 %v1666, 0.35355338
        %v1697 = vmul.f32 %v1694, 0.35355338
        %v1698 = vsel %vm1326, %v1696, -inf
        %1699 = vmax.xlane.f32.xlu0 %v1698
        %v1700 = vpop.xlane.xlu0 %1699
        %v1701 = vsel %vm1326, %v1697, -inf
        %1702 = vmax.xlane.f32.xlu0 %v1701
        %v1703 = vpop.xlane.xlu0 %1702
        %v1704 = vsub.f32 %v1696, %v1700
        %v1705 = vsub.f32 %v1697, %v1703
        %v1706 = vmul.f32 %v1704, 1.442695
        %v1707 = vpow.pop %v1706
        %v1708 = vmul.f32 %v1705, 1.442695
        %v1709 = vpow.pop %v1708
        %v1710 = vsel %vm1326, %v1707, 0.0
        %1711 = vadd.xlane.f32.xlu0 %v1710
        %v1712 = vpop.xlane.xlu0 %1711
        %v1713 = vsel %vm1326, %v1709, 0.0
        %1714 = vadd.xlane.f32.xlu0 %v1713
        %v1715 = vpop.xlane.xlu0 %1714
        %v1716 = vrcp.pop %v1712
        %v1717 = vrcp.pop %v1715
        %v1718 = vmul.f32 %v1707, %v1716
        %v1719 = vmul.f32 %v1709, %v1717
        %1720 = vrot.lane.b32.xlu0 %v1313, 112
        %v1721 = vpop.permute.xlu0 %1720
        %v1724 = vsel %vm1326, %v1718, 0
        %1726 = vmatpush.msra.mxu0 0.0
        %1727 = vmatpush.msra.mxu0 0.0
        %1728 = vmatpush.msra.mxu0 0.0
        %1729 = vmatpush.msra.mxu0 0.0
        %1730 = vmatpush.msra.mxu0 0.0
        %1731 = vmatpush.msra.mxu0 0.0
        %1732 = vmatpush.msra.mxu0 0.0
        %1733 = vmatpush.msra.mxu0 0.0
        %1734 = vmatpush.msra.mxu0 0.0
        %1735 = vmatpush.msra.mxu0 0.0
        %1736 = vmatpush.msra.mxu0 0.0
        %1737 = vmatpush.msra.mxu0 0.0
        %1738 = vmatpush.msra.mxu0 0.0
        %1739 = vmatpush.msra.mxu0 0.0
        %1740 = vmatpush.msra.mxu0 0.0
        %1741 = vmatpush.msra.mxu0 %v1721
        %1742 = vmatmul.f32.gmra.mxu0 %v1724
        %v1743 = vpop.f32.mrf.mxu0
        %v1744 = vadd.f32 0.0, %v1743
        %1745 = vdwg.mxu0
        %1746 = vrot.lane.b32.xlu0 %v1316, 112
        %v1747 = vpop.permute.xlu0 %1746
        %v1750 = vsel %vm1326, %v1719, 0
        %1752 = vmatpush.msra.mxu0 0.0
        %1753 = vmatpush.msra.mxu0 0.0
        %1754 = vmatpush.msra.mxu0 0.0
        %1755 = vmatpush.msra.mxu0 0.0
        %1756 = vmatpush.msra.mxu0 0.0
        %1757 = vmatpush.msra.mxu0 0.0
        %1758 = vmatpush.msra.mxu0 0.0
        %1759 = vmatpush.msra.mxu0 0.0
        %1760 = vmatpush.msra.mxu0 0.0
        %1761 = vmatpush.msra.mxu0 0.0
        %1762 = vmatpush.msra.mxu0 0.0
        %1763 = vmatpush.msra.mxu0 0.0
        %1764 = vmatpush.msra.mxu0 0.0
        %1765 = vmatpush.msra.mxu0 0.0
        %1766 = vmatpush.msra.mxu0 0.0
        %1767 = vmatpush.msra.mxu0 %v1747
        %1768 = vmatmul.f32.gmra.mxu0 %v1750
        %v1769 = vpop.f32.mrf.mxu0
        %v1770 = vadd.f32 0.0, %v1769
        %1771 = vdwg.mxu0
        %v1773 = vsel %vm1326, %v1744, 0
        %v1776 = vsel %vm1326, %v1770, 0
        %1778 = vmatpush.msra.mxu0 0.0
        %1779 = vmatpush.msra.mxu0 0.0
        %1780 = vmatpush.msra.mxu0 0.0
        %1781 = vmatpush.msra.mxu0 0.0
        %1782 = vmatpush.msra.mxu0 0.0
        %1783 = vmatpush.msra.mxu0 0.0
        %1784 = vmatpush.msra.mxu0 0.0
        %1785 = vmatpush.msra.mxu0 0.0
        %1786 = vmatpush.msra.mxu0 0.0
        %1787 = vmatpush.msra.mxu0 0.0
        %1788 = vmatpush.msra.mxu0 0.0
        %1789 = vmatpush.msra.mxu0 0.0
        %1790 = vmatpush.msra.mxu0 0.0
        %1791 = vmatpush.msra.mxu0 0.0
        %1792 = vmatpush.msra.mxu0 0.0
        %1793 = vmatpush.msra.mxu0 %v1320
        %1794 = vmatmul.f32.gmra.mxu0 %v1773
        %v1795 = vpop.f32.mrf.mxu0
        %v1796 = vadd.f32 0.0, %v1795
        %1797 = vmatmul.f32.gmra.mxu0 %v1776
        %v1798 = vpop.f32.mrf.mxu0
        %v1799 = vadd.f32 0.0, %v1798
        %1800 = vdwg.mxu0
        %v1801 = vadd.f32 %v1635, %v1796
        %v1802 = vadd.f32 %v1638, %v1799
        %1803 = vrot.lane.b32.xlu0 %v1276, 104
        %v1804 = vpop.permute.xlu0 %1803
        %1805 = vrot.lane.b32.xlu0 %v1276, 72
        %v1806 = vpop.permute.xlu0 %1805
        %v1807 = vsel %vm1326, %v1804, 0
        %v1809 = vsel %vm1326, %v1806, 0
        %1811 = vmatpush.xpose.msra.mxu0 0.0
        %1812 = vmatpush.xpose.msra.mxu0 0.0
        %1813 = vmatpush.xpose.msra.mxu0 0.0
        %1814 = vmatpush.xpose.msra.mxu0 0.0
        %1815 = vmatpush.xpose.msra.mxu0 0.0
        %1816 = vmatpush.xpose.msra.mxu0 0.0
        %1817 = vmatpush.xpose.msra.mxu0 0.0
        %1818 = vmatpush.xpose.msra.mxu0 0.0
        %1819 = vmatpush.xpose.msra.mxu0 0.0
        %1820 = vmatpush.xpose.msra.mxu0 0.0
        %1821 = vmatpush.xpose.msra.mxu0 0.0
        %1822 = vmatpush.xpose.msra.mxu0 0.0
        %1823 = vmatpush.xpose.msra.mxu0 0.0
        %1824 = vmatpush.xpose.msra.mxu0 0.0
        %1825 = vmatpush.xpose.msra.mxu0 0.0
        %1826 = vmatpush.xpose.msra.mxu0 %v1809
        %1827 = vmatmul.f32.gmra.mxu0 %v1807
        %v1828 = vpop.f32.mrf.mxu0
        %v1829 = vadd.f32 0.0, %v1828
        %1830 = vdwg.mxu0
        %1831 = vrot.lane.b32.xlu0 %v1279, 104
        %v1832 = vpop.permute.xlu0 %1831
        %1833 = vrot.lane.b32.xlu0 %v1279, 72
        %v1834 = vpop.permute.xlu0 %1833
        %v1835 = vsel %vm1326, %v1832, 0
        %v1837 = vsel %vm1326, %v1834, 0
        %1839 = vmatpush.xpose.msra.mxu0 0.0
        %1840 = vmatpush.xpose.msra.mxu0 0.0
        %1841 = vmatpush.xpose.msra.mxu0 0.0
        %1842 = vmatpush.xpose.msra.mxu0 0.0
        %1843 = vmatpush.xpose.msra.mxu0 0.0
        %1844 = vmatpush.xpose.msra.mxu0 0.0
        %1845 = vmatpush.xpose.msra.mxu0 0.0
        %1846 = vmatpush.xpose.msra.mxu0 0.0
        %1847 = vmatpush.xpose.msra.mxu0 0.0
        %1848 = vmatpush.xpose.msra.mxu0 0.0
        %1849 = vmatpush.xpose.msra.mxu0 0.0
        %1850 = vmatpush.xpose.msra.mxu0 0.0
        %1851 = vmatpush.xpose.msra.mxu0 0.0
        %1852 = vmatpush.xpose.msra.mxu0 0.0
        %1853 = vmatpush.xpose.msra.mxu0 0.0
        %1854 = vmatpush.xpose.msra.mxu0 %v1837
        %1855 = vmatmul.f32.gmra.mxu0 %v1835
        %v1856 = vpop.f32.mrf.mxu0
        %v1857 = vadd.f32 0.0, %v1856
        %1858 = vdwg.mxu0
        %v1859 = vmul.f32 %v1829, 0.35355338
        %v1860 = vmul.f32 %v1857, 0.35355338
        %v1861 = vsel %vm1326, %v1859, -inf
        %1862 = vmax.xlane.f32.xlu0 %v1861
        %v1863 = vpop.xlane.xlu0 %1862
        %v1864 = vsel %vm1326, %v1860, -inf
        %1865 = vmax.xlane.f32.xlu0 %v1864
        %v1866 = vpop.xlane.xlu0 %1865
        %v1867 = vsub.f32 %v1859, %v1863
        %v1868 = vsub.f32 %v1860, %v1866
        %v1869 = vmul.f32 %v1867, 1.442695
        %v1870 = vpow.pop %v1869
        %v1871 = vmul.f32 %v1868, 1.442695
        %v1872 = vpow.pop %v1871
        %v1873 = vsel %vm1326, %v1870, 0.0
        %1874 = vadd.xlane.f32.xlu0 %v1873
        %v1875 = vpop.xlane.xlu0 %1874
        %v1876 = vsel %vm1326, %v1872, 0.0
        %1877 = vadd.xlane.f32.xlu0 %v1876
        %v1878 = vpop.xlane.xlu0 %1877
        %v1879 = vrcp.pop %v1875
        %v1880 = vrcp.pop %v1878
        %v1881 = vmul.f32 %v1870, %v1879
        %v1882 = vmul.f32 %v1872, %v1880
        %1883 = vrot.lane.b32.xlu0 %v1313, 104
        %v1884 = vpop.permute.xlu0 %1883
        %v1887 = vsel %vm1326, %v1881, 0
        %1889 = vmatpush.msra.mxu0 0.0
        %1890 = vmatpush.msra.mxu0 0.0
        %1891 = vmatpush.msra.mxu0 0.0
        %1892 = vmatpush.msra.mxu0 0.0
        %1893 = vmatpush.msra.mxu0 0.0
        %1894 = vmatpush.msra.mxu0 0.0
        %1895 = vmatpush.msra.mxu0 0.0
        %1896 = vmatpush.msra.mxu0 0.0
        %1897 = vmatpush.msra.mxu0 0.0
        %1898 = vmatpush.msra.mxu0 0.0
        %1899 = vmatpush.msra.mxu0 0.0
        %1900 = vmatpush.msra.mxu0 0.0
        %1901 = vmatpush.msra.mxu0 0.0
        %1902 = vmatpush.msra.mxu0 0.0
        %1903 = vmatpush.msra.mxu0 0.0
        %1904 = vmatpush.msra.mxu0 %v1884
        %1905 = vmatmul.f32.gmra.mxu0 %v1887
        %v1906 = vpop.f32.mrf.mxu0
        %v1907 = vadd.f32 0.0, %v1906
        %1908 = vdwg.mxu0
        %1909 = vrot.lane.b32.xlu0 %v1316, 104
        %v1910 = vpop.permute.xlu0 %1909
        %v1913 = vsel %vm1326, %v1882, 0
        %1915 = vmatpush.msra.mxu0 0.0
        %1916 = vmatpush.msra.mxu0 0.0
        %1917 = vmatpush.msra.mxu0 0.0
        %1918 = vmatpush.msra.mxu0 0.0
        %1919 = vmatpush.msra.mxu0 0.0
        %1920 = vmatpush.msra.mxu0 0.0
        %1921 = vmatpush.msra.mxu0 0.0
        %1922 = vmatpush.msra.mxu0 0.0
        %1923 = vmatpush.msra.mxu0 0.0
        %1924 = vmatpush.msra.mxu0 0.0
        %1925 = vmatpush.msra.mxu0 0.0
        %1926 = vmatpush.msra.mxu0 0.0
        %1927 = vmatpush.msra.mxu0 0.0
        %1928 = vmatpush.msra.mxu0 0.0
        %1929 = vmatpush.msra.mxu0 0.0
        %1930 = vmatpush.msra.mxu0 %v1910
        %1931 = vmatmul.f32.gmra.mxu0 %v1913
        %v1932 = vpop.f32.mrf.mxu0
        %v1933 = vadd.f32 0.0, %v1932
        %1934 = vdwg.mxu0
        %v1936 = vsel %vm1326, %v1907, 0
        %v1939 = vsel %vm1326, %v1933, 0
        %1941 = vmatpush.msra.mxu0 0.0
        %1942 = vmatpush.msra.mxu0 0.0
        %1943 = vmatpush.msra.mxu0 0.0
        %1944 = vmatpush.msra.mxu0 0.0
        %1945 = vmatpush.msra.mxu0 0.0
        %1946 = vmatpush.msra.mxu0 0.0
        %1947 = vmatpush.msra.mxu0 0.0
        %1948 = vmatpush.msra.mxu0 0.0
        %1949 = vmatpush.msra.mxu0 0.0
        %1950 = vmatpush.msra.mxu0 0.0
        %1951 = vmatpush.msra.mxu0 0.0
        %1952 = vmatpush.msra.mxu0 0.0
        %1953 = vmatpush.msra.mxu0 0.0
        %1954 = vmatpush.msra.mxu0 0.0
        %1955 = vmatpush.msra.mxu0 0.0
        %1956 = vmatpush.msra.mxu0 %v1321
        %1957 = vmatmul.f32.gmra.mxu0 %v1936
        %v1958 = vpop.f32.mrf.mxu0
        %v1959 = vadd.f32 0.0, %v1958
        %1960 = vmatmul.f32.gmra.mxu0 %v1939
        %v1961 = vpop.f32.mrf.mxu0
        %v1962 = vadd.f32 0.0, %v1961
        %1963 = vdwg.mxu0
        %v1964 = vadd.f32 %v1801, %v1959
        %v1965 = vadd.f32 %v1802, %v1962
        %v1967 = vperm.slane %v1322, 0
        %v1969 = vadd.f32 %v1964, %v1967
        %v1970 = vadd.f32 %v1965, %v1967
        %v1971 = vadd.f32 %v1228, %v1969
        %v1972 = vadd.f32 %v1229, %v1970
        %v1973 = vsel %vm1251, %v1971, 0.0
        %1974 = vadd.xlane.f32.xlu0 %v1973
        %v1975 = vpop.xlane.xlu0 %1974
        %v1976 = vsel %vm1251, %v1972, 0.0
        %1977 = vadd.xlane.f32.xlu0 %v1976
        %v1978 = vpop.xlane.xlu0 %1977
        %v1979 = vrcp.pop 32.0
        %v1980 = vmul.f32 32.0, %v1979
        %v1981 = vsub.f32 1.0, %v1980
        %v1982 = vmul.f32 %v1979, %v1981
        %v1983 = vadd.f32 %v1979, %v1982
        %vm1984 = vweird.f32 %v1979
        %v1985 = vsel %vm1984, %v1979, %v1983
        %v1986 = vmul.f32 %v1975, %v1985
        %v1987 = vmul.f32 %v1978, %v1985
        %v1988 = vsub.f32 %v1971, %v1986
        %v1989 = vsub.f32 %v1972, %v1987
        %v1990 = vmul.f32 %v1988, %v1988
        %v1991 = vmul.f32 %v1989, %v1989
        %v1992 = vsel %vm1251, %v1990, 0.0
        %1993 = vadd.xlane.f32.xlu0 %v1992
        %v1994 = vpop.xlane.xlu0 %1993
        %v1995 = vsel %vm1251, %v1991, 0.0
        %1996 = vadd.xlane.f32.xlu0 %v1995
        %v1997 = vpop.xlane.xlu0 %1996
        %v1998 = vmul.f32 %v1994, %v1985
        %v1999 = vmul.f32 %v1997, %v1985
        %v2000 = vadd.f32 %v1998, 1e-05
        %v2001 = vadd.f32 %v1999, 1e-05
        %v2002 = vrsqrt.pop %v2000
        %v2003 = vmul.f32 %v2002, %v2000
        %v2004 = vmul.f32 %v2003, %v2002
        %v2005 = vmul.f32 0.5, %v2004
        %v2006 = vsub.f32 1.5, %v2005
        %v2007 = vmul.f32 %v2002, %v2006
        %vm2008 = vweird.f32 %v2000
        %vm2009 = vweird.f32 %v2002
        %vm2010 = vmor %vm2008, %vm2009
        %v2011 = vsel %vm2010, %v2002, %v2007
        %v2012 = vrsqrt.pop %v2001
        %v2013 = vmul.f32 %v2012, %v2001
        %v2014 = vmul.f32 %v2013, %v2012
        %v2015 = vmul.f32 0.5, %v2014
        %v2016 = vsub.f32 1.5, %v2015
        %v2017 = vmul.f32 %v2012, %v2016
        %vm2018 = vweird.f32 %v2001
        %vm2019 = vweird.f32 %v2012
        %vm2020 = vmor %vm2018, %vm2019
        %v2021 = vsel %vm2020, %v2012, %v2017
        %v2022 = vmul.f32 %v1988, %v2011
        %v2023 = vmul.f32 %v1989, %v2021
        %v2024 = vperm.slane %v1240, 0
        %v2025 = vmul.f32 %v2022, %v2024
        %v2026 = vmul.f32 %v2023, %v2024
        %v2027 = vperm.slane %v1240, 1
        %v2028 = vadd.f32 %v2025, %v2027
        %v2029 = vadd.f32 %v2026, %v2027
        %v2030 = vadd.f32 %v2028, %v1230
        %v2031 = vadd.f32 %v2029, %v1231
        %v2032 = vld [vmem:[%s989] sm:$0xff]
        %v2033 = vld [vmem:[%s989 + $0x8] sm:$0xff]
        %v2034 = vld [vmem:[%s989 + $0x10] sm:$0xff]
        %v2035 = vld [vmem:[%s989 + $0x18] sm:$0xff]
        %v2036 = vld [vmem:[%s1194] sm:$0x1]
        %v2038 = vperm.slane %v2036, 0
        %v2041 = vsel %vm1251, %v2030, 0
        %v2044 = vsel %vm1251, %v2031, 0
        %2046 = vmatpush.msra.mxu0 0.0
        %2047 = vmatpush.msra.mxu0 0.0
        %2048 = vmatpush.msra.mxu0 0.0
        %2049 = vmatpush.msra.mxu0 0.0
        %2050 = vmatpush.msra.mxu0 0.0
        %2051 = vmatpush.msra.mxu0 0.0
        %2052 = vmatpush.msra.mxu0 0.0
        %2053 = vmatpush.msra.mxu0 0.0
        %2054 = vmatpush.msra.mxu0 0.0
        %2055 = vmatpush.msra.mxu0 0.0
        %2056 = vmatpush.msra.mxu0 0.0
        %2057 = vmatpush.msra.mxu0 0.0
        %2058 = vmatpush.msra.mxu0 %v2035
        %2059 = vmatpush.msra.mxu0 %v2034
        %2060 = vmatpush.msra.mxu0 %v2033
        %2061 = vmatpush.msra.mxu0 %v2032
        %2062 = vmatmul.f32.gmra.mxu0 %v2041
        %v2063 = vpop.f32.mrf.mxu0
        %v2064 = vadd.f32 %v2038, %v2063
        %2065 = vmatmul.f32.gmra.mxu0 %v2044
        %v2066 = vpop.f32.mrf.mxu0
        %v2067 = vadd.f32 %v2038, %v2066
        %2068 = vdwg.mxu0
        %v2069 = vadd.f32 %v1232, %v1236
        %v2070 = vadd.f32 %v1233, %v1237
        %v2071 = vadd.f32 %v1234, %v1238
        %v2072 = vadd.f32 %v1235, %v1239
        %v2073 = vld [vmem:[%s999] sm:$0xff]
        %v2074 = vld [vmem:[%s999 + $0x8] sm:$0xff]
        %v2075 = vld [vmem:[%s999 + $0x10] sm:$0xff]
        %v2076 = vld [vmem:[%s999 + $0x18] sm:$0xff]
        %v2077 = vld [vmem:[%s1197] sm:$0x1]
        %v2079 = vperm.slane %v2077, 0
        %v2082 = vsel %vm1251, %v2069, 0
        %v2085 = vsel %vm1251, %v2070, 0
        %v2088 = vsel %vm1251, %v2071, 0
        %v2091 = vsel %vm1251, %v2072, 0
        %2093 = vmatpush.msra.mxu0 0.0
        %2094 = vmatpush.msra.mxu0 0.0
        %2095 = vmatpush.msra.mxu0 0.0
        %2096 = vmatpush.msra.mxu0 0.0
        %2097 = vmatpush.msra.mxu0 0.0
        %2098 = vmatpush.msra.mxu0 0.0
        %2099 = vmatpush.msra.mxu0 0.0
        %2100 = vmatpush.msra.mxu0 0.0
        %2101 = vmatpush.msra.mxu0 0.0
        %2102 = vmatpush.msra.mxu0 0.0
        %2103 = vmatpush.msra.mxu0 0.0
        %2104 = vmatpush.msra.mxu0 0.0
        %2105 = vmatpush.msra.mxu0 %v2076
        %2106 = vmatpush.msra.mxu0 %v2075
        %2107 = vmatpush.msra.mxu0 %v2074
        %2108 = vmatpush.msra.mxu0 %v2073
        %2109 = vmatmul.f32.gmra.mxu0 %v2082
        %v2110 = vpop.f32.mrf.mxu0
        %v2111 = vadd.f32 %v2079, %v2110
        %2112 = vmatmul.f32.gmra.mxu0 %v2085
        %v2113 = vpop.f32.mrf.mxu0
        %v2114 = vadd.f32 %v2079, %v2113
        %2115 = vmatmul.f32.gmra.mxu0 %v2088
        %v2116 = vpop.f32.mrf.mxu0
        %v2117 = vadd.f32 %v2079, %v2116
        %2118 = vmatmul.f32.gmra.mxu0 %v2091
        %v2119 = vpop.f32.mrf.mxu0
        %v2120 = vadd.f32 %v2079, %v2119
        %2121 = vdwg.mxu0
        %v2122 = vld [vmem:[%s1009] sm:$0xff]
        %v2123 = vld [vmem:[%s1009 + $0x8] sm:$0xff]
        %v2124 = vld [vmem:[%s1009 + $0x10] sm:$0xff]
        %v2125 = vld [vmem:[%s1009 + $0x18] sm:$0xff]
        %v2126 = vld [vmem:[%s1200] sm:$0x1]
        %v2128 = vperm.slane %v2126, 0
        %v2131 = vsel %vm1251, %v1232, 0
        %v2134 = vsel %vm1251, %v1233, 0
        %v2137 = vsel %vm1251, %v1234, 0
        %v2140 = vsel %vm1251, %v1235, 0
        %2142 = vmatpush.msra.mxu0 0.0
        %2143 = vmatpush.msra.mxu0 0.0
        %2144 = vmatpush.msra.mxu0 0.0
        %2145 = vmatpush.msra.mxu0 0.0
        %2146 = vmatpush.msra.mxu0 0.0
        %2147 = vmatpush.msra.mxu0 0.0
        %2148 = vmatpush.msra.mxu0 0.0
        %2149 = vmatpush.msra.mxu0 0.0
        %2150 = vmatpush.msra.mxu0 0.0
        %2151 = vmatpush.msra.mxu0 0.0
        %2152 = vmatpush.msra.mxu0 0.0
        %2153 = vmatpush.msra.mxu0 0.0
        %2154 = vmatpush.msra.mxu0 %v2125
        %2155 = vmatpush.msra.mxu0 %v2124
        %2156 = vmatpush.msra.mxu0 %v2123
        %2157 = vmatpush.msra.mxu0 %v2122
        %2158 = vmatmul.f32.gmra.mxu0 %v2131
        %v2159 = vpop.f32.mrf.mxu0
        %v2160 = vadd.f32 %v2128, %v2159
        %2161 = vmatmul.f32.gmra.mxu0 %v2134
        %v2162 = vpop.f32.mrf.mxu0
        %v2163 = vadd.f32 %v2128, %v2162
        %2164 = vmatmul.f32.gmra.mxu0 %v2137
        %v2165 = vpop.f32.mrf.mxu0
        %v2166 = vadd.f32 %v2128, %v2165
        %2167 = vmatmul.f32.gmra.mxu0 %v2140
        %v2168 = vpop.f32.mrf.mxu0
        %v2169 = vadd.f32 %v2128, %v2168
        %2170 = vdwg.mxu0
        %v2171 = vld [vmem:[%s1019] sm:$0xff]
        %v2172 = vld [vmem:[%s1019 + $0x8] sm:$0xff]
        %v2173 = vld [vmem:[%s1019 + $0x10] sm:$0xff]
        %v2174 = vld [vmem:[%s1019 + $0x18] sm:$0xff]
        %v2175 = vld [vmem:[%s1203] sm:$0x1]
        %v2177 = vsel %vm1326, %v2064, 0
        %v2180 = vsel %vm1326, %v2111, 0
        %v2183 = vsel %vm1326, %v2114, 0
        %2185 = vmatpush.xpose.msra.mxu0 0.0
        %2186 = vmatpush.xpose.msra.mxu0 0.0
        %2187 = vmatpush.xpose.msra.mxu0 0.0
        %2188 = vmatpush.xpose.msra.mxu0 0.0
        %2189 = vmatpush.xpose.msra.mxu0 0.0
        %2190 = vmatpush.xpose.msra.mxu0 0.0
        %2191 = vmatpush.xpose.msra.mxu0 0.0
        %2192 = vmatpush.xpose.msra.mxu0 0.0
        %2193 = vmatpush.xpose.msra.mxu0 0.0
        %2194 = vmatpush.xpose.msra.mxu0 0.0
        %2195 = vmatpush.xpose.msra.mxu0 0.0
        %2196 = vmatpush.xpose.msra.mxu0 0.0
        %2197 = vmatpush.xpose.msra.mxu0 0.0
        %2198 = vmatpush.xpose.msra.mxu0 0.0
        %2199 = vmatpush.xpose.msra.mxu0 %v2183
        %2200 = vmatpush.xpose.msra.mxu0 %v2180
        %2201 = vmatmul.f32.gmra.mxu0 %v2177
        %v2202 = vpop.f32.mrf.mxu0
        %v2203 = vadd.f32 0.0, %v2202
        %2204 = vdwg.mxu0
        %v2206 = vsel %vm1326, %v2067, 0
        %v2209 = vsel %vm1326, %v2117, 0
        %v2212 = vsel %vm1326, %v2120, 0
        %2214 = vmatpush.xpose.msra.mxu0 0.0
        %2215 = vmatpush.xpose.msra.mxu0 0.0
        %2216 = vmatpush.xpose.msra.mxu0 0.0
        %2217 = vmatpush.xpose.msra.mxu0 0.0
        %2218 = vmatpush.xpose.msra.mxu0 0.0
        %2219 = vmatpush.xpose.msra.mxu0 0.0
        %2220 = vmatpush.xpose.msra.mxu0 0.0
        %2221 = vmatpush.xpose.msra.mxu0 0.0
        %2222 = vmatpush.xpose.msra.mxu0 0.0
        %2223 = vmatpush.xpose.msra.mxu0 0.0
        %2224 = vmatpush.xpose.msra.mxu0 0.0
        %2225 = vmatpush.xpose.msra.mxu0 0.0
        %2226 = vmatpush.xpose.msra.mxu0 0.0
        %2227 = vmatpush.xpose.msra.mxu0 0.0
        %2228 = vmatpush.xpose.msra.mxu0 %v2212
        %2229 = vmatpush.xpose.msra.mxu0 %v2209
        %2230 = vmatmul.f32.gmra.mxu0 %v2206
        %v2231 = vpop.f32.mrf.mxu0
        %v2232 = vadd.f32 0.0, %v2231
        %2233 = vdwg.mxu0
        %v2234 = vmul.f32 %v2203, 0.35355338
        %v2235 = vmul.f32 %v2232, 0.35355338
        %vm2236 = vcmask 130048
        %v2237 = vsel %vm2236, %v2234, -inf
        %2238 = vmax.xlane.f32.xlu0 %v2237
        %v2239 = vpop.xlane.xlu0 %2238
        %v2240 = vsel %vm2236, %v2235, -inf
        %2241 = vmax.xlane.f32.xlu0 %v2240
        %v2242 = vpop.xlane.xlu0 %2241
        %v2243 = vsub.f32 %v2234, %v2239
        %v2244 = vsub.f32 %v2235, %v2242
        %v2245 = vmul.f32 %v2243, 1.442695
        %v2246 = vpow.pop %v2245
        %v2247 = vmul.f32 %v2244, 1.442695
        %v2248 = vpow.pop %v2247
        %v2249 = vsel %vm2236, %v2246, 0.0
        %2250 = vadd.xlane.f32.xlu0 %v2249
        %v2251 = vpop.xlane.xlu0 %2250
        %v2252 = vsel %vm2236, %v2248, 0.0
        %2253 = vadd.xlane.f32.xlu0 %v2252
        %v2254 = vpop.xlane.xlu0 %2253
        %v2255 = vrcp.pop %v2251
        %v2256 = vrcp.pop %v2254
        %v2257 = vmul.f32 %v2246, %v2255
        %v2258 = vmul.f32 %v2248, %v2256
        %v2260 = vsel %vm2236, %v2257, 0
        %2262 = vmatpush.msra.mxu0 0.0
        %2263 = vmatpush.msra.mxu0 0.0
        %2264 = vmatpush.msra.mxu0 0.0
        %2265 = vmatpush.msra.mxu0 0.0
        %2266 = vmatpush.msra.mxu0 0.0
        %2267 = vmatpush.msra.mxu0 0.0
        %2268 = vmatpush.msra.mxu0 0.0
        %2269 = vmatpush.msra.mxu0 0.0
        %2270 = vmatpush.msra.mxu0 0.0
        %2271 = vmatpush.msra.mxu0 0.0
        %2272 = vmatpush.msra.mxu0 0.0
        %2273 = vmatpush.msra.mxu0 0.0
        %2274 = vmatpush.msra.mxu0 0.0
        %2275 = vmatpush.msra.mxu0 0.0
        %2276 = vmatpush.msra.mxu0 %v2163
        %2277 = vmatpush.msra.mxu0 %v2160
        %2278 = vmatmul.f32.gmra.mxu0 %v2260
        %v2279 = vpop.f32.mrf.mxu0
        %v2280 = vadd.f32 0.0, %v2279
        %2281 = vdwg.mxu0
        %v2283 = vsel %vm2236, %v2258, 0
        %2285 = vmatpush.msra.mxu0 0.0
        %2286 = vmatpush.msra.mxu0 0.0
        %2287 = vmatpush.msra.mxu0 0.0
        %2288 = vmatpush.msra.mxu0 0.0
        %2289 = vmatpush.msra.mxu0 0.0
        %2290 = vmatpush.msra.mxu0 0.0
        %2291 = vmatpush.msra.mxu0 0.0
        %2292 = vmatpush.msra.mxu0 0.0
        %2293 = vmatpush.msra.mxu0 0.0
        %2294 = vmatpush.msra.mxu0 0.0
        %2295 = vmatpush.msra.mxu0 0.0
        %2296 = vmatpush.msra.mxu0 0.0
        %2297 = vmatpush.msra.mxu0 0.0
        %2298 = vmatpush.msra.mxu0 0.0
        %2299 = vmatpush.msra.mxu0 %v2169
        %2300 = vmatpush.msra.mxu0 %v2166
        %2301 = vmatmul.f32.gmra.mxu0 %v2283
        %v2302 = vpop.f32.mrf.mxu0
        %v2303 = vadd.f32 0.0, %v2302
        %2304 = vdwg.mxu0
        %v2305 = vadd.f32 %v2257, 0.0
        %v2306 = vadd.f32 %v2258, 0.0
        %2307 = vrot.lane.b32.xlu0 %v2064, 120
        %v2308 = vpop.permute.xlu0 %2307
        %2309 = vrot.lane.b32.xlu0 %v2111, 120
        %v2310 = vpop.permute.xlu0 %2309
        %2311 = vrot.lane.b32.xlu0 %v2114, 120
        %v2312 = vpop.permute.xlu0 %2311
        %v2313 = vsel %vm1326, %v2308, 0
        %v2315 = vsel %vm1326, %v2310, 0
        %v2317 = vsel %vm1326, %v2312, 0
        %2319 = vmatpush.xpose.msra.mxu0 0.0
        %2320 = vmatpush.xpose.msra.mxu0 0.0
        %2321 = vmatpush.xpose.msra.mxu0 0.0
        %2322 = vmatpush.xpose.msra.mxu0 0.0
        %2323 = vmatpush.xpose.msra.mxu0 0.0
        %2324 = vmatpush.xpose.msra.mxu0 0.0
        %2325 = vmatpush.xpose.msra.mxu0 0.0
        %2326 = vmatpush.xpose.msra.mxu0 0.0
        %2327 = vmatpush.xpose.msra.mxu0 0.0
        %2328 = vmatpush.xpose.msra.mxu0 0.0
        %2329 = vmatpush.xpose.msra.mxu0 0.0
        %2330 = vmatpush.xpose.msra.mxu0 0.0
        %2331 = vmatpush.xpose.msra.mxu0 0.0
        %2332 = vmatpush.xpose.msra.mxu0 0.0
        %2333 = vmatpush.xpose.msra.mxu0 %v2317
        %2334 = vmatpush.xpose.msra.mxu0 %v2315
        %2335 = vmatmul.f32.gmra.mxu0 %v2313
        %v2336 = vpop.f32.mrf.mxu0
        %v2337 = vadd.f32 0.0, %v2336
        %2338 = vdwg.mxu0
        %2339 = vrot.lane.b32.xlu0 %v2067, 120
        %v2340 = vpop.permute.xlu0 %2339
        %2341 = vrot.lane.b32.xlu0 %v2117, 120
        %v2342 = vpop.permute.xlu0 %2341
        %2343 = vrot.lane.b32.xlu0 %v2120, 120
        %v2344 = vpop.permute.xlu0 %2343
        %v2345 = vsel %vm1326, %v2340, 0
        %v2347 = vsel %vm1326, %v2342, 0
        %v2349 = vsel %vm1326, %v2344, 0
        %2351 = vmatpush.xpose.msra.mxu0 0.0
        %2352 = vmatpush.xpose.msra.mxu0 0.0
        %2353 = vmatpush.xpose.msra.mxu0 0.0
        %2354 = vmatpush.xpose.msra.mxu0 0.0
        %2355 = vmatpush.xpose.msra.mxu0 0.0
        %2356 = vmatpush.xpose.msra.mxu0 0.0
        %2357 = vmatpush.xpose.msra.mxu0 0.0
        %2358 = vmatpush.xpose.msra.mxu0 0.0
        %2359 = vmatpush.xpose.msra.mxu0 0.0
        %2360 = vmatpush.xpose.msra.mxu0 0.0
        %2361 = vmatpush.xpose.msra.mxu0 0.0
        %2362 = vmatpush.xpose.msra.mxu0 0.0
        %2363 = vmatpush.xpose.msra.mxu0 0.0
        %2364 = vmatpush.xpose.msra.mxu0 0.0
        %2365 = vmatpush.xpose.msra.mxu0 %v2349
        %2366 = vmatpush.xpose.msra.mxu0 %v2347
        %2367 = vmatmul.f32.gmra.mxu0 %v2345
        %v2368 = vpop.f32.mrf.mxu0
        %v2369 = vadd.f32 0.0, %v2368
        %2370 = vdwg.mxu0
        %v2371 = vmul.f32 %v2337, 0.35355338
        %v2372 = vmul.f32 %v2369, 0.35355338
        %v2373 = vsel %vm2236, %v2371, -inf
        %2374 = vmax.xlane.f32.xlu0 %v2373
        %v2375 = vpop.xlane.xlu0 %2374
        %v2376 = vsel %vm2236, %v2372, -inf
        %2377 = vmax.xlane.f32.xlu0 %v2376
        %v2378 = vpop.xlane.xlu0 %2377
        %v2379 = vsub.f32 %v2371, %v2375
        %v2380 = vsub.f32 %v2372, %v2378
        %v2381 = vmul.f32 %v2379, 1.442695
        %v2382 = vpow.pop %v2381
        %v2383 = vmul.f32 %v2380, 1.442695
        %v2384 = vpow.pop %v2383
        %v2385 = vsel %vm2236, %v2382, 0.0
        %2386 = vadd.xlane.f32.xlu0 %v2385
        %v2387 = vpop.xlane.xlu0 %2386
        %v2388 = vsel %vm2236, %v2384, 0.0
        %2389 = vadd.xlane.f32.xlu0 %v2388
        %v2390 = vpop.xlane.xlu0 %2389
        %v2391 = vrcp.pop %v2387
        %v2392 = vrcp.pop %v2390
        %v2393 = vmul.f32 %v2382, %v2391
        %v2394 = vmul.f32 %v2384, %v2392
        %2397 = vrot.lane.b32.xlu0 %v2160, 120
        %v2398 = vpop.permute.xlu0 %2397
        %2399 = vrot.lane.b32.xlu0 %v2163, 120
        %v2400 = vpop.permute.xlu0 %2399
        %v2404 = vsel %vm2236, %v2393, 0
        %2406 = vmatpush.msra.mxu0 0.0
        %2407 = vmatpush.msra.mxu0 0.0
        %2408 = vmatpush.msra.mxu0 0.0
        %2409 = vmatpush.msra.mxu0 0.0
        %2410 = vmatpush.msra.mxu0 0.0
        %2411 = vmatpush.msra.mxu0 0.0
        %2412 = vmatpush.msra.mxu0 0.0
        %2413 = vmatpush.msra.mxu0 0.0
        %2414 = vmatpush.msra.mxu0 0.0
        %2415 = vmatpush.msra.mxu0 0.0
        %2416 = vmatpush.msra.mxu0 0.0
        %2417 = vmatpush.msra.mxu0 0.0
        %2418 = vmatpush.msra.mxu0 0.0
        %2419 = vmatpush.msra.mxu0 0.0
        %2420 = vmatpush.msra.mxu0 %v2400
        %2421 = vmatpush.msra.mxu0 %v2398
        %2422 = vmatmul.f32.gmra.mxu0 %v2404
        %v2423 = vpop.f32.mrf.mxu0
        %v2424 = vadd.f32 0.0, %v2423
        %2425 = vdwg.mxu0
        %2428 = vrot.lane.b32.xlu0 %v2166, 120
        %v2429 = vpop.permute.xlu0 %2428
        %2430 = vrot.lane.b32.xlu0 %v2169, 120
        %v2431 = vpop.permute.xlu0 %2430
        %v2435 = vsel %vm2236, %v2394, 0
        %2437 = vmatpush.msra.mxu0 0.0
        %2438 = vmatpush.msra.mxu0 0.0
        %2439 = vmatpush.msra.mxu0 0.0
        %2440 = vmatpush.msra.mxu0 0.0
        %2441 = vmatpush.msra.mxu0 0.0
        %2442 = vmatpush.msra.mxu0 0.0
        %2443 = vmatpush.msra.mxu0 0.0
        %2444 = vmatpush.msra.mxu0 0.0
        %2445 = vmatpush.msra.mxu0 0.0
        %2446 = vmatpush.msra.mxu0 0.0
        %2447 = vmatpush.msra.mxu0 0.0
        %2448 = vmatpush.msra.mxu0 0.0
        %2449 = vmatpush.msra.mxu0 0.0
        %2450 = vmatpush.msra.mxu0 0.0
        %2451 = vmatpush.msra.mxu0 %v2431
        %2452 = vmatpush.msra.mxu0 %v2429
        %2453 = vmatmul.f32.gmra.mxu0 %v2435
        %v2454 = vpop.f32.mrf.mxu0
        %v2455 = vadd.f32 0.0, %v2454
        %2456 = vdwg.mxu0
        %v2458 = vsel %vm1326, %v2424, 0
        %v2461 = vsel %vm1326, %v2455, 0
        %2463 = vmatpush.msra.mxu0 0.0
        %2464 = vmatpush.msra.mxu0 0.0
        %2465 = vmatpush.msra.mxu0 0.0
        %2466 = vmatpush.msra.mxu0 0.0
        %2467 = vmatpush.msra.mxu0 0.0
        %2468 = vmatpush.msra.mxu0 0.0
        %2469 = vmatpush.msra.mxu0 0.0
        %2470 = vmatpush.msra.mxu0 0.0
        %2471 = vmatpush.msra.mxu0 0.0
        %2472 = vmatpush.msra.mxu0 0.0
        %2473 = vmatpush.msra.mxu0 0.0
        %2474 = vmatpush.msra.mxu0 0.0
        %2475 = vmatpush.msra.mxu0 0.0
        %2476 = vmatpush.msra.mxu0 0.0
        %2477 = vmatpush.msra.mxu0 0.0
        %2478 = vmatpush.msra.mxu0 %v2172
        %2479 = vmatmul.f32.gmra.mxu0 %v2458
        %v2480 = vpop.f32.mrf.mxu0
        %v2481 = vadd.f32 0.0, %v2480
        %2482 = vmatmul.f32.gmra.mxu0 %v2461
        %v2483 = vpop.f32.mrf.mxu0
        %v2484 = vadd.f32 0.0, %v2483
        %2485 = vdwg.mxu0
        %v2487 = vsel %vm1326, %v2280, 0
        %v2490 = vsel %vm1326, %v2303, 0
        %2492 = vmatpush.msra.mxu0 0.0
        %2493 = vmatpush.msra.mxu0 0.0
        %2494 = vmatpush.msra.mxu0 0.0
        %2495 = vmatpush.msra.mxu0 0.0
        %2496 = vmatpush.msra.mxu0 0.0
        %2497 = vmatpush.msra.mxu0 0.0
        %2498 = vmatpush.msra.mxu0 0.0
        %2499 = vmatpush.msra.mxu0 0.0
        %2500 = vmatpush.msra.mxu0 0.0
        %2501 = vmatpush.msra.mxu0 0.0
        %2502 = vmatpush.msra.mxu0 0.0
        %2503 = vmatpush.msra.mxu0 0.0
        %2504 = vmatpush.msra.mxu0 0.0
        %2505 = vmatpush.msra.mxu0 0.0
        %2506 = vmatpush.msra.mxu0 0.0
        %2507 = vmatpush.msra.mxu0 %v2171
        %2508 = vmatmul.f32.gmra.mxu0 %v2487
        %v2509 = vpop.f32.mrf.mxu0
        %v2510 = vadd.f32 %v2481, %v2509
        %2511 = vmatmul.f32.gmra.mxu0 %v2490
        %v2512 = vpop.f32.mrf.mxu0
        %v2513 = vadd.f32 %v2484, %v2512
        %2514 = vdwg.mxu0
        %v2515 = vadd.f32 %v2305, %v2393
        %v2516 = vadd.f32 %v2306, %v2394
        %2517 = vrot.lane.b32.xlu0 %v2064, 112
        %v2518 = vpop.permute.xlu0 %2517
        %2519 = vrot.lane.b32.xlu0 %v2111, 112
        %v2520 = vpop.permute.xlu0 %2519
        %2521 = vrot.lane.b32.xlu0 %v2114, 112
        %v2522 = vpop.permute.xlu0 %2521
        %v2523 = vsel %vm1326, %v2518, 0
        %v2525 = vsel %vm1326, %v2520, 0
        %v2527 = vsel %vm1326, %v2522, 0
        %2529 = vmatpush.xpose.msra.mxu0 0.0
        %2530 = vmatpush.xpose.msra.mxu0 0.0
        %2531 = vmatpush.xpose.msra.mxu0 0.0
        %2532 = vmatpush.xpose.msra.mxu0 0.0
        %2533 = vmatpush.xpose.msra.mxu0 0.0
        %2534 = vmatpush.xpose.msra.mxu0 0.0
        %2535 = vmatpush.xpose.msra.mxu0 0.0
        %2536 = vmatpush.xpose.msra.mxu0 0.0
        %2537 = vmatpush.xpose.msra.mxu0 0.0
        %2538 = vmatpush.xpose.msra.mxu0 0.0
        %2539 = vmatpush.xpose.msra.mxu0 0.0
        %2540 = vmatpush.xpose.msra.mxu0 0.0
        %2541 = vmatpush.xpose.msra.mxu0 0.0
        %2542 = vmatpush.xpose.msra.mxu0 0.0
        %2543 = vmatpush.xpose.msra.mxu0 %v2527
        %2544 = vmatpush.xpose.msra.mxu0 %v2525
        %2545 = vmatmul.f32.gmra.mxu0 %v2523
        %v2546 = vpop.f32.mrf.mxu0
        %v2547 = vadd.f32 0.0, %v2546
        %2548 = vdwg.mxu0
        %2549 = vrot.lane.b32.xlu0 %v2067, 112
        %v2550 = vpop.permute.xlu0 %2549
        %2551 = vrot.lane.b32.xlu0 %v2117, 112
        %v2552 = vpop.permute.xlu0 %2551
        %2553 = vrot.lane.b32.xlu0 %v2120, 112
        %v2554 = vpop.permute.xlu0 %2553
        %v2555 = vsel %vm1326, %v2550, 0
        %v2557 = vsel %vm1326, %v2552, 0
        %v2559 = vsel %vm1326, %v2554, 0
        %2561 = vmatpush.xpose.msra.mxu0 0.0
        %2562 = vmatpush.xpose.msra.mxu0 0.0
        %2563 = vmatpush.xpose.msra.mxu0 0.0
        %2564 = vmatpush.xpose.msra.mxu0 0.0
        %2565 = vmatpush.xpose.msra.mxu0 0.0
        %2566 = vmatpush.xpose.msra.mxu0 0.0
        %2567 = vmatpush.xpose.msra.mxu0 0.0
        %2568 = vmatpush.xpose.msra.mxu0 0.0
        %2569 = vmatpush.xpose.msra.mxu0 0.0
        %2570 = vmatpush.xpose.msra.mxu0 0.0
        %2571 = vmatpush.xpose.msra.mxu0 0.0
        %2572 = vmatpush.xpose.msra.mxu0 0.0
        %2573 = vmatpush.xpose.msra.mxu0 0.0
        %2574 = vmatpush.xpose.msra.mxu0 0.0
        %2575 = vmatpush.xpose.msra.mxu0 %v2559
        %2576 = vmatpush.xpose.msra.mxu0 %v2557
        %2577 = vmatmul.f32.gmra.mxu0 %v2555
        %v2578 = vpop.f32.mrf.mxu0
        %v2579 = vadd.f32 0.0, %v2578
        %2580 = vdwg.mxu0
        %v2581 = vmul.f32 %v2547, 0.35355338
        %v2582 = vmul.f32 %v2579, 0.35355338
        %v2583 = vsel %vm2236, %v2581, -inf
        %2584 = vmax.xlane.f32.xlu0 %v2583
        %v2585 = vpop.xlane.xlu0 %2584
        %v2586 = vsel %vm2236, %v2582, -inf
        %2587 = vmax.xlane.f32.xlu0 %v2586
        %v2588 = vpop.xlane.xlu0 %2587
        %v2589 = vsub.f32 %v2581, %v2585
        %v2590 = vsub.f32 %v2582, %v2588
        %v2591 = vmul.f32 %v2589, 1.442695
        %v2592 = vpow.pop %v2591
        %v2593 = vmul.f32 %v2590, 1.442695
        %v2594 = vpow.pop %v2593
        %v2595 = vsel %vm2236, %v2592, 0.0
        %2596 = vadd.xlane.f32.xlu0 %v2595
        %v2597 = vpop.xlane.xlu0 %2596
        %v2598 = vsel %vm2236, %v2594, 0.0
        %2599 = vadd.xlane.f32.xlu0 %v2598
        %v2600 = vpop.xlane.xlu0 %2599
        %v2601 = vrcp.pop %v2597
        %v2602 = vrcp.pop %v2600
        %v2603 = vmul.f32 %v2592, %v2601
        %v2604 = vmul.f32 %v2594, %v2602
        %2605 = vrot.lane.b32.xlu0 %v2160, 112
        %v2606 = vpop.permute.xlu0 %2605
        %2607 = vrot.lane.b32.xlu0 %v2163, 112
        %v2608 = vpop.permute.xlu0 %2607
        %v2612 = vsel %vm2236, %v2603, 0
        %2614 = vmatpush.msra.mxu0 0.0
        %2615 = vmatpush.msra.mxu0 0.0
        %2616 = vmatpush.msra.mxu0 0.0
        %2617 = vmatpush.msra.mxu0 0.0
        %2618 = vmatpush.msra.mxu0 0.0
        %2619 = vmatpush.msra.mxu0 0.0
        %2620 = vmatpush.msra.mxu0 0.0
        %2621 = vmatpush.msra.mxu0 0.0
        %2622 = vmatpush.msra.mxu0 0.0
        %2623 = vmatpush.msra.mxu0 0.0
        %2624 = vmatpush.msra.mxu0 0.0
        %2625 = vmatpush.msra.mxu0 0.0
        %2626 = vmatpush.msra.mxu0 0.0
        %2627 = vmatpush.msra.mxu0 0.0
        %2628 = vmatpush.msra.mxu0 %v2608
        %2629 = vmatpush.msra.mxu0 %v2606
        %2630 = vmatmul.f32.gmra.mxu0 %v2612
        %v2631 = vpop.f32.mrf.mxu0
        %v2632 = vadd.f32 0.0, %v2631
        %2633 = vdwg.mxu0
        %2634 = vrot.lane.b32.xlu0 %v2166, 112
        %v2635 = vpop.permute.xlu0 %2634
        %2636 = vrot.lane.b32.xlu0 %v2169, 112
        %v2637 = vpop.permute.xlu0 %2636
        %v2641 = vsel %vm2236, %v2604, 0
        %2643 = vmatpush.msra.mxu0 0.0
        %2644 = vmatpush.msra.mxu0 0.0
        %2645 = vmatpush.msra.mxu0 0.0
        %2646 = vmatpush.msra.mxu0 0.0
        %2647 = vmatpush.msra.mxu0 0.0
        %2648 = vmatpush.msra.mxu0 0.0
        %2649 = vmatpush.msra.mxu0 0.0
        %2650 = vmatpush.msra.mxu0 0.0
        %2651 = vmatpush.msra.mxu0 0.0
        %2652 = vmatpush.msra.mxu0 0.0
        %2653 = vmatpush.msra.mxu0 0.0
        %2654 = vmatpush.msra.mxu0 0.0
        %2655 = vmatpush.msra.mxu0 0.0
        %2656 = vmatpush.msra.mxu0 0.0
        %2657 = vmatpush.msra.mxu0 %v2637
        %2658 = vmatpush.msra.mxu0 %v2635
        %2659 = vmatmul.f32.gmra.mxu0 %v2641
        %v2660 = vpop.f32.mrf.mxu0
        %v2661 = vadd.f32 0.0, %v2660
        %2662 = vdwg.mxu0
        %v2664 = vsel %vm1326, %v2632, 0
        %v2667 = vsel %vm1326, %v2661, 0
        %2669 = vmatpush.msra.mxu0 0.0
        %2670 = vmatpush.msra.mxu0 0.0
        %2671 = vmatpush.msra.mxu0 0.0
        %2672 = vmatpush.msra.mxu0 0.0
        %2673 = vmatpush.msra.mxu0 0.0
        %2674 = vmatpush.msra.mxu0 0.0
        %2675 = vmatpush.msra.mxu0 0.0
        %2676 = vmatpush.msra.mxu0 0.0
        %2677 = vmatpush.msra.mxu0 0.0
        %2678 = vmatpush.msra.mxu0 0.0
        %2679 = vmatpush.msra.mxu0 0.0
        %2680 = vmatpush.msra.mxu0 0.0
        %2681 = vmatpush.msra.mxu0 0.0
        %2682 = vmatpush.msra.mxu0 0.0
        %2683 = vmatpush.msra.mxu0 0.0
        %2684 = vmatpush.msra.mxu0 %v2173
        %2685 = vmatmul.f32.gmra.mxu0 %v2664
        %v2686 = vpop.f32.mrf.mxu0
        %v2687 = vadd.f32 0.0, %v2686
        %2688 = vmatmul.f32.gmra.mxu0 %v2667
        %v2689 = vpop.f32.mrf.mxu0
        %v2690 = vadd.f32 0.0, %v2689
        %2691 = vdwg.mxu0
        %v2692 = vadd.f32 %v2510, %v2687
        %v2693 = vadd.f32 %v2513, %v2690
        %v2694 = vadd.f32 %v2515, %v2603
        %v2695 = vadd.f32 %v2516, %v2604
        %2696 = vrot.lane.b32.xlu0 %v2064, 104
        %v2697 = vpop.permute.xlu0 %2696
        %2698 = vrot.lane.b32.xlu0 %v2111, 104
        %v2699 = vpop.permute.xlu0 %2698
        %2700 = vrot.lane.b32.xlu0 %v2114, 104
        %v2701 = vpop.permute.xlu0 %2700
        %v2702 = vsel %vm1326, %v2697, 0
        %v2704 = vsel %vm1326, %v2699, 0
        %v2706 = vsel %vm1326, %v2701, 0
        %2708 = vmatpush.xpose.msra.mxu0 0.0
        %2709 = vmatpush.xpose.msra.mxu0 0.0
        %2710 = vmatpush.xpose.msra.mxu0 0.0
        %2711 = vmatpush.xpose.msra.mxu0 0.0
        %2712 = vmatpush.xpose.msra.mxu0 0.0
        %2713 = vmatpush.xpose.msra.mxu0 0.0
        %2714 = vmatpush.xpose.msra.mxu0 0.0
        %2715 = vmatpush.xpose.msra.mxu0 0.0
        %2716 = vmatpush.xpose.msra.mxu0 0.0
        %2717 = vmatpush.xpose.msra.mxu0 0.0
        %2718 = vmatpush.xpose.msra.mxu0 0.0
        %2719 = vmatpush.xpose.msra.mxu0 0.0
        %2720 = vmatpush.xpose.msra.mxu0 0.0
        %2721 = vmatpush.xpose.msra.mxu0 0.0
        %2722 = vmatpush.xpose.msra.mxu0 %v2706
        %2723 = vmatpush.xpose.msra.mxu0 %v2704
        %2724 = vmatmul.f32.gmra.mxu0 %v2702
        %v2725 = vpop.f32.mrf.mxu0
        %v2726 = vadd.f32 0.0, %v2725
        %2727 = vdwg.mxu0
        %2728 = vrot.lane.b32.xlu0 %v2067, 104
        %v2729 = vpop.permute.xlu0 %2728
        %2730 = vrot.lane.b32.xlu0 %v2117, 104
        %v2731 = vpop.permute.xlu0 %2730
        %2732 = vrot.lane.b32.xlu0 %v2120, 104
        %v2733 = vpop.permute.xlu0 %2732
        %v2734 = vsel %vm1326, %v2729, 0
        %v2736 = vsel %vm1326, %v2731, 0
        %v2738 = vsel %vm1326, %v2733, 0
        %2740 = vmatpush.xpose.msra.mxu0 0.0
        %2741 = vmatpush.xpose.msra.mxu0 0.0
        %2742 = vmatpush.xpose.msra.mxu0 0.0
        %2743 = vmatpush.xpose.msra.mxu0 0.0
        %2744 = vmatpush.xpose.msra.mxu0 0.0
        %2745 = vmatpush.xpose.msra.mxu0 0.0
        %2746 = vmatpush.xpose.msra.mxu0 0.0
        %2747 = vmatpush.xpose.msra.mxu0 0.0
        %2748 = vmatpush.xpose.msra.mxu0 0.0
        %2749 = vmatpush.xpose.msra.mxu0 0.0
        %2750 = vmatpush.xpose.msra.mxu0 0.0
        %2751 = vmatpush.xpose.msra.mxu0 0.0
        %2752 = vmatpush.xpose.msra.mxu0 0.0
        %2753 = vmatpush.xpose.msra.mxu0 0.0
        %2754 = vmatpush.xpose.msra.mxu0 %v2738
        %2755 = vmatpush.xpose.msra.mxu0 %v2736
        %2756 = vmatmul.f32.gmra.mxu0 %v2734
        %v2757 = vpop.f32.mrf.mxu0
        %v2758 = vadd.f32 0.0, %v2757
        %2759 = vdwg.mxu0
        %v2760 = vmul.f32 %v2726, 0.35355338
        %v2761 = vmul.f32 %v2758, 0.35355338
        %v2762 = vsel %vm2236, %v2760, -inf
        %2763 = vmax.xlane.f32.xlu0 %v2762
        %v2764 = vpop.xlane.xlu0 %2763
        %v2765 = vsel %vm2236, %v2761, -inf
        %2766 = vmax.xlane.f32.xlu0 %v2765
        %v2767 = vpop.xlane.xlu0 %2766
        %v2768 = vsub.f32 %v2760, %v2764
        %v2769 = vsub.f32 %v2761, %v2767
        %v2770 = vmul.f32 %v2768, 1.442695
        %v2771 = vpow.pop %v2770
        %v2772 = vmul.f32 %v2769, 1.442695
        %v2773 = vpow.pop %v2772
        %v2774 = vsel %vm2236, %v2771, 0.0
        %2775 = vadd.xlane.f32.xlu0 %v2774
        %v2776 = vpop.xlane.xlu0 %2775
        %v2777 = vsel %vm2236, %v2773, 0.0
        %2778 = vadd.xlane.f32.xlu0 %v2777
        %v2779 = vpop.xlane.xlu0 %2778
        %v2780 = vrcp.pop %v2776
        %v2781 = vrcp.pop %v2779
        %v2782 = vmul.f32 %v2771, %v2780
        %v2783 = vmul.f32 %v2773, %v2781
        %2784 = vrot.lane.b32.xlu0 %v2160, 104
        %v2785 = vpop.permute.xlu0 %2784
        %2786 = vrot.lane.b32.xlu0 %v2163, 104
        %v2787 = vpop.permute.xlu0 %2786
        %v2791 = vsel %vm2236, %v2782, 0
        %2793 = vmatpush.msra.mxu0 0.0
        %2794 = vmatpush.msra.mxu0 0.0
        %2795 = vmatpush.msra.mxu0 0.0
        %2796 = vmatpush.msra.mxu0 0.0
        %2797 = vmatpush.msra.mxu0 0.0
        %2798 = vmatpush.msra.mxu0 0.0
        %2799 = vmatpush.msra.mxu0 0.0
        %2800 = vmatpush.msra.mxu0 0.0
        %2801 = vmatpush.msra.mxu0 0.0
        %2802 = vmatpush.msra.mxu0 0.0
        %2803 = vmatpush.msra.mxu0 0.0
        %2804 = vmatpush.msra.mxu0 0.0
        %2805 = vmatpush.msra.mxu0 0.0
        %2806 = vmatpush.msra.mxu0 0.0
        %2807 = vmatpush.msra.mxu0 %v2787
        %2808 = vmatpush.msra.mxu0 %v2785
        %2809 = vmatmul.f32.gmra.mxu0 %v2791
        %v2810 = vpop.f32.mrf.mxu0
        %v2811 = vadd.f32 0.0, %v2810
        %2812 = vdwg.mxu0
        %2813 = vrot.lane.b32.xlu0 %v2166, 104
        %v2814 = vpop.permute.xlu0 %2813
        %2815 = vrot.lane.b32.xlu0 %v2169, 104
        %v2816 = vpop.permute.xlu0 %2815
        %v2820 = vsel %vm2236, %v2783, 0
        %2822 = vmatpush.msra.mxu0 0.0
        %2823 = vmatpush.msra.mxu0 0.0
        %2824 = vmatpush.msra.mxu0 0.0
        %2825 = vmatpush.msra.mxu0 0.0
        %2826 = vmatpush.msra.mxu0 0.0
        %2827 = vmatpush.msra.mxu0 0.0
        %2828 = vmatpush.msra.mxu0 0.0
        %2829 = vmatpush.msra.mxu0 0.0
        %2830 = vmatpush.msra.mxu0 0.0
        %2831 = vmatpush.msra.mxu0 0.0
        %2832 = vmatpush.msra.mxu0 0.0
        %2833 = vmatpush.msra.mxu0 0.0
        %2834 = vmatpush.msra.mxu0 0.0
        %2835 = vmatpush.msra.mxu0 0.0
        %2836 = vmatpush.msra.mxu0 %v2816
        %2837 = vmatpush.msra.mxu0 %v2814
        %2838 = vmatmul.f32.gmra.mxu0 %v2820
        %v2839 = vpop.f32.mrf.mxu0
        %v2840 = vadd.f32 0.0, %v2839
        %2841 = vdwg.mxu0
        %v2843 = vsel %vm1326, %v2811, 0
        %v2846 = vsel %vm1326, %v2840, 0
        %2848 = vmatpush.msra.mxu0 0.0
        %2849 = vmatpush.msra.mxu0 0.0
        %2850 = vmatpush.msra.mxu0 0.0
        %2851 = vmatpush.msra.mxu0 0.0
        %2852 = vmatpush.msra.mxu0 0.0
        %2853 = vmatpush.msra.mxu0 0.0
        %2854 = vmatpush.msra.mxu0 0.0
        %2855 = vmatpush.msra.mxu0 0.0
        %2856 = vmatpush.msra.mxu0 0.0
        %2857 = vmatpush.msra.mxu0 0.0
        %2858 = vmatpush.msra.mxu0 0.0
        %2859 = vmatpush.msra.mxu0 0.0
        %2860 = vmatpush.msra.mxu0 0.0
        %2861 = vmatpush.msra.mxu0 0.0
        %2862 = vmatpush.msra.mxu0 0.0
        %2863 = vmatpush.msra.mxu0 %v2174
        %2864 = vmatmul.f32.gmra.mxu0 %v2843
        %v2865 = vpop.f32.mrf.mxu0
        %v2866 = vadd.f32 0.0, %v2865
        %2867 = vmatmul.f32.gmra.mxu0 %v2846
        %v2868 = vpop.f32.mrf.mxu0
        %v2869 = vadd.f32 0.0, %v2868
        %2870 = vdwg.mxu0
        %v2871 = vadd.f32 %v2692, %v2866
        %v2872 = vadd.f32 %v2693, %v2869
        %v2873 = vadd.f32 %v2694, %v2782
        %v2874 = vadd.f32 %v2695, %v2783
        %v2876 = vperm.slane %v2175, 0
        %v2878 = vadd.f32 %v2871, %v2876
        %v2879 = vadd.f32 %v2872, %v2876
        %v2880 = vmul.f32 %v2873, 0.25
        %v2881 = vmul.f32 %v2874, 0.25
        %2882 = vst.msk [vmem:[%s1167] sm:$0xff] %vm2236, %v2880
        %2883 = vst.msk [vmem:[%s1167 + $0x8] sm:$0xff] %vm2236, %v2881
        %v2884 = vadd.f32 %v2028, %v2878
        %v2885 = vadd.f32 %v2029, %v2879
        %v2886 = vsel %vm1251, %v2884, 0.0
        %2887 = vadd.xlane.f32.xlu0 %v2886
        %v2888 = vpop.xlane.xlu0 %2887
        %v2889 = vsel %vm1251, %v2885, 0.0
        %2890 = vadd.xlane.f32.xlu0 %v2889
        %v2891 = vpop.xlane.xlu0 %2890
        %v2892 = vmul.f32 %v2888, %v1985
        %v2893 = vmul.f32 %v2891, %v1985
        %v2894 = vsub.f32 %v2884, %v2892
        %v2895 = vsub.f32 %v2885, %v2893
        %v2896 = vmul.f32 %v2894, %v2894
        %v2897 = vmul.f32 %v2895, %v2895
        %v2898 = vsel %vm1251, %v2896, 0.0
        %2899 = vadd.xlane.f32.xlu0 %v2898
        %v2900 = vpop.xlane.xlu0 %2899
        %v2901 = vsel %vm1251, %v2897, 0.0
        %2902 = vadd.xlane.f32.xlu0 %v2901
        %v2903 = vpop.xlane.xlu0 %2902
        %v2904 = vmul.f32 %v2900, %v1985
        %v2905 = vmul.f32 %v2903, %v1985
        %v2906 = vadd.f32 %v2904, 1e-05
        %v2907 = vadd.f32 %v2905, 1e-05
        %v2908 = vrsqrt.pop %v2906
        %v2909 = vmul.f32 %v2908, %v2906
        %v2910 = vmul.f32 %v2909, %v2908
        %v2911 = vmul.f32 0.5, %v2910
        %v2912 = vsub.f32 1.5, %v2911
        %v2913 = vmul.f32 %v2908, %v2912
        %vm2914 = vweird.f32 %v2906
        %vm2915 = vweird.f32 %v2908
        %vm2916 = vmor %vm2914, %vm2915
        %v2917 = vsel %vm2916, %v2908, %v2913
        %v2918 = vrsqrt.pop %v2907
        %v2919 = vmul.f32 %v2918, %v2907
        %v2920 = vmul.f32 %v2919, %v2918
        %v2921 = vmul.f32 0.5, %v2920
        %v2922 = vsub.f32 1.5, %v2921
        %v2923 = vmul.f32 %v2918, %v2922
        %vm2924 = vweird.f32 %v2907
        %vm2925 = vweird.f32 %v2918
        %vm2926 = vmor %vm2924, %vm2925
        %v2927 = vsel %vm2926, %v2918, %v2923
        %v2928 = vmul.f32 %v2894, %v2917
        %v2929 = vmul.f32 %v2895, %v2927
        %v2930 = vperm.slane %v1240, 2
        %v2931 = vmul.f32 %v2928, %v2930
        %v2932 = vmul.f32 %v2929, %v2930
        %v2933 = vperm.slane %v1240, 3
        %v2934 = vadd.f32 %v2931, %v2933
        %v2935 = vadd.f32 %v2932, %v2933
        %v2936 = vld [vmem:[%s1029] sm:$0xff]
        %v2937 = vld [vmem:[%s1029 + $0x8] sm:$0xff]
        %v2938 = vld [vmem:[%s1029 + $0x10] sm:$0xff]
        %v2939 = vld [vmem:[%s1029 + $0x18] sm:$0xff]
        %v2940 = vld [vmem:[%s1206] sm:$0x1]
        %v2942 = vperm.slane %v2940, 0
        %v2945 = vsel %vm1251, %v2934, 0
        %v2948 = vsel %vm1251, %v2935, 0
        %2950 = vmatpush.msra.mxu0 0.0
        %2951 = vmatpush.msra.mxu0 0.0
        %2952 = vmatpush.msra.mxu0 0.0
        %2953 = vmatpush.msra.mxu0 0.0
        %2954 = vmatpush.msra.mxu0 0.0
        %2955 = vmatpush.msra.mxu0 0.0
        %2956 = vmatpush.msra.mxu0 0.0
        %2957 = vmatpush.msra.mxu0 0.0
        %2958 = vmatpush.msra.mxu0 0.0
        %2959 = vmatpush.msra.mxu0 0.0
        %2960 = vmatpush.msra.mxu0 0.0
        %2961 = vmatpush.msra.mxu0 0.0
        %2962 = vmatpush.msra.mxu0 %v2939
        %2963 = vmatpush.msra.mxu0 %v2938
        %2964 = vmatpush.msra.mxu0 %v2937
        %2965 = vmatpush.msra.mxu0 %v2936
        %2966 = vmatmul.f32.gmra.mxu0 %v2945
        %v2967 = vpop.f32.mrf.mxu0
        %v2968 = vadd.f32 %v2942, %v2967
        %2969 = vmatmul.f32.gmra.mxu0 %v2948
        %v2970 = vpop.f32.mrf.mxu0
        %v2971 = vadd.f32 %v2942, %v2970
        %2972 = vdwg.mxu0
        %v2973 = vmax.f32 %v2968, 0.0
        %v2974 = vmax.f32 %v2971, 0.0
        %v2975 = vld [vmem:[%s1211] sm:$0xff]
        %v2976 = vld [vmem:[%s1211 + $0x8] sm:$0xff]
        %v2977 = vld [vmem:[%s1211 + $0x10] sm:$0xff]
        %v2978 = vld [vmem:[%s1211 + $0x18] sm:$0xff]
        %v2979 = vld [vmem:[%s1211 + $0x20] sm:$0xff]
        %v2980 = vld [vmem:[%s1211 + $0x28] sm:$0xff]
        %v2981 = vld [vmem:[%s1211 + $0x30] sm:$0xff]
        %v2982 = vld [vmem:[%s1211 + $0x38] sm:$0xff]
        %v2983 = vld [vmem:[%s1214] sm:$0x1]
        %v2985 = vperm.slane %v2983, 0
        %vm2987 = vcmask 523264
        %v2989 = vsel %vm2987, %v2973, 0
        %v2992 = vsel %vm2987, %v2974, 0
        %2994 = vmatpush.msra.mxu0 0.0
        %2995 = vmatpush.msra.mxu0 0.0
        %2996 = vmatpush.msra.mxu0 0.0
        %2997 = vmatpush.msra.mxu0 0.0
        %2998 = vmatpush.msra.mxu0 0.0
        %2999 = vmatpush.msra.mxu0 0.0
        %3000 = vmatpush.msra.mxu0 0.0
        %3001 = vmatpush.msra.mxu0 0.0
        %3002 = vmatpush.msra.mxu0 %v2982
        %3003 = vmatpush.msra.mxu0 %v2981
        %3004 = vmatpush.msra.mxu0 %v2980
        %3005 = vmatpush.msra.mxu0 %v2979
        %3006 = vmatpush.msra.mxu0 %v2978
        %3007 = vmatpush.msra.mxu0 %v2977
        %3008 = vmatpush.msra.mxu0 %v2976
        %3009 = vmatpush.msra.mxu0 %v2975
        %3010 = vmatmul.f32.gmra.mxu0 %v2989
        %v3011 = vpop.f32.mrf.mxu0
        %v3012 = vadd.f32 %v2985, %v3011
        %3013 = vmatmul.f32.gmra.mxu0 %v2992
        %v3014 = vpop.f32.mrf.mxu0
        %v3015 = vadd.f32 %v2985, %v3014
        %3016 = vdwg.mxu0
        %v3017 = vadd.f32 %v2934, %v3012
        %v3018 = vadd.f32 %v2935, %v3015
        %v3019 = vsel %vm1251, %v3017, 0.0
        %3020 = vadd.xlane.f32.xlu0 %v3019
        %v3021 = vpop.xlane.xlu0 %3020
        %v3022 = vsel %vm1251, %v3018, 0.0
        %3023 = vadd.xlane.f32.xlu0 %v3022
        %v3024 = vpop.xlane.xlu0 %3023
        %v3025 = vmul.f32 %v3021, %v1985
        %v3026 = vmul.f32 %v3024, %v1985
        %v3027 = vsub.f32 %v3017, %v3025
        %v3028 = vsub.f32 %v3018, %v3026
        %v3029 = vmul.f32 %v3027, %v3027
        %v3030 = vmul.f32 %v3028, %v3028
        %v3031 = vsel %vm1251, %v3029, 0.0
        %3032 = vadd.xlane.f32.xlu0 %v3031
        %v3033 = vpop.xlane.xlu0 %3032
        %v3034 = vsel %vm1251, %v3030, 0.0
        %3035 = vadd.xlane.f32.xlu0 %v3034
        %v3036 = vpop.xlane.xlu0 %3035
        %v3037 = vmul.f32 %v3033, %v1985
        %v3038 = vmul.f32 %v3036, %v1985
        %v3039 = vadd.f32 %v3037, 1e-05
        %v3040 = vadd.f32 %v3038, 1e-05
        %v3041 = vrsqrt.pop %v3039
        %v3042 = vmul.f32 %v3041, %v3039
        %v3043 = vmul.f32 %v3042, %v3041
        %v3044 = vmul.f32 0.5, %v3043
        %v3045 = vsub.f32 1.5, %v3044
        %v3046 = vmul.f32 %v3041, %v3045
        %vm3047 = vweird.f32 %v3039
        %vm3048 = vweird.f32 %v3041
        %vm3049 = vmor %vm3047, %vm3048
        %v3050 = vsel %vm3049, %v3041, %v3046
        %v3051 = vrsqrt.pop %v3040
        %v3052 = vmul.f32 %v3051, %v3040
        %v3053 = vmul.f32 %v3052, %v3051
        %v3054 = vmul.f32 0.5, %v3053
        %v3055 = vsub.f32 1.5, %v3054
        %v3056 = vmul.f32 %v3051, %v3055
        %vm3057 = vweird.f32 %v3040
        %vm3058 = vweird.f32 %v3051
        %vm3059 = vmor %vm3057, %vm3058
        %v3060 = vsel %vm3059, %v3051, %v3056
        %v3061 = vmul.f32 %v3027, %v3050
        %v3062 = vmul.f32 %v3028, %v3060
        %v3063 = vperm.slane %v1240, 4
        %v3064 = vmul.f32 %v3061, %v3063
        %v3065 = vmul.f32 %v3062, %v3063
        %v3066 = vperm.slane %v1240, 5
        %v3067 = vadd.f32 %v3064, %v3066
        %v3068 = vadd.f32 %v3065, %v3066
        %3069 = vst.msk [vmem:[#allocation2] sm:$0xff] %vm1251, %v3067
        %3070 = vst.msk [vmem:[#allocation2 + $0x8] sm:$0xff] %vm1251, %v3068
        %p3071 = scmp.eq.s32.totalorder %s52, 1
        // Predicated region
        $region153: #{tpu_custom_call.1} parent=115 // pred_check
          %p3072 = pneg %p3071
        $region154: #{tpu_custom_call.1} parent=115 // pred_check_branch
          %3074 = sbr.rel (%p3072) target = $region156
        $region155: #{tpu_custom_call.1} parent=115 // pred_region
          %v3075 = vld [vmem:[%s4] sm:$0x1]
          %v3076 = vld [vmem:[%s4 + $0x1] sm:$0x1]
          %v3077 = vsel %vm1251, %v3067, 0.0
          %3078 = vadd.xlane.f32.xlu0 %v3077
          %v3079 = vpop.xlane.xlu0 %3078
          %v3080 = vsel %vm1251, %v3068, 0.0
          %3081 = vadd.xlane.f32.xlu0 %v3080
          %v3082 = vpop.xlane.xlu0 %3081
          %v3083 = vmul.f32 %v3079, %v1985
          %v3084 = vmul.f32 %v3082, %v1985
          %v3085 = vsub.f32 %v3067, %v3083
          %v3086 = vsub.f32 %v3068, %v3084
          %v3087 = vmul.f32 %v3085, %v3085
          %v3088 = vmul.f32 %v3086, %v3086
          %v3089 = vsel %vm1251, %v3087, 0.0
          %3090 = vadd.xlane.f32.xlu0 %v3089
          %v3091 = vpop.xlane.xlu0 %3090
          %v3092 = vsel %vm1251, %v3088, 0.0
          %3093 = vadd.xlane.f32.xlu0 %v3092
          %v3094 = vpop.xlane.xlu0 %3093
          %v3095 = vmul.f32 %v3091, %v1985
          %v3096 = vmul.f32 %v3094, %v1985
          %v3097 = vadd.f32 %v3095, 1e-05
          %v3098 = vadd.f32 %v3096, 1e-05
          %v3099 = vrsqrt.pop %v3097
          %v3100 = vmul.f32 %v3099, %v3097
          %v3101 = vmul.f32 %v3100, %v3099
          %v3102 = vmul.f32 0.5, %v3101
          %v3103 = vsub.f32 1.5, %v3102
          %v3104 = vmul.f32 %v3099, %v3103
          %vm3105 = vweird.f32 %v3097
          %vm3106 = vweird.f32 %v3099
          %vm3107 = vmor %vm3105, %vm3106
          %v3108 = vsel %vm3107, %v3099, %v3104
          %v3109 = vrsqrt.pop %v3098
          %v3110 = vmul.f32 %v3109, %v3098
          %v3111 = vmul.f32 %v3110, %v3109
          %v3112 = vmul.f32 0.5, %v3111
          %v3113 = vsub.f32 1.5, %v3112
          %v3114 = vmul.f32 %v3109, %v3113
          %vm3115 = vweird.f32 %v3098
          %vm3116 = vweird.f32 %v3109
          %vm3117 = vmor %vm3115, %vm3116
          %v3118 = vsel %vm3117, %v3109, %v3114
          %v3119 = vmul.f32 %v3085, %v3108
          %v3120 = vmul.f32 %v3086, %v3118
          %v3121 = vperm.slane %v3075, 0
          %v3122 = vmul.f32 %v3119, %v3121
          %v3123 = vmul.f32 %v3120, %v3121
          %v3124 = vperm.slane %v3076, 0
          %v3125 = vadd.f32 %v3122, %v3124
          %v3126 = vadd.f32 %v3123, %v3124
          %3127 = vst.msk [vmem:[#allocation17] sm:$0xff] %vm1251, %v3125
          %3128 = vst.msk [vmem:[#allocation17 + $0x8] sm:$0xff] %vm1251, %v3126
        $region156: #{tpu_custom_call.1} parent=115 // pred_fallthru
          _
        %s3129 = sand.u32 %s680, 1
        %s3130 = scalar_lea.sflag [#allocation19], %s3129
        %s3131 = sand.u32 %s680, 1
        %s3132 = smul.addr %s3131, 16
        %s3133 = scalar_lea.vmem [#allocation18], %s3132
        // Predicated region
        $region157: #{tpu_custom_call.1} parent=115 // pred_check
          %p3134 = pneg %p664
        $region158: #{tpu_custom_call.1} parent=115 // pred_check_branch
          %3136 = sbr.rel (%p3134) target = $region160
        $region159: #{tpu_custom_call.1} parent=115 // pred_region
          %3138 = vsyncadd [#allocation5], 0
          %s3139 = sshll.u32 [#allocation17], 4
          %s3140 = int_to_ptr.vmem [resolvable:$true] %s3139
          %s3141 = sshll.u32 %s24, 4
          %s3142 = int_to_ptr.hbm [resolvable:$true] %s3141
          %3147 = dma.vmem_to_hbm [thread:$0]  %s3140, 256, %s3142, [#allocation5], 128, 128, 8
        $region160: #{tpu_custom_call.1} parent=115 // pred_fallthru
          _
        // Predicated region
        $region161: #{tpu_custom_call.1} parent=115 // pred_check
          %p3148 = pneg %p690
        $region162: #{tpu_custom_call.1} parent=115 // pred_check_branch
          %3150 = sbr.rel (%p3148) target = $region164
        $region163: #{tpu_custom_call.1} parent=115 // pred_region
          %3152 = vsyncadd %s3130, 0
          %s3153 = smul.addr %s52, 2
          %s3154 = smul.addr %s3153, 8
          %s3155 = scalar_lea.hbm %s25, %s3154
          %s3156 = sshll.u32 %s3133, 4
          %s3157 = int_to_ptr.vmem [resolvable:$true] %s3156
          %s3158 = sshll.u32 %s3155, 4
          %s3159 = int_to_ptr.hbm [resolvable:$true] %s3158
          %3164 = dma.vmem_to_hbm [thread:$0]  %s3157, 256, %s3159, %s3130, 128, 128, 8
        $region164: #{tpu_custom_call.1} parent=115 // pred_fallthru
          _
        // Predicated region
        $region165: #{tpu_custom_call.1} parent=115 // pred_check
          %p3165 = pneg %p664
        $region166: #{tpu_custom_call.1} parent=115 // pred_check_branch
          %3167 = sbr.rel (%p3165) target = $region168
        $region167: #{tpu_custom_call.1} parent=115 // pred_region
          %3169 = dma.done [#allocation5], 256
        $region168: #{tpu_custom_call.1} parent=115 // pred_fallthru
          _
      $region116: #{tpu_custom_call.1} parent=5 // pred_fallthru
        _
      %p3170 = scmp.le.s32.totalorder 2, %s47
      // Predicated region
      $region169: #{tpu_custom_call.1} parent=5 // pred_check
        %p3171 = pneg %p3170
      $region170: #{tpu_custom_call.1} parent=5 // pred_check_branch
        %3173 = sbr.rel (%p3171) target = $region172
      $region171: #{tpu_custom_call.1} parent=5 // pred_region
        %s3174 = ssub.s32 %s47, 2
        // Predicated region
        $region173: #{tpu_custom_call.1} parent=171 // pred_check
          %p3175 = pneg %p696
        $region174: #{tpu_custom_call.1} parent=171 // pred_check_branch
          %3177 = sbr.rel (%p3175) target = $region176
        $region175: #{tpu_custom_call.1} parent=171 // pred_region
          %s3178 = sand.u32 %s681, 1
          %s3179 = scalar_lea.sflag [#allocation19], %s3178
          %s3180 = sand.u32 %s681, 1
          %s3181 = smul.addr %s3180, 16
          %s3182 = scalar_lea.vmem [#allocation18], %s3181
          %3184 = dma.done %s3179, 256
        $region176: #{tpu_custom_call.1} parent=171 // pred_fallthru
          _
      $region172: #{tpu_custom_call.1} parent=5 // pred_fallthru
        _
    $region6: #{tpu_custom_call.1} parent=1 // loop_footer
      %s51 = sadd.s32 1, %s47
    $region7: #{tpu_custom_call.1} parent=1 // loop_footer_branch
      %46 = sbr.rel target = $region3
    $region8: #{tpu_custom_call.1} parent=1 // loop_exit
      _
    %3185 = vsyncpa [#allocation4], 1
    %s3186 = scalar_lea.sflag [#allocation4], 1
    %3187 = vsyncpa %s3186, 1
    %3188 = vsyncpa [#allocation7], 1
    %3189 = vsyncpa [#allocation10], 1
    %s3190 = scalar_lea.sflag [#allocation10], 1
    %3191 = vsyncpa %s3190, 1
    %3192 = vsyncpa [#allocation13], 1
    %s3193 = scalar_lea.sflag [#allocation13], 1
    %3194 = vsyncpa %s3193, 1
    %3195 = vsyncpa [#allocation16], 1
    %s3196 = scalar_lea.sflag [#allocation16], 1
    %3197 = vsyncpa %s3196, 1
    %3198 = vsyncpa [#allocation5], 1
    %s3199 = scalar_lea.sflag [#allocation5], 1
    %3200 = vsyncpa %s3199, 1
    %3201 = vsyncpa [#allocation19], 1
    %s3202 = scalar_lea.sflag [#allocation19], 1
    %3203 = vsyncpa %s3202, 1

</llo_original>
